<compile_context>
chip_gen: v6e
topology: v6e:2x2x1
jax: 0.10.0
libtpu: 0.0.40
codegen_flags: <defaults>
</compile_context>

<pallas_src>
import functools

import numpy as np

import jax
import jax.numpy as jnp
from jax import lax
from jax.experimental import pallas as pl
from jax.experimental.pallas import tpu as pltpu


def _mha_block_kernel(xq_ref, xk_ref, xv_ref,
                      wq_ref, wkt_ref, wv_ref, wp_ref,
                      gamma_ref, beta_ref, cg_ref, gc_ref,
                      out_ref,
                      kt_sc, vh_sc, sum_sc, sumsq_sc,
                      *, num_heads, d_keys, q_tile, num_q_tiles, eps):
    qi = pl.program_id(1)
    f32 = jnp.float32
    bf16 = jnp.bfloat16

    # ---- once per batch element --------------------------------------------
    @pl.when(qi == 0)
    def _init():
        xk = xk_ref[...]                                       # (HW, Cin) bf16
        xv = xv_ref[...]                                       # (HW, Cin) bf16
        # K^T projection at full MXU output width, produced directly in the
        # lane-dense (Cout, HW) orientation: (Cout,Cin) . (HW,Cin)^T.  The
        # score matmul below therefore needs no per-tile K transpose.
        kt_sc[...] = lax.dot_general(
            wkt_ref[...], xk, (((1,), (1,)), ((), ())),
            preferred_element_type=f32).astype(bf16)           # (Cout, HW)
        # Full-width V projection once per batch element; it doubles as the
        # residual branch (initialises the resident output block) and, column
        # sliced, as the per-head attention V (head relayout paid once/batch).
        v_full = jnp.dot(xv, wv_ref[...],
                         preferred_element_type=f32).astype(bf16)   # (HW, Cout)
        out_ref[...] = v_full.astype(out_ref.dtype)
        for h in range(num_heads):
            vh_sc[h] = v_full[:, h * d_keys:(h + 1) * d_keys]
        sum_sc[...] = jnp.zeros_like(sum_sc)
        sumsq_sc[...] = jnp.zeros_like(sumsq_sc)

    # ---- this query tile ----------------------------------------------------
    row0 = pl.multiple_of(qi * q_tile, q_tile)
    # Full-width Q projection (MXU N = Cout instead of per-head N = d_keys);
    # the softmax scale is already folded into W_Q by the wrapper.
    q_full = jnp.dot(xq_ref[...], wq_ref[...],
                     preferred_element_type=f32)               # (TQ, Cout)
    # Residual rows (W_V(v)) were staged into the output block at qi == 0.
    y = out_ref[pl.ds(row0, q_tile), :].astype(f32)            # (TQ, Cout)

    # TODO(synk): for num_heads >= ~8 switch this unrolled loop to
    # lax.fori_loop over heads (dynamic leading index into kt_sc / vh_sc /
    # wp_ref) to bound live ranges / vreg spills.
    for h in range(num_heads):
        qh = q_full[:, h * d_keys:(h + 1) * d_keys].astype(bf16)     # (TQ, dk)
        # Plain (TQ,dk)@(dk,HW) against the pre-transposed K scratch.
        s = jnp.dot(qh, kt_sc[h * d_keys:(h + 1) * d_keys, :],
                    preferred_element_type=f32)                       # (TQ, HW)
        m = jnp.max(s, axis=-1, keepdims=True)
        p = jnp.exp(s - m)
        p = p * pl.reciprocal(jnp.sum(p, axis=-1, keepdims=True), approx=True)
        oh = jnp.dot(p.astype(bf16), vh_sc[h],
                     preferred_element_type=f32)                      # (TQ, dk)
        # Fused head-concat + final projection: accumulate this head's
        # row-block of W_P directly into the output rows (no concat buffer).
        y = y + jnp.dot(oh.astype(bf16), wp_ref[h],
                        preferred_element_type=f32)                   # (TQ, Cout)

    out_ref[pl.ds(row0, q_tile), :] = y.astype(out_ref.dtype)
    # GroupNorm column statistics accumulated from the un-rounded f32 rows.
    # NOTE: E[x^2]-E[x]^2 can cancel badly if |mean| >> std; fine for
    # normalised diffusion activations, switch to shifted sums otherwise.
    sum_sc[...] += jnp.sum(y, axis=0, keepdims=True)
    sumsq_sc[...] += jnp.sum(y * y, axis=0, keepdims=True)

    # ---- last query tile: GroupNorm epilogue --------------------------------
    @pl.when(qi == num_q_tiles - 1)
    def _norm():
        # Per-group reduction + broadcast back through exact 0/1 indicator
        # matrices precomputed in the wrapper (gc_ref already folds the
        # 1/(HW*group_size) factor).  No (C,C) temporary, no iota tricks.
        mean_c = jnp.dot(
            jnp.dot(sum_sc[...], cg_ref[...], preferred_element_type=f32),
            gc_ref[...], preferred_element_type=f32)                  # (1, C)
        meansq_c = jnp.dot(
            jnp.dot(sumsq_sc[...], cg_ref[...], preferred_element_type=f32),
            gc_ref[...], preferred_element_type=f32)                  # (1, C)
        var_c = jnp.maximum(meansq_c - mean_c * mean_c, 0.0)          # biased
        inv_std = lax.rsqrt(var_c + eps)
        scale_c = inv_std * gamma_ref[...]
        shift_c = beta_ref[...] - mean_c * scale_c

        # Apply the affine in q_tile-sized row chunks (read-modify-write in
        # place) so the epilogue keeps its temporaries bounded to (TQ, Cout).
        @pl.loop(0, num_q_tiles)
        def _apply(t):
            r0 = pl.multiple_of(t * q_tile, q_tile)
            rows = out_ref[pl.ds(r0, q_tile), :].astype(f32)
            out_ref[pl.ds(r0, q_tile), :] = (
                rows * scale_c + shift_c).astype(out_ref.dtype)


def _pick_q_tile(hw, num_heads, requested=None):
    if (requested is not None and 0 < requested <= hw and hw % requested == 0
            and (requested % 8 == 0 or requested == hw)):
        return requested
    # Prefer MXU-M-friendly tiles; keep the per-head (TQ, HW) f32 score
    # temporaries inside a modest VMEM budget (matters for HW >= ~2k on v7x).
    budget = 8 * 1024 * 1024
    for t in (512, 256, 128, 64, 32, 16, 8):
        if t <= hw and hw % t == 0 and num_heads * t * hw * 4 <= budget:
            return t
    for t in (64, 32, 16, 8):
        if t <= hw and hw % t == 0:
            return t
    return hw


def _vmem_limit_bytes():
    cap = 128 * 1024 * 1024
    try:
        cap = int(pltpu.get_tpu_info().vmem_capacity_bytes)
    except Exception:
        pass
    # Leave headroom for the compiler's own scratch / double buffers:
    # ~100 MiB on 128 MiB parts (v5e / v6e), ~56 MiB on 64 MiB parts (v7x).
    return int(min(100 * 1024 * 1024, cap - cap // 8))


def multi_head_attention_block(xq, xk, xv, wq, wk, wv, wp, gamma, beta, *,
                               num_heads, num_groups, eps=1e-5, q_tile=None):
    """Pallas implementation of MultiHeadAttentionBlock.forward (is_batchnorm=True).

    xq, xk, xv : (B, C_in, H, W)  NCHW
    wq, wk, wv : (C_in, C_out)    (transposed nn.Linear.weight)
    wp         : (C_out, C_out)
    gamma,beta : (C_out,)         GroupNorm affine
    returns    : (B, C_out, H, W) float32
    """
    B, Cin, H, W = xq.shape
    Cout = wq.shape[1]
    HW = H * W
    assert Cout % num_heads == 0 and Cout % num_groups == 0
    d_keys = Cout // num_heads
    group_size = Cout // num_groups
    tq = _pick_q_tile(HW, num_heads, q_tile)
    nq = HW // tq
    assert HW % tq == 0

    # Token-major (B, HW, Cin) layout; bf16 tokens halve input HBM/VMEM traffic.
    # TODO(synk): self-attention fast path -- when xq is xk is xv, pass the
    # token stream once and fuse W_Q/W_K/W_V into a single projection at qi==0
    # (cuts input DMA ~3x and drops two resident full-HW input blocks).
    def to_tokens(x):
        return x.reshape(B, Cin, HW).transpose(0, 2, 1).astype(jnp.bfloat16)

    xq_t, xk_t, xv_t = to_tokens(xq), to_tokens(xk), to_tokens(xv)

    scale = float(d_keys) ** -0.5
    wq_b = (wq * scale).astype(jnp.bfloat16)           # (Cin, Cout), scale folded
    wkt_b = wk.T.astype(jnp.bfloat16)                  # (Cout, Cin) -> K^T proj
    wv_b = wv.astype(jnp.bfloat16)                     # (Cin, Cout)
    wp_h = wp.reshape(num_heads, d_keys, Cout).astype(jnp.bfloat16)

    gamma2 = gamma.reshape(1, Cout).astype(jnp.float32)
    beta2 = beta.reshape(1, Cout).astype(jnp.float32)

    # GroupNorm group-indicator matrices (exact 0/1, built host-side): (C, G)
    # reduces channel sums to group sums, (G, C) broadcasts back per channel
    # with 1/(HW*group_size) folded in so the kernel epilogue is two tiny
    # matmuls and no division.
    grp = np.arange(Cout) // group_size
    cg = (grp[:, None] == np.arange(num_groups)[None, :]).astype(np.float32)
    gc = jnp.asarray(cg.T / float(HW * group_size))
    cg = jnp.asarray(cg)

    kernel = functools.partial(
        _mha_block_kernel, num_heads=num_heads, d_keys=d_keys,
        q_tile=tq, num_q_tiles=nq, eps=eps)

    tok_q_spec = pl.BlockSpec((None, tq, Cin), lambda b, qi: (b, qi, 0))
    tok_kv_spec = pl.BlockSpec((None, HW, Cin), lambda b, qi: (b, 0, 0))
    # TODO(synk): on v7x (64 MiB VMEM) add pipeline_mode=pl.Buffered(1) to the
    # constant weight/affine specs and the full-HW xk/xv specs to drop the
    # unused second pipeline buffers.
    w_qv_spec = pl.BlockSpec((Cin, Cout), lambda b, qi: (0, 0))
    w_kt_spec = pl.BlockSpec((Cout, Cin), lambda b, qi: (0, 0))
    wp_spec = pl.BlockSpec((num_heads, d_keys, Cout), lambda b, qi: (0, 0, 0))
    vec_spec = pl.BlockSpec((1, Cout), lambda b, qi: (0, 0))
    cg_spec = pl.BlockSpec((Cout, num_groups), lambda b, qi: (0, 0))
    gc_spec = pl.BlockSpec((num_groups, Cout), lambda b, qi: (0, 0))

    out_tok = pl.pallas_call(
        kernel,
        out_shape=jax.ShapeDtypeStruct((B, HW, Cout), jnp.bfloat16),
        grid=(B, nq),
        in_specs=[tok_q_spec, tok_kv_spec, tok_kv_spec,
                  w_qv_spec, w_kt_spec, w_qv_spec, wp_spec,
                  vec_spec, vec_spec, cg_spec, gc_spec],
        out_specs=pl.BlockSpec((None, HW, Cout), lambda b, qi: (b, 0, 0)),
        scratch_shapes=[
            pltpu.VMEM((Cout, HW), jnp.bfloat16),               # K^T (heads on rows)
            pltpu.VMEM((num_heads, HW, d_keys), jnp.bfloat16),  # V per head
            pltpu.VMEM((1, Cout), jnp.float32),                 # col sum
            pltpu.VMEM((1, Cout), jnp.float32),                 # col sum of sq
        ],
        # TODO(synk): when B per chip can be 1, add a head / query-tile
        # "parallel" split so v7x's second TensorCore is not idle.
        compiler_params=pltpu.CompilerParams(
            dimension_semantics=("parallel", "arbitrary"),
            vmem_limit_bytes=_vmem_limit_bytes()),
    )(xq_t, xk_t, xv_t, wq_b, wkt_b, wv_b, wp_h, gamma2, beta2, cg, gc)

    # back to NCHW, user-facing f32
    return out_tok.transpose(0, 2, 1).reshape(B, Cout, H, W).astype(jnp.float32)


def _reference(xq, xk, xv, wq, wk, wv, wp, gamma, beta, *,
               num_heads, num_groups, eps=1e-5):
    """Pure-JAX f32 reference mirroring the PyTorch forward."""
    B, Cin, H, W = xq.shape
    Cout = wq.shape[1]
    HW = H * W
    dk = Cout // num_heads

    def tok(x):
        return x.reshape(B, Cin, HW).transpose(0, 2, 1)

    q = tok(xq) @ wq
    k = tok(xk) @ wk
    v = tok(xv) @ wv
    Q = q.reshape(B, HW, num_heads, dk).transpose(0, 2, 1, 3)
    K = k.reshape(B, HW, num_heads, dk).transpose(0, 2, 1, 3)
    V = v.reshape(B, HW, num_heads, dk).transpose(0, 2, 1, 3)
    s = jnp.einsum('bhqd,bhkd->bhqk', Q, K) * dk ** (-0.5)
    p = jax.nn.softmax(s, axis=-1)
    a = jnp.einsum('bhqk,bhkd->bhqd', p, V)
    a = a.transpose(0, 2, 1, 3).reshape(B, HW, Cout)
    y = a @ wp + v                                   # residual with W_V(v)
    yc = y.transpose(0, 2, 1)                        # (B, Cout, HW)
    gs = Cout // num_groups
    yg = yc.reshape(B, num_groups, gs * HW)
    mean = yg.mean(-1, keepdims=True)
    var = yg.var(-1, keepdims=True)
    yn = ((yg - mean) / jnp.sqrt(var + eps)).reshape(B, Cout, HW)
    out = yn * gamma[None, :, None] + beta[None, :, None]
    return out.reshape(B, Cout, H, W)


if __name__ == "__main__":
    # Small TPU-friendly shapes: lane-dense Cout=128, two query tiles.
    B, Cin, Cout, H, W = 2, 64, 128, 16, 16
    num_heads, num_groups = 2, 32          # module defaults

    key = jax.random.PRNGKey(0)
    kq, kk, kv, kwq, kwk, kwv, kwp, kg, kb = jax.random.split(key, 9)

    xq = jax.random.normal(kq, (B, Cin, H, W), jnp.float32)
    xk = jax.random.normal(kk, (B, Cin, H, W), jnp.float32)
    xv = jax.random.normal(kv, (B, Cin, H, W), jnp.float32)

    # nn.Linear weights are (out, in); we store the transposed (in, out) form.
    wq = jax.random.normal(kwq, (Cin, Cout), jnp.float32) * (Cin ** -0.5)
    wk = jax.random.normal(kwk, (Cin, Cout), jnp.float32) * (Cin ** -0.5)
    wv = jax.random.normal(kwv, (Cin, Cout), jnp.float32) * (Cin ** -0.5)
    wp = jax.random.normal(kwp, (Cout, Cout), jnp.float32) * (Cout ** -0.5)
    gamma = 1.0 + 0.1 * jax.random.normal(kg, (Cout,), jnp.float32)
    beta = 0.1 * jax.random.normal(kb, (Cout,), jnp.float32)

    out = multi_head_attention_block(
        xq, xk, xv, wq, wk, wv, wp, gamma, beta,
        num_heads=num_heads, num_groups=num_groups, q_tile=128)
    out = jax.block_until_ready(out)
    assert out.shape == (B, Cout, H, W)

    # Reference: exact f32 math on bf16-rounded operands (the kernel feeds the
    # MXU bf16 inputs with f32 accumulation, stats stay f32).
    def bf16_round(a):
        return a.astype(jnp.bfloat16).astype(jnp.float32)

    ref = _reference(bf16_round(xq), bf16_round(xk), bf16_round(xv),
                     bf16_round(wq), bf16_round(wk), bf16_round(wv),
                     bf16_round(wp), gamma, beta,
                     num_heads=num_heads, num_groups=num_groups)
    err = float(jnp.max(jnp.abs(out - ref)))
    # bf16-grade output: pre-norm rows and the normalised output are stored in
    # bf16 (1 ulp ~ 0.008 rel -> ~0.03 abs at |out| ~ 4) and the softmax
    # denominator uses the approx reciprocal, so allow a bf16-sized tolerance.
    assert err < 6e-2, f"mismatch vs reference: max abs err {err}"

    print("KERNEL_OK")
</pallas_src>

<mosaic_0001>
module attributes {stable_mosaic.version = 11 : i64} {
  func.func @_mha_block_kernel(%arg0: i32, %arg1: i32, %arg2: memref<1x128x64xbf16, #tpu.memory_space<vmem>>, %arg3: memref<1x256x64xbf16, #tpu.memory_space<vmem>>, %arg4: memref<1x256x64xbf16, #tpu.memory_space<vmem>>, %arg5: memref<64x128xbf16, #tpu.memory_space<vmem>>, %arg6: memref<128x64xbf16, #tpu.memory_space<vmem>>, %arg7: memref<64x128xbf16, #tpu.memory_space<vmem>>, %arg8: memref<2x64x128xbf16, #tpu.memory_space<vmem>>, %arg9: memref<1x128xf32, #tpu.memory_space<vmem>>, %arg10: memref<1x128xf32, #tpu.memory_space<vmem>>, %arg11: memref<128x32xf32, #tpu.memory_space<vmem>>, %arg12: memref<32x128xf32, #tpu.memory_space<vmem>>, %arg13: memref<1x256x128xbf16, #tpu.memory_space<vmem>>, %arg14: memref<128x256xbf16, #tpu.memory_space<vmem>>, %arg15: memref<2x256x64xbf16, #tpu.memory_space<vmem>>, %arg16: memref<1x128xf32, #tpu.memory_space<vmem>>, %arg17: memref<1x128xf32, #tpu.memory_space<vmem>>) attributes {dimension_semantics = [#tpu.dimension_semantics<parallel>, #tpu.dimension_semantics<arbitrary>], iteration_bounds = array<i64: 2, 2>, scalar_prefetch = 0 : i64, scratch_operands = 4 : i64, tpu.core_type = #tpu.core_type<tc>, window_params = [{transform_indices = @transform_0, window_bounds = array<i64: 1, 128, 64>}, {transform_indices = @transform_1, window_bounds = array<i64: 1, 256, 64>}, {transform_indices = @transform_2, window_bounds = array<i64: 1, 256, 64>}, {pipeline_mode = #tpu.pipeline_mode<synchronous>, transform_indices = @transform_3, window_bounds = array<i64: 64, 128>}, {pipeline_mode = #tpu.pipeline_mode<synchronous>, transform_indices = @transform_4, window_bounds = array<i64: 128, 64>}, {pipeline_mode = #tpu.pipeline_mode<synchronous>, transform_indices = @transform_5, window_bounds = array<i64: 64, 128>}, {pipeline_mode = #tpu.pipeline_mode<synchronous>, transform_indices = @transform_6, window_bounds = array<i64: 2, 64, 128>}, {pipeline_mode = #tpu.pipeline_mode<synchronous>, transform_indices = @transform_7, window_bounds = array<i64: 1, 128>}, {pipeline_mode = #tpu.pipeline_mode<synchronous>, transform_indices = @transform_8, window_bounds = array<i64: 1, 128>}, {pipeline_mode = #tpu.pipeline_mode<synchronous>, transform_indices = @transform_9, window_bounds = array<i64: 128, 32>}, {pipeline_mode = #tpu.pipeline_mode<synchronous>, transform_indices = @transform_10, window_bounds = array<i64: 32, 128>}, {transform_indices = @transform_11, window_bounds = array<i64: 1, 256, 128>}]} {
    %c0_i32 = arith.constant 0 : i32
    %0 = arith.cmpi eq, %arg1, %c0_i32 : i32
    %1 = arith.extui %0 : i1 to i32
    %c0_i32_0 = arith.constant 0 : i32
    %2 = arith.cmpi ne, %1, %c0_i32_0 : i32
    scf.if %2 {
      %c0_44 = arith.constant 0 : index
      %c0_45 = arith.constant 0 : index
      %c0_46 = arith.constant 0 : index
      %78 = vector.load %arg3[%c0_44, %c0_45, %c0_46] : memref<1x256x64xbf16, #tpu.memory_space<vmem>>, vector<1x256x64xbf16>
      %79 = vector.shape_cast %78 : vector<1x256x64xbf16> to vector<256x64xbf16>
      %c0_47 = arith.constant 0 : index
      %c0_48 = arith.constant 0 : index
      %c0_49 = arith.constant 0 : index
      %80 = vector.load %arg4[%c0_47, %c0_48, %c0_49] : memref<1x256x64xbf16, #tpu.memory_space<vmem>>, vector<1x256x64xbf16>
      %81 = vector.shape_cast %80 : vector<1x256x64xbf16> to vector<256x64xbf16>
      %c0_50 = arith.constant 0 : index
      %c0_51 = arith.constant 0 : index
      %82 = vector.load %arg6[%c0_50, %c0_51] : memref<128x64xbf16, #tpu.memory_space<vmem>>, vector<128x64xbf16>
      %cst_52 = arith.constant dense<0.000000e+00> : vector<128x256xf32>
      %83 = tpu.matmul %82, %79, %cst_52 {dimension_numbers = #tpu.dot_dimension_numbers<[1], [1], [0], [0], [0, 0, 1, 0], [], []>} : vector<128x64xbf16>, vector<256x64xbf16>, vector<128x256xf32> -> vector<128x256xf32>
      %84 = arith.truncf %83 : vector<128x256xf32> to vector<128x256xbf16>
      %c0_53 = arith.constant 0 : index
      %c0_54 = arith.constant 0 : index
      %85 = vector.load %arg14[%c0_53, %c0_54] : memref<128x256xbf16, #tpu.memory_space<vmem>>, vector<128x256xbf16>
      tpu.vector_store %arg14[%c0_53, %c0_54], %84 {strides = array<i32>} : memref<128x256xbf16, #tpu.memory_space<vmem>>, vector<128x256xbf16>,
      %c0_55 = arith.constant 0 : index
      %c0_56 = arith.constant 0 : index
      %86 = vector.load %arg7[%c0_55, %c0_56] : memref<64x128xbf16, #tpu.memory_space<vmem>>, vector<64x128xbf16>
      %cst_57 = arith.constant dense<0.000000e+00> : vector<256x128xf32>
      %87 = tpu.matmul %81, %86, %cst_57 {dimension_numbers = #tpu.dot_dimension_numbers<[1], [0], [0], [1], [0, 0, 1, 1], [], []>} : vector<256x64xbf16>, vector<64x128xbf16>, vector<256x128xf32> -> vector<256x128xf32>
      %88 = arith.truncf %87 : vector<256x128xf32> to vector<256x128xbf16>
      %c0_58 = arith.constant 0 : index
      %c0_59 = arith.constant 0 : index
      %c0_60 = arith.constant 0 : index
      %89 = vector.load %arg13[%c0_58, %c0_59, %c0_60] : memref<1x256x128xbf16, #tpu.memory_space<vmem>>, vector<1x256x128xbf16>
      %90 = vector.shape_cast %89 : vector<1x256x128xbf16> to vector<256x128xbf16>
      %91 = vector.shape_cast %88 : vector<256x128xbf16> to vector<1x256x128xbf16>
      tpu.vector_store %arg13[%c0_58, %c0_59, %c0_60], %91 {strides = array<i32>} : memref<1x256x128xbf16, #tpu.memory_space<vmem>>, vector<1x256x128xbf16>,
      %92 = vector.extract_strided_slice %88 {offsets = [0, 0], sizes = [256, 64], strides = [1, 1]} : vector<256x128xbf16> to vector<256x64xbf16>
      %c0_61 = arith.constant 0 : index
      %c0_62 = arith.constant 0 : index
      %c0_63 = arith.constant 0 : index
      %93 = vector.load %arg15[%c0_61, %c0_62, %c0_63] : memref<2x256x64xbf16, #tpu.memory_space<vmem>>, vector<1x256x64xbf16>
      %94 = vector.shape_cast %93 : vector<1x256x64xbf16> to vector<256x64xbf16>
      %95 = vector.shape_cast %92 : vector<256x64xbf16> to vector<1x256x64xbf16>
      tpu.vector_store %arg15[%c0_61, %c0_62, %c0_63], %95 {strides = array<i32>} : memref<2x256x64xbf16, #tpu.memory_space<vmem>>, vector<1x256x64xbf16>,
      %96 = vector.extract_strided_slice %88 {offsets = [0, 64], sizes = [256, 64], strides = [1, 1]} : vector<256x128xbf16> to vector<256x64xbf16>
      %c1_64 = arith.constant 1 : index
      %c0_65 = arith.constant 0 : index
      %c0_66 = arith.constant 0 : index
      %97 = vector.load %arg15[%c1_64, %c0_65, %c0_66] : memref<2x256x64xbf16, #tpu.memory_space<vmem>>, vector<1x256x64xbf16>
      %98 = vector.shape_cast %97 : vector<1x256x64xbf16> to vector<256x64xbf16>
      %99 = vector.shape_cast %96 : vector<256x64xbf16> to vector<1x256x64xbf16>
      tpu.vector_store %arg15[%c1_64, %c0_65, %c0_66], %99 {strides = array<i32>} : memref<2x256x64xbf16, #tpu.memory_space<vmem>>, vector<1x256x64xbf16>,
      %cst_67 = arith.constant 0.000000e+00 : f32
      %100 = vector.broadcast %cst_67 : f32 to vector<1x128xf32>
      %c0_68 = arith.constant 0 : index
      %c0_69 = arith.constant 0 : index
      %101 = vector.load %arg16[%c0_68, %c0_69] : memref<1x128xf32, #tpu.memory_space<vmem>>, vector<1x128xf32>
      tpu.vector_store %arg16[%c0_68, %c0_69], %100 {strides = array<i32>} : memref<1x128xf32, #tpu.memory_space<vmem>>, vector<1x128xf32>,
      %cst_70 = arith.constant 0.000000e+00 : f32
      %102 = vector.broadcast %cst_70 : f32 to vector<1x128xf32>
      %c0_71 = arith.constant 0 : index
      %c0_72 = arith.constant 0 : index
      %103 = vector.load %arg17[%c0_71, %c0_72] : memref<1x128xf32, #tpu.memory_space<vmem>>, vector<1x128xf32>
      tpu.vector_store %arg17[%c0_71, %c0_72], %102 {strides = array<i32>} : memref<1x128xf32, #tpu.memory_space<vmem>>, vector<1x128xf32>,
    } else {
    }
    %c128_i32 = arith.constant 128 : i32
    %3 = arith.muli %arg1, %c128_i32 : i32
    %4 = tpu.assume_multiple %3, 128 : i32
    %c0 = arith.constant 0 : index
    %c0_1 = arith.constant 0 : index
    %c0_2 = arith.constant 0 : index
    %5 = vector.load %arg2[%c0, %c0_1, %c0_2] : memref<1x128x64xbf16, #tpu.memory_space<vmem>>, vector<1x128x64xbf16>
    %6 = vector.shape_cast %5 : vector<1x128x64xbf16> to vector<128x64xbf16>
    %c0_3 = arith.constant 0 : index
    %c0_4 = arith.constant 0 : index
    %7 = vector.load %arg5[%c0_3, %c0_4] : memref<64x128xbf16, #tpu.memory_space<vmem>>, vector<64x128xbf16>
    %cst = arith.constant dense<0.000000e+00> : vector<128x128xf32>
    %8 = tpu.matmul %6, %7, %cst {dimension_numbers = #tpu.dot_dimension_numbers<[1], [0], [0], [1], [0, 0, 1, 1], [], []>} : vector<128x64xbf16>, vector<64x128xbf16>, vector<128x128xf32> -> vector<128x128xf32>
    %c0_5 = arith.constant 0 : index
    %9 = arith.index_cast %4 : i32 to index
    %c0_6 = arith.constant 0 : index
    %10 = vector.load %arg13[%c0_5, %9, %c0_6] : memref<1x256x128xbf16, #tpu.memory_space<vmem>>, vector<1x128x128xbf16>
    %11 = vector.shape_cast %10 : vector<1x128x128xbf16> to vector<128x128xbf16>
    %12 = arith.extf %11 : vector<128x128xbf16> to vector<128x128xf32>
    %13 = vector.extract_strided_slice %8 {offsets = [0, 0], sizes = [128, 64], strides = [1, 1]} : vector<128x128xf32> to vector<128x64xf32>
    %14 = arith.truncf %13 : vector<128x64xf32> to vector<128x64xbf16>
    %c0_7 = arith.constant 0 : index
    %c0_8 = arith.constant 0 : index
    %15 = vector.load %arg14[%c0_7, %c0_8] : memref<128x256xbf16, #tpu.memory_space<vmem>>, vector<64x256xbf16>
    %cst_9 = arith.constant dense<0.000000e+00> : vector<128x256xf32>
    %16 = tpu.matmul %14, %15, %cst_9 {dimension_numbers = #tpu.dot_dimension_numbers<[1], [0], [0], [1], [0, 0, 1, 1], [], []>} : vector<128x64xbf16>, vector<64x256xbf16>, vector<128x256xf32> -> vector<128x256xf32>
    %cst_10 = arith.constant dense<0xFF800000> : vector<128xf32>
    %17 = vector.multi_reduction <maximumf>, %16, %cst_10 [1] : vector<128x256xf32> to vector<128xf32>
    %18 = vector.shape_cast %17 : vector<128xf32> to vector<128x1xf32>
    %19 = vector.broadcast %18 : vector<128x1xf32> to vector<128x256xf32>
    %20 = arith.subf %16, %19 : vector<128x256xf32>
    %21 = math.exp %20 : vector<128x256xf32>
    %cst_11 = arith.constant dense<0.000000e+00> : vector<128xf32>
    %22 = vector.multi_reduction <add>, %21, %cst_11 [1] : vector<128x256xf32> to vector<128xf32>
    %23 = vector.shape_cast %22 : vector<128xf32> to vector<128x1xf32>
    %24 = tpu.reciprocal %23 {approx = true} : vector<128x1xf32> -> vector<128x1xf32>
    %25 = vector.broadcast %24 : vector<128x1xf32> to vector<128x256xf32>
    %26 = arith.mulf %21, %25 : vector<128x256xf32>
    %27 = arith.truncf %26 : vector<128x256xf32> to vector<128x256xbf16>
    %c0_12 = arith.constant 0 : index
    %c0_13 = arith.constant 0 : index
    %c0_14 = arith.constant 0 : index
    %28 = vector.load %arg15[%c0_12, %c0_13, %c0_14] : memref<2x256x64xbf16, #tpu.memory_space<vmem>>, vector<1x256x64xbf16>
    %29 = vector.shape_cast %28 : vector<1x256x64xbf16> to vector<256x64xbf16>
    %cst_15 = arith.constant dense<0.000000e+00> : vector<128x64xf32>
    %30 = tpu.matmul %27, %29, %cst_15 {dimension_numbers = #tpu.dot_dimension_numbers<[1], [0], [0], [1], [0, 0, 1, 1], [], []>} : vector<128x256xbf16>, vector<256x64xbf16>, vector<128x64xf32> -> vector<128x64xf32>
    %31 = arith.truncf %30 : vector<128x64xf32> to vector<128x64xbf16>
    %c0_16 = arith.constant 0 : index
    %c0_17 = arith.constant 0 : index
    %c0_18 = arith.constant 0 : index
    %32 = vector.load %arg8[%c0_16, %c0_17, %c0_18] : memref<2x64x128xbf16, #tpu.memory_space<vmem>>, vector<1x64x128xbf16>
    %33 = vector.shape_cast %32 : vector<1x64x128xbf16> to vector<64x128xbf16>
    %cst_19 = arith.constant dense<0.000000e+00> : vector<128x128xf32>
    %34 = tpu.matmul %31, %33, %cst_19 {dimension_numbers = #tpu.dot_dimension_numbers<[1], [0], [0], [1], [0, 0, 1, 1], [], []>} : vector<128x64xbf16>, vector<64x128xbf16>, vector<128x128xf32> -> vector<128x128xf32>
    %35 = arith.addf %12, %34 : vector<128x128xf32>
    %36 = vector.extract_strided_slice %8 {offsets = [0, 64], sizes = [128, 64], strides = [1, 1]} : vector<128x128xf32> to vector<128x64xf32>
    %37 = arith.truncf %36 : vector<128x64xf32> to vector<128x64xbf16>
    %c64 = arith.constant 64 : index
    %c0_20 = arith.constant 0 : index
    %38 = vector.load %arg14[%c64, %c0_20] : memref<128x256xbf16, #tpu.memory_space<vmem>>, vector<64x256xbf16>
    %cst_21 = arith.constant dense<0.000000e+00> : vector<128x256xf32>
    %39 = tpu.matmul %37, %38, %cst_21 {dimension_numbers = #tpu.dot_dimension_numbers<[1], [0], [0], [1], [0, 0, 1, 1], [], []>} : vector<128x64xbf16>, vector<64x256xbf16>, vector<128x256xf32> -> vector<128x256xf32>
    %cst_22 = arith.constant dense<0xFF800000> : vector<128xf32>
    %40 = vector.multi_reduction <maximumf>, %39, %cst_22 [1] : vector<128x256xf32> to vector<128xf32>
    %41 = vector.shape_cast %40 : vector<128xf32> to vector<128x1xf32>
    %42 = vector.broadcast %41 : vector<128x1xf32> to vector<128x256xf32>
    %43 = arith.subf %39, %42 : vector<128x256xf32>
    %44 = math.exp %43 : vector<128x256xf32>
    %cst_23 = arith.constant dense<0.000000e+00> : vector<128xf32>
    %45 = vector.multi_reduction <add>, %44, %cst_23 [1] : vector<128x256xf32> to vector<128xf32>
    %46 = vector.shape_cast %45 : vector<128xf32> to vector<128x1xf32>
    %47 = tpu.reciprocal %46 {approx = true} : vector<128x1xf32> -> vector<128x1xf32>
    %48 = vector.broadcast %47 : vector<128x1xf32> to vector<128x256xf32>
    %49 = arith.mulf %44, %48 : vector<128x256xf32>
    %50 = arith.truncf %49 : vector<128x256xf32> to vector<128x256xbf16>
    %c1 = arith.constant 1 : index
    %c0_24 = arith.constant 0 : index
    %c0_25 = arith.constant 0 : index
    %51 = vector.load %arg15[%c1, %c0_24, %c0_25] : memref<2x256x64xbf16, #tpu.memory_space<vmem>>, vector<1x256x64xbf16>
    %52 = vector.shape_cast %51 : vector<1x256x64xbf16> to vector<256x64xbf16>
    %cst_26 = arith.constant dense<0.000000e+00> : vector<128x64xf32>
    %53 = tpu.matmul %50, %52, %cst_26 {dimension_numbers = #tpu.dot_dimension_numbers<[1], [0], [0], [1], [0, 0, 1, 1], [], []>} : vector<128x256xbf16>, vector<256x64xbf16>, vector<128x64xf32> -> vector<128x64xf32>
    %54 = arith.truncf %53 : vector<128x64xf32> to vector<128x64xbf16>
    %c1_27 = arith.constant 1 : index
    %c0_28 = arith.constant 0 : index
    %c0_29 = arith.constant 0 : index
    %55 = vector.load %arg8[%c1_27, %c0_28, %c0_29] : memref<2x64x128xbf16, #tpu.memory_space<vmem>>, vector<1x64x128xbf16>
    %56 = vector.shape_cast %55 : vector<1x64x128xbf16> to vector<64x128xbf16>
    %cst_30 = arith.constant dense<0.000000e+00> : vector<128x128xf32>
    %57 = tpu.matmul %54, %56, %cst_30 {dimension_numbers = #tpu.dot_dimension_numbers<[1], [0], [0], [1], [0, 0, 1, 1], [], []>} : vector<128x64xbf16>, vector<64x128xbf16>, vector<128x128xf32> -> vector<128x128xf32>
    %58 = arith.addf %35, %57 : vector<128x128xf32>
    %59 = arith.truncf %58 : vector<128x128xf32> to vector<128x128xbf16>
    %c0_31 = arith.constant 0 : index
    %60 = arith.index_cast %4 : i32 to index
    %c0_32 = arith.constant 0 : index
    %61 = vector.load %arg13[%c0_31, %60, %c0_32] : memref<1x256x128xbf16, #tpu.memory_space<vmem>>, vector<1x128x128xbf16>
    %62 = vector.shape_cast %61 : vector<1x128x128xbf16> to vector<128x128xbf16>
    %63 = vector.shape_cast %59 : vector<128x128xbf16> to vector<1x128x128xbf16>
    tpu.vector_store %arg13[%c0_31, %60, %c0_32], %63 {strides = array<i32>} : memref<1x256x128xbf16, #tpu.memory_space<vmem>>, vector<1x128x128xbf16>,
    %c0_33 = arith.constant 0 : index
    %c0_34 = arith.constant 0 : index
    %64 = vector.load %arg16[%c0_33, %c0_34] : memref<1x128xf32, #tpu.memory_space<vmem>>, vector<1x128xf32>
    %cst_35 = arith.constant dense<0.000000e+00> : vector<128xf32>
    %65 = vector.multi_reduction <add>, %58, %cst_35 [0] : vector<128x128xf32> to vector<128xf32>
    %66 = vector.shape_cast %65 : vector<128xf32> to vector<1x128xf32>
    %67 = arith.addf %64, %66 : vector<1x128xf32>
    %c0_36 = arith.constant 0 : index
    %c0_37 = arith.constant 0 : index
    %68 = vector.load %arg16[%c0_36, %c0_37] : memref<1x128xf32, #tpu.memory_space<vmem>>, vector<1x128xf32>
    tpu.vector_store %arg16[%c0_36, %c0_37], %67 {strides = array<i32>} : memref<1x128xf32, #tpu.memory_space<vmem>>, vector<1x128xf32>,
    %c0_38 = arith.constant 0 : index
    %c0_39 = arith.constant 0 : index
    %69 = vector.load %arg17[%c0_38, %c0_39] : memref<1x128xf32, #tpu.memory_space<vmem>>, vector<1x128xf32>
    %70 = arith.mulf %58, %58 : vector<128x128xf32>
    %cst_40 = arith.constant dense<0.000000e+00> : vector<128xf32>
    %71 = vector.multi_reduction <add>, %70, %cst_40 [0] : vector<128x128xf32> to vector<128xf32>
    %72 = vector.shape_cast %71 : vector<128xf32> to vector<1x128xf32>
    %73 = arith.addf %69, %72 : vector<1x128xf32>
    %c0_41 = arith.constant 0 : index
    %c0_42 = arith.constant 0 : index
    %74 = vector.load %arg17[%c0_41, %c0_42] : memref<1x128xf32, #tpu.memory_space<vmem>>, vector<1x128xf32>
    tpu.vector_store %arg17[%c0_41, %c0_42], %73 {strides = array<i32>} : memref<1x128xf32, #tpu.memory_space<vmem>>, vector<1x128xf32>,
    %c1_i32 = arith.constant 1 : i32
    %75 = arith.cmpi eq, %arg1, %c1_i32 : i32
    %76 = arith.extui %75 : i1 to i32
    %c0_i32_43 = arith.constant 0 : i32
    %77 = arith.cmpi ne, %76, %c0_i32_43 : i32
    scf.if %77 {
      %c0_44 = arith.constant 0 : index
      %c0_45 = arith.constant 0 : index
      %78 = vector.load %arg16[%c0_44, %c0_45] : memref<1x128xf32, #tpu.memory_space<vmem>>, vector<1x128xf32>
      %c0_46 = arith.constant 0 : index
      %c0_47 = arith.constant 0 : index
      %79 = vector.load %arg11[%c0_46, %c0_47] : memref<128x32xf32, #tpu.memory_space<vmem>>, vector<128x32xf32>
      %cst_48 = arith.constant dense<0.000000e+00> : vector<1x32xf32>
      %80 = tpu.matmul %78, %79, %cst_48 {dimension_numbers = #tpu.dot_dimension_numbers<[1], [0], [0], [1], [0, 0, 1, 1], [], []>} : vector<1x128xf32>, vector<128x32xf32>, vector<1x32xf32> -> vector<1x32xf32>
      %c0_49 = arith.constant 0 : index
      %c0_50 = arith.constant 0 : index
      %81 = vector.load %arg12[%c0_49, %c0_50] : memref<32x128xf32, #tpu.memory_space<vmem>>, vector<32x128xf32>
      %cst_51 = arith.constant dense<0.000000e+00> : vector<1x128xf32>
      %82 = tpu.matmul %80, %81, %cst_51 {dimension_numbers = #tpu.dot_dimension_numbers<[1], [0], [0], [1], [0, 0, 1, 1], [], []>} : vector<1x32xf32>, vector<32x128xf32>, vector<1x128xf32> -> vector<1x128xf32>
      %c0_52 = arith.constant 0 : index
      %c0_53 = arith.constant 0 : index
      %83 = vector.load %arg17[%c0_52, %c0_53] : memref<1x128xf32, #tpu.memory_space<vmem>>, vector<1x128xf32>
      %c0_54 = arith.constant 0 : index
      %c0_55 = arith.constant 0 : index
      %84 = vector.load %arg11[%c0_54, %c0_55] : memref<128x32xf32, #tpu.memory_space<vmem>>, vector<128x32xf32>
      %cst_56 = arith.constant dense<0.000000e+00> : vector<1x32xf32>
      %85 = tpu.matmul %83, %84, %cst_56 {dimension_numbers = #tpu.dot_dimension_numbers<[1], [0], [0], [1], [0, 0, 1, 1], [], []>} : vector<1x128xf32>, vector<128x32xf32>, vector<1x32xf32> -> vector<1x32xf32>
      %c0_57 = arith.constant 0 : index
      %c0_58 = arith.constant 0 : index
      %86 = vector.load %arg12[%c0_57, %c0_58] : memref<32x128xf32, #tpu.memory_space<vmem>>, vector<32x128xf32>
      %cst_59 = arith.constant dense<0.000000e+00> : vector<1x128xf32>
      %87 = tpu.matmul %85, %86, %cst_59 {dimension_numbers = #tpu.dot_dimension_numbers<[1], [0], [0], [1], [0, 0, 1, 1], [], []>} : vector<1x32xf32>, vector<32x128xf32>, vector<1x128xf32> -> vector<1x128xf32>
      %88 = arith.mulf %82, %82 : vector<1x128xf32>
      %89 = arith.subf %87, %88 : vector<1x128xf32>
      %cst_60 = arith.constant 0.000000e+00 : f32
      %90 = vector.broadcast %cst_60 : f32 to vector<1x128xf32>
      %91 = arith.maximumf %89, %90 : vector<1x128xf32>
      %cst_61 = arith.constant 9.99999974E-6 : f32
      %92 = vector.broadcast %cst_61 : f32 to vector<1x128xf32>
      %93 = arith.addf %91, %92 : vector<1x128xf32>
      %94 = math.rsqrt %93 : vector<1x128xf32>
      %c0_62 = arith.constant 0 : index
      %c0_63 = arith.constant 0 : index
      %95 = vector.load %arg9[%c0_62, %c0_63] : memref<1x128xf32, #tpu.memory_space<vmem>>, vector<1x128xf32>
      %96 = arith.mulf %94, %95 : vector<1x128xf32>
      %c0_64 = arith.constant 0 : index
      %c0_65 = arith.constant 0 : index
      %97 = vector.load %arg10[%c0_64, %c0_65] : memref<1x128xf32, #tpu.memory_space<vmem>>, vector<1x128xf32>
      %98 = arith.mulf %82, %96 : vector<1x128xf32>
      %99 = arith.subf %97, %98 : vector<1x128xf32>
      %c0_i32_66 = arith.constant 0 : i32
      %c2_i32 = arith.constant 2 : i32
      %100 = arith.addi %c0_i32_66, %c2_i32 : i32
      %c1_i32_67 = arith.constant 1 : i32
      scf.for %arg18 = %c0_i32_66 to %100 step %c1_i32_67  : i32 {
        %c1_i32_69 = arith.constant 1 : i32
        %101 = arith.muli %arg18, %c1_i32_69 : i32
        %c0_i32_70 = arith.constant 0 : i32
        %102 = arith.addi %c0_i32_70, %101 : i32
        %c128_i32_71 = arith.constant 128 : i32
        %103 = arith.muli %102, %c128_i32_71 : i32
        %104 = tpu.assume_multiple %103, 128 : i32
        %c0_72 = arith.constant 0 : index
        %105 = arith.index_cast %104 : i32 to index
        %c0_73 = arith.constant 0 : index
        %106 = vector.load %arg13[%c0_72, %105, %c0_73] : memref<1x256x128xbf16, #tpu.memory_space<vmem>>, vector<1x128x128xbf16>
        %107 = vector.shape_cast %106 : vector<1x128x128xbf16> to vector<128x128xbf16>
        %108 = arith.extf %107 : vector<128x128xbf16> to vector<128x128xf32>
        %109 = vector.broadcast %96 : vector<1x128xf32> to vector<128x128xf32>
        %110 = arith.mulf %108, %109 : vector<128x128xf32>
        %111 = vector.broadcast %99 : vector<1x128xf32> to vector<128x128xf32>
        %112 = arith.addf %110, %111 : vector<128x128xf32>
        %113 = arith.truncf %112 : vector<128x128xf32> to vector<128x128xbf16>
        %c0_74 = arith.constant 0 : index
        %114 = arith.index_cast %104 : i32 to index
        %c0_75 = arith.constant 0 : index
        %115 = vector.load %arg13[%c0_74, %114, %c0_75] : memref<1x256x128xbf16, #tpu.memory_space<vmem>>, vector<1x128x128xbf16>
        %116 = vector.shape_cast %115 : vector<1x128x128xbf16> to vector<128x128xbf16>
        %117 = vector.shape_cast %113 : vector<128x128xbf16> to vector<1x128x128xbf16>
        tpu.vector_store %arg13[%c0_74, %114, %c0_75], %117 {strides = array<i32>} : memref<1x256x128xbf16, #tpu.memory_space<vmem>>, vector<1x128x128xbf16>,
      }
      %c2_i32_68 = arith.constant 2 : i32
    } else {
    }
    return
  }
  func.func @transform_0(%arg0: i32, %arg1: i32) -> (i32, i32, i32) {
    %c0_i32 = arith.constant 0 : i32
    %c0_i32_0 = arith.constant 0 : i32
    return %arg0, %arg1, %c0_i32 : i32, i32, i32
  }
  func.func @transform_1(%arg0: i32, %arg1: i32) -> (i32, i32, i32) {
    %c0_i32 = arith.constant 0 : i32
    %c0_i32_0 = arith.constant 0 : i32
    %c0_i32_1 = arith.constant 0 : i32
    return %arg0, %c0_i32, %c0_i32_0 : i32, i32, i32
  }
  func.func @transform_2(%arg0: i32, %arg1: i32) -> (i32, i32, i32) {
    %c0_i32 = arith.constant 0 : i32
    %c0_i32_0 = arith.constant 0 : i32
    %c0_i32_1 = arith.constant 0 : i32
    return %arg0, %c0_i32, %c0_i32_0 : i32, i32, i32
  }
  func.func @transform_3(%arg0: i32, %arg1: i32) -> (i32, i32) {
    %c0_i32 = arith.constant 0 : i32
    %c0_i32_0 = arith.constant 0 : i32
    %c0_i32_1 = arith.constant 0 : i32
    return %c0_i32, %c0_i32_0 : i32, i32
  }
  func.func @transform_4(%arg0: i32, %arg1: i32) -> (i32, i32) {
    %c0_i32 = arith.constant 0 : i32
    %c0_i32_0 = arith.constant 0 : i32
    %c0_i32_1 = arith.constant 0 : i32
    return %c0_i32, %c0_i32_0 : i32, i32
  }
  func.func @transform_5(%arg0: i32, %arg1: i32) -> (i32, i32) {
    %c0_i32 = arith.constant 0 : i32
    %c0_i32_0 = arith.constant 0 : i32
    %c0_i32_1 = arith.constant 0 : i32
    return %c0_i32, %c0_i32_0 : i32, i32
  }
  func.func @transform_6(%arg0: i32, %arg1: i32) -> (i32, i32, i32) {
    %c0_i32 = arith.constant 0 : i32
    %c0_i32_0 = arith.constant 0 : i32
    %c0_i32_1 = arith.constant 0 : i32
    %c0_i32_2 = arith.constant 0 : i32
    return %c0_i32, %c0_i32_0, %c0_i32_1 : i32, i32, i32
  }
  func.func @transform_7(%arg0: i32, %arg1: i32) -> (i32, i32) {
    %c0_i32 = arith.constant 0 : i32
    %c0_i32_0 = arith.constant 0 : i32
    %c0_i32_1 = arith.constant 0 : i32
    return %c0_i32, %c0_i32_0 : i32, i32
  }
  func.func @transform_8(%arg0: i32, %arg1: i32) -> (i32, i32) {
    %c0_i32 = arith.constant 0 : i32
    %c0_i32_0 = arith.constant 0 : i32
    %c0_i32_1 = arith.constant 0 : i32
    return %c0_i32, %c0_i32_0 : i32, i32
  }
  func.func @transform_9(%arg0: i32, %arg1: i32) -> (i32, i32) {
    %c0_i32 = arith.constant 0 : i32
    %c0_i32_0 = arith.constant 0 : i32
    %c0_i32_1 = arith.constant 0 : i32
    return %c0_i32, %c0_i32_0 : i32, i32
  }
  func.func @transform_10(%arg0: i32, %arg1: i32) -> (i32, i32) {
    %c0_i32 = arith.constant 0 : i32
    %c0_i32_0 = arith.constant 0 : i32
    %c0_i32_1 = arith.constant 0 : i32
    return %c0_i32, %c0_i32_0 : i32, i32
  }
  func.func @transform_11(%arg0: i32, %arg1: i32) -> (i32, i32, i32) {
    %c0_i32 = arith.constant 0 : i32
    %c0_i32_0 = arith.constant 0 : i32
    %c0_i32_1 = arith.constant 0 : i32
    return %arg0, %c0_i32, %c0_i32_0 : i32, i32, i32
  }
}

</mosaic_0001>

<llo_original>
// kernel: tpu_custom_call.1
$region0: #{tpu_custom_call.1}
  #allocation0 [shape = 'u32[]', space=smem, size = 0x4, offset = 0x4, fixed_abs, tag = 'smem constant byte address 0x4 - core index']
  #allocation1 [shape = 'u32[144,128]{1,0:T(1,128)}', space=vmem, size = 0x12000, scoped, tag = 'internal scratch']
  #allocation2 [shape = 'bf16[128,256]{1,0:T(8,128)(2,1)}', space=vmem, size = 0x10000, scoped, tag = 'scratch operand']
  #allocation3 [shape = 'bf16[2,256,64]{2,1,0:T(8,128)(2,1)}', space=vmem, size = 0x20000, scoped, tag = 'scratch operand']
  #allocation4 [shape = 'f32[1,128]{1,0:T(1,128)}', space=vmem, size = 0x200, scoped, tag = 'scratch operand']
  #allocation5 [shape = 'f32[1,128]{1,0:T(1,128)}', space=vmem, size = 0x200, scoped, tag = 'scratch operand']
  %s0 = inlined_call_operand.vmem [shape: bf16[2,256,64], index: 0, kind: input, shape index: {}]
  %s1 = inlined_call_operand.vmem [shape: bf16[2,256,64], index: 1, kind: input, shape index: {}]
  %s2 = inlined_call_operand.vmem [shape: bf16[2,256,64], index: 2, kind: input, shape index: {}]
  %s3 = inlined_call_operand.vmem [shape: bf16[64,128], index: 3, kind: input, shape index: {}]
  %s4 = inlined_call_operand.vmem [shape: bf16[128,64], index: 4, kind: input, shape index: {}]
  %s5 = inlined_call_operand.vmem [shape: bf16[64,128], index: 5, kind: input, shape index: {}]
  %s6 = inlined_call_operand.vmem [shape: bf16[2,64,128], index: 6, kind: input, shape index: {}]
  %s7 = inlined_call_operand.vmem [shape: f32[1,128], index: 7, kind: input, shape index: {}]
  %s8 = inlined_call_operand.vmem [shape: f32[1,128], index: 8, kind: input, shape index: {}]
  %s9 = inlined_call_operand.vmem [shape: f32[128,32], index: 9, kind: input, shape index: {}]
  %s10 = inlined_call_operand.vmem [shape: f32[32,128], index: 10, kind: input, shape index: {}]
  %s11 = inlined_call_operand.hbm [shape: bf16[2,256,128], index: 11, kind: output, shape index: {}]
  %s12 = sld [smem:[#allocation0]]
  $region92: #{tpu_custom_call.1} parent=0
    _
  %s14 = ssub.s32 1, %s12
  %s15 = scalar_select 0, %s14, %s12
  $region1: #{tpu_custom_call.1} parent=0
    #allocation6 [shape = 'u8[131072]{0}', space=vmem, size = 0x20000, scoped, tag = 'output window, operand 0']
    #allocation7 [shape = 's32[2]{0}', space=sflag, size = 0x8, scoped, tag = 'scoped memory for tpu_custom_call.1']
    %16 = vsyncpa [#allocation7], 0
    %s17 = scalar_lea.sflag [#allocation7], 1
    %18 = vsyncpa %s17, 0
    loop: start=0, step=1, limit=6
    $region2: #{tpu_custom_call.1} parent=1 // loop_pre_header
      _
    $region3: #{tpu_custom_call.1} parent=1 // loop_header
      %s20 = sphi 0, %s24
      %p21 = scmp.ge.s32.totalorder %s20, 6
      %s27 = sphi 0, %s39
      %s28 = sphi 0, %s35
      %s29 = sphi 0, %s27
      %s30 = sphi 0, %s28
      %s31 = sphi 0, %s29
      %s32 = sphi 0, %s30
      %s44 = sphi 0, %s46
      %s47 = sphi 0, %s44
      %s48 = sphi 0, %s47
      %s64 = sphi 0, %s48
      %s70 = sphi 0, %s72
      %s73 = sphi 0, %s70
      %s74 = sphi 0, %s73
      %s90 = sphi 0, %s74
      %s96 = sphi 0, %s98
      %s99 = sphi 0, %s96
      %s100 = sphi 0, %s99
      %s116 = sphi 0, %s100
      %s120 = sphi 0, %s120
      %s122 = sphi 0, %s120
      %s123 = sphi 0, %s122
      %s137 = sphi 0, %s123
      %s141 = sphi 0, %s141
      %s143 = sphi 0, %s141
      %s144 = sphi 0, %s143
      %s158 = sphi 0, %s144
      %s162 = sphi 0, %s162
      %s164 = sphi 0, %s162
      %s165 = sphi 0, %s164
      %s179 = sphi 0, %s165
      %s183 = sphi 0, %s183
      %s185 = sphi 0, %s183
      %s186 = sphi 0, %s185
      %s200 = sphi 0, %s186
      %s204 = sphi 0, %s204
      %s206 = sphi 0, %s204
      %s207 = sphi 0, %s206
      %s221 = sphi 0, %s207
      %s225 = sphi 0, %s225
      %s227 = sphi 0, %s225
      %s228 = sphi 0, %s227
      %s242 = sphi 0, %s228
      %s246 = sphi 0, %s246
      %s248 = sphi 0, %s246
      %s249 = sphi 0, %s248
      %s263 = sphi 0, %s249
      %s267 = sphi 0, %s267
      %s269 = sphi 0, %s267
      %s270 = sphi 0, %s269
      %s284 = sphi 0, %s270
      %s290 = sphi 0, %s292
      %s293 = sphi 0, %s290
      %s294 = sphi 0, %s293
      %s310 = sphi 0, %s294
    $region4: #{tpu_custom_call.1} parent=1 // loop_header_branch
      %23 = sbr.rel (%p21) target = $region8
    $region5: #{tpu_custom_call.1} parent=1 // loop_body
      %s25 = ssub.s32 %s20, 1
      %s26 = ssub.s32 %s20, 2
      %s33 = sadd.s32 1, %s28
      %p34 = scmp.ge.s32.totalorder %s33, 2
      %s35 = scalar_select %p34, 0, %s33
      %s36 = sadd.s32 1, %s27
      %s37 = scalar_select %p34, %s36, %s27
      %p38 = scmp.ge.s32.totalorder %s37, 2
      %s39 = scalar_select %p38, 0, %s37
      %s40 = ssub.s32 %s27, %s39
      %s41 = ssub.s32 %s28, %s35
      %s42 = sor.u32 %s40, %s41
      %p43 = scmp.eq.s32.totalorder %s42, 0
      %s45 = sadd.s32 %s44, 1
      %s46 = scalar_select %p43, %s44, %s45
      %p49 = pneg %p43
      %p50 = scmp.eq.s32.totalorder %s20, 3
      %p51 = por %p49, %p50
      %p52 = scmp.ne.s32.totalorder %s44, %s47
      %p53 = scmp.eq.s32.totalorder %s20, 0
      %p54 = por %p52, %p53
      %p55 = scmp.ne.s32.totalorder %s44, %s47
      %p56 = scmp.eq.s32.totalorder %s25, 3
      %p57 = por %p55, %p56
      %p58 = scmp.ne.s32.totalorder %s47, %s48
      %p59 = scmp.eq.s32.totalorder %s25, 0
      %p60 = por %p58, %p59
      %p61 = scmp.ne.s32.totalorder %s47, %s48
      %p62 = scmp.eq.s32.totalorder %s26, 3
      %p63 = por %p61, %p62
      %p65 = scmp.ne.s32.totalorder %s48, %s64
      %p66 = scmp.eq.s32.totalorder %s26, 0
      %p67 = por %p65, %p66
      %s68 = ssub.s32 %s27, %s39
      %p69 = scmp.eq.s32.totalorder %s68, 0
      %s71 = sadd.s32 %s70, 1
      %s72 = scalar_select %p69, %s70, %s71
      %p75 = pneg %p69
      %p76 = scmp.eq.s32.totalorder %s20, 3
      %p77 = por %p75, %p76
      %p78 = scmp.ne.s32.totalorder %s70, %s73
      %p79 = scmp.eq.s32.totalorder %s20, 0
      %p80 = por %p78, %p79
      %p81 = scmp.ne.s32.totalorder %s70, %s73
      %p82 = scmp.eq.s32.totalorder %s25, 3
      %p83 = por %p81, %p82
      %p84 = scmp.ne.s32.totalorder %s73, %s74
      %p85 = scmp.eq.s32.totalorder %s25, 0
      %p86 = por %p84, %p85
      %p87 = scmp.ne.s32.totalorder %s73, %s74
      %p88 = scmp.eq.s32.totalorder %s26, 3
      %p89 = por %p87, %p88
      %p91 = scmp.ne.s32.totalorder %s74, %s90
      %p92 = scmp.eq.s32.totalorder %s26, 0
      %p93 = por %p91, %p92
      %s94 = ssub.s32 %s27, %s39
      %p95 = scmp.eq.s32.totalorder %s94, 0
      %s97 = sadd.s32 %s96, 1
      %s98 = scalar_select %p95, %s96, %s97
      %p101 = pneg %p95
      %p102 = scmp.eq.s32.totalorder %s20, 3
      %p103 = por %p101, %p102
      %p104 = scmp.ne.s32.totalorder %s96, %s99
      %p105 = scmp.eq.s32.totalorder %s20, 0
      %p106 = por %p104, %p105
      %p107 = scmp.ne.s32.totalorder %s96, %s99
      %p108 = scmp.eq.s32.totalorder %s25, 3
      %p109 = por %p107, %p108
      %p110 = scmp.ne.s32.totalorder %s99, %s100
      %p111 = scmp.eq.s32.totalorder %s25, 0
      %p112 = por %p110, %p111
      %p113 = scmp.ne.s32.totalorder %s99, %s100
      %p114 = scmp.eq.s32.totalorder %s26, 3
      %p115 = por %p113, %p114
      %p117 = scmp.ne.s32.totalorder %s100, %s116
      %p118 = scmp.eq.s32.totalorder %s26, 0
      %p119 = por %p117, %p118
      %s121 = sadd.s32 %s120, 1
      %p124 = scmp.eq.s32.totalorder %s20, 3
      %p125 = scmp.ne.s32.totalorder %s120, %s122
      %p126 = scmp.eq.s32.totalorder %s20, 0
      %p127 = por %p125, %p126
      %p128 = scmp.ne.s32.totalorder %s120, %s122
      %p129 = scmp.eq.s32.totalorder %s25, 3
      %p130 = por %p128, %p129
      %p131 = scmp.ne.s32.totalorder %s122, %s123
      %p132 = scmp.eq.s32.totalorder %s25, 0
      %p133 = por %p131, %p132
      %p134 = scmp.ne.s32.totalorder %s122, %s123
      %p135 = scmp.eq.s32.totalorder %s26, 3
      %p136 = por %p134, %p135
      %p138 = scmp.ne.s32.totalorder %s123, %s137
      %p139 = scmp.eq.s32.totalorder %s26, 0
      %p140 = por %p138, %p139
      %s142 = sadd.s32 %s141, 1
      %p145 = scmp.eq.s32.totalorder %s20, 3
      %p146 = scmp.ne.s32.totalorder %s141, %s143
      %p147 = scmp.eq.s32.totalorder %s20, 0
      %p148 = por %p146, %p147
      %p149 = scmp.ne.s32.totalorder %s141, %s143
      %p150 = scmp.eq.s32.totalorder %s25, 3
      %p151 = por %p149, %p150
      %p152 = scmp.ne.s32.totalorder %s143, %s144
      %p153 = scmp.eq.s32.totalorder %s25, 0
      %p154 = por %p152, %p153
      %p155 = scmp.ne.s32.totalorder %s143, %s144
      %p156 = scmp.eq.s32.totalorder %s26, 3
      %p157 = por %p155, %p156
      %p159 = scmp.ne.s32.totalorder %s144, %s158
      %p160 = scmp.eq.s32.totalorder %s26, 0
      %p161 = por %p159, %p160
      %s163 = sadd.s32 %s162, 1
      %p166 = scmp.eq.s32.totalorder %s20, 3
      %p167 = scmp.ne.s32.totalorder %s162, %s164
      %p168 = scmp.eq.s32.totalorder %s20, 0
      %p169 = por %p167, %p168
      %p170 = scmp.ne.s32.totalorder %s162, %s164
      %p171 = scmp.eq.s32.totalorder %s25, 3
      %p172 = por %p170, %p171
      %p173 = scmp.ne.s32.totalorder %s164, %s165
      %p174 = scmp.eq.s32.totalorder %s25, 0
      %p175 = por %p173, %p174
      %p176 = scmp.ne.s32.totalorder %s164, %s165
      %p177 = scmp.eq.s32.totalorder %s26, 3
      %p178 = por %p176, %p177
      %p180 = scmp.ne.s32.totalorder %s165, %s179
      %p181 = scmp.eq.s32.totalorder %s26, 0
      %p182 = por %p180, %p181
      %s184 = sadd.s32 %s183, 1
      %p187 = scmp.eq.s32.totalorder %s20, 3
      %p188 = scmp.ne.s32.totalorder %s183, %s185
      %p189 = scmp.eq.s32.totalorder %s20, 0
      %p190 = por %p188, %p189
      %p191 = scmp.ne.s32.totalorder %s183, %s185
      %p192 = scmp.eq.s32.totalorder %s25, 3
      %p193 = por %p191, %p192
      %p194 = scmp.ne.s32.totalorder %s185, %s186
      %p195 = scmp.eq.s32.totalorder %s25, 0
      %p196 = por %p194, %p195
      %p197 = scmp.ne.s32.totalorder %s185, %s186
      %p198 = scmp.eq.s32.totalorder %s26, 3
      %p199 = por %p197, %p198
      %p201 = scmp.ne.s32.totalorder %s186, %s200
      %p202 = scmp.eq.s32.totalorder %s26, 0
      %p203 = por %p201, %p202
      %s205 = sadd.s32 %s204, 1
      %p208 = scmp.eq.s32.totalorder %s20, 3
      %p209 = scmp.ne.s32.totalorder %s204, %s206
      %p210 = scmp.eq.s32.totalorder %s20, 0
      %p211 = por %p209, %p210
      %p212 = scmp.ne.s32.totalorder %s204, %s206
      %p213 = scmp.eq.s32.totalorder %s25, 3
      %p214 = por %p212, %p213
      %p215 = scmp.ne.s32.totalorder %s206, %s207
      %p216 = scmp.eq.s32.totalorder %s25, 0
      %p217 = por %p215, %p216
      %p218 = scmp.ne.s32.totalorder %s206, %s207
      %p219 = scmp.eq.s32.totalorder %s26, 3
      %p220 = por %p218, %p219
      %p222 = scmp.ne.s32.totalorder %s207, %s221
      %p223 = scmp.eq.s32.totalorder %s26, 0
      %p224 = por %p222, %p223
      %s226 = sadd.s32 %s225, 1
      %p229 = scmp.eq.s32.totalorder %s20, 3
      %p230 = scmp.ne.s32.totalorder %s225, %s227
      %p231 = scmp.eq.s32.totalorder %s20, 0
      %p232 = por %p230, %p231
      %p233 = scmp.ne.s32.totalorder %s225, %s227
      %p234 = scmp.eq.s32.totalorder %s25, 3
      %p235 = por %p233, %p234
      %p236 = scmp.ne.s32.totalorder %s227, %s228
      %p237 = scmp.eq.s32.totalorder %s25, 0
      %p238 = por %p236, %p237
      %p239 = scmp.ne.s32.totalorder %s227, %s228
      %p240 = scmp.eq.s32.totalorder %s26, 3
      %p241 = por %p239, %p240
      %p243 = scmp.ne.s32.totalorder %s228, %s242
      %p244 = scmp.eq.s32.totalorder %s26, 0
      %p245 = por %p243, %p244
      %s247 = sadd.s32 %s246, 1
      %p250 = scmp.eq.s32.totalorder %s20, 3
      %p251 = scmp.ne.s32.totalorder %s246, %s248
      %p252 = scmp.eq.s32.totalorder %s20, 0
      %p253 = por %p251, %p252
      %p254 = scmp.ne.s32.totalorder %s246, %s248
      %p255 = scmp.eq.s32.totalorder %s25, 3
      %p256 = por %p254, %p255
      %p257 = scmp.ne.s32.totalorder %s248, %s249
      %p258 = scmp.eq.s32.totalorder %s25, 0
      %p259 = por %p257, %p258
      %p260 = scmp.ne.s32.totalorder %s248, %s249
      %p261 = scmp.eq.s32.totalorder %s26, 3
      %p262 = por %p260, %p261
      %p264 = scmp.ne.s32.totalorder %s249, %s263
      %p265 = scmp.eq.s32.totalorder %s26, 0
      %p266 = por %p264, %p265
      %s268 = sadd.s32 %s267, 1
      %p271 = scmp.eq.s32.totalorder %s20, 3
      %p272 = scmp.ne.s32.totalorder %s267, %s269
      %p273 = scmp.eq.s32.totalorder %s20, 0
      %p274 = por %p272, %p273
      %p275 = scmp.ne.s32.totalorder %s267, %s269
      %p276 = scmp.eq.s32.totalorder %s25, 3
      %p277 = por %p275, %p276
      %p278 = scmp.ne.s32.totalorder %s269, %s270
      %p279 = scmp.eq.s32.totalorder %s25, 0
      %p280 = por %p278, %p279
      %p281 = scmp.ne.s32.totalorder %s269, %s270
      %p282 = scmp.eq.s32.totalorder %s26, 3
      %p283 = por %p281, %p282
      %p285 = scmp.ne.s32.totalorder %s270, %s284
      %p286 = scmp.eq.s32.totalorder %s26, 0
      %p287 = por %p285, %p286
      %s288 = ssub.s32 %s27, %s39
      %p289 = scmp.eq.s32.totalorder %s288, 0
      %s291 = sadd.s32 %s290, 1
      %s292 = scalar_select %p289, %s290, %s291
      %p295 = pneg %p289
      %p296 = scmp.eq.s32.totalorder %s20, 3
      %p297 = por %p295, %p296
      %p298 = scmp.ne.s32.totalorder %s290, %s293
      %p299 = scmp.eq.s32.totalorder %s20, 0
      %p300 = por %p298, %p299
      %p301 = scmp.ne.s32.totalorder %s290, %s293
      %p302 = scmp.eq.s32.totalorder %s25, 3
      %p303 = por %p301, %p302
      %p304 = scmp.ne.s32.totalorder %s293, %s294
      %p305 = scmp.eq.s32.totalorder %s25, 0
      %p306 = por %p304, %p305
      %p307 = scmp.ne.s32.totalorder %s293, %s294
      %p308 = scmp.eq.s32.totalorder %s26, 3
      %p309 = por %p307, %p308
      %p311 = scmp.ne.s32.totalorder %s294, %s310
      %p312 = scmp.eq.s32.totalorder %s26, 0
      %p313 = por %p311, %p312
      %p314 = scmp.le.s32.totalorder 1, %s20
      %p315 = scmp.lt.s32.totalorder %s20, 5
      %p316 = pnand %p314, %p315
      %p317 = pneg %p316
      // Predicated region
      $region9: #{tpu_custom_call.1} parent=5 // pred_check
        _
      $region10: #{tpu_custom_call.1} parent=5 // pred_check_branch
        %319 = sbr.rel (%p316) target = $region12
      $region11: #{tpu_custom_call.1} parent=5 // pred_region
        %s320 = ssub.s32 %s20, 1
        // Predicated region
        $region13: #{tpu_custom_call.1} parent=11 // pred_check
          %p321 = pneg %p133
        $region14: #{tpu_custom_call.1} parent=11 // pred_check_branch
          %323 = sbr.rel (%p321) target = $region16
        $region15: #{tpu_custom_call.1} parent=11 // pred_region
          _
        $region16: #{tpu_custom_call.1} parent=11 // pred_fallthru
          _
        // Predicated region
        $region17: #{tpu_custom_call.1} parent=11 // pred_check
          %p324 = pneg %p154
        $region18: #{tpu_custom_call.1} parent=11 // pred_check_branch
          %326 = sbr.rel (%p324) target = $region20
        $region19: #{tpu_custom_call.1} parent=11 // pred_region
          _
        $region20: #{tpu_custom_call.1} parent=11 // pred_fallthru
          _
        // Predicated region
        $region21: #{tpu_custom_call.1} parent=11 // pred_check
          %p327 = pneg %p175
        $region22: #{tpu_custom_call.1} parent=11 // pred_check_branch
          %329 = sbr.rel (%p327) target = $region24
        $region23: #{tpu_custom_call.1} parent=11 // pred_region
          _
        $region24: #{tpu_custom_call.1} parent=11 // pred_fallthru
          _
        // Predicated region
        $region25: #{tpu_custom_call.1} parent=11 // pred_check
          %p330 = pneg %p196
        $region26: #{tpu_custom_call.1} parent=11 // pred_check_branch
          %332 = sbr.rel (%p330) target = $region28
        $region27: #{tpu_custom_call.1} parent=11 // pred_region
          _
        $region28: #{tpu_custom_call.1} parent=11 // pred_fallthru
          _
        // Predicated region
        $region29: #{tpu_custom_call.1} parent=11 // pred_check
          %p333 = pneg %p217
        $region30: #{tpu_custom_call.1} parent=11 // pred_check_branch
          %335 = sbr.rel (%p333) target = $region32
        $region31: #{tpu_custom_call.1} parent=11 // pred_region
          _
        $region32: #{tpu_custom_call.1} parent=11 // pred_fallthru
          _
        // Predicated region
        $region33: #{tpu_custom_call.1} parent=11 // pred_check
          %p336 = pneg %p238
        $region34: #{tpu_custom_call.1} parent=11 // pred_check_branch
          %338 = sbr.rel (%p336) target = $region36
        $region35: #{tpu_custom_call.1} parent=11 // pred_region
          _
        $region36: #{tpu_custom_call.1} parent=11 // pred_fallthru
          _
        // Predicated region
        $region37: #{tpu_custom_call.1} parent=11 // pred_check
          %p339 = pneg %p259
        $region38: #{tpu_custom_call.1} parent=11 // pred_check_branch
          %341 = sbr.rel (%p339) target = $region40
        $region39: #{tpu_custom_call.1} parent=11 // pred_region
          _
        $region40: #{tpu_custom_call.1} parent=11 // pred_fallthru
          _
        // Predicated region
        $region41: #{tpu_custom_call.1} parent=11 // pred_check
          %p342 = pneg %p280
        $region42: #{tpu_custom_call.1} parent=11 // pred_check_branch
          %344 = sbr.rel (%p342) target = $region44
        $region43: #{tpu_custom_call.1} parent=11 // pred_region
          _
        $region44: #{tpu_custom_call.1} parent=11 // pred_fallthru
          _
      $region12: #{tpu_custom_call.1} parent=5 // pred_fallthru
        _
      %p345 = scmp.lt.s32.totalorder %s20, 4
      // Predicated region
      $region45: #{tpu_custom_call.1} parent=5 // pred_check
        %p346 = pneg %p345
      $region46: #{tpu_custom_call.1} parent=5 // pred_check_branch
        %348 = sbr.rel (%p346) target = $region48
      $region47: #{tpu_custom_call.1} parent=5 // pred_region
        // Predicated region
        $region49: #{tpu_custom_call.1} parent=47 // pred_check
          %p349 = pneg %p54
        $region50: #{tpu_custom_call.1} parent=47 // pred_check_branch
          %351 = sbr.rel (%p349) target = $region52
        $region51: #{tpu_custom_call.1} parent=47 // pred_region
          %s352 = smul.u32 16, %s28
          %p353 = scmp.lt.s32.totalorder %s27, 1
          %s354 = scalar_select %p353, %s27, 1
          %p355 = scmp.lt.s32.totalorder %s352, 31
          %s356 = scalar_select %p355, %s352, 31
          %s357 = smul.addr %s354, 32
          %s358 = sadd.s32 %s356, %s357
          %s359 = smul.addr %s358, 4
          %s360 = scalar_lea.vmem %s0, %s359
          %s361 = smul.u32 16, %s28
        $region52: #{tpu_custom_call.1} parent=47 // pred_fallthru
          _
        // Predicated region
        $region53: #{tpu_custom_call.1} parent=47 // pred_check
          %p362 = pneg %p80
        $region54: #{tpu_custom_call.1} parent=47 // pred_check_branch
          %364 = sbr.rel (%p362) target = $region56
        $region55: #{tpu_custom_call.1} parent=47 // pred_region
          %p365 = scmp.lt.s32.totalorder %s27, 1
          %s366 = scalar_select %p365, %s27, 1
          %s367 = smul.addr %s366, 32
          %s368 = smul.addr %s367, 4
          %s369 = scalar_lea.vmem %s1, %s368
        $region56: #{tpu_custom_call.1} parent=47 // pred_fallthru
          _
        // Predicated region
        $region57: #{tpu_custom_call.1} parent=47 // pred_check
          %p370 = pneg %p106
        $region58: #{tpu_custom_call.1} parent=47 // pred_check_branch
          %372 = sbr.rel (%p370) target = $region60
        $region59: #{tpu_custom_call.1} parent=47 // pred_region
          %p373 = scmp.lt.s32.totalorder %s27, 1
          %s374 = scalar_select %p373, %s27, 1
          %s375 = smul.addr %s374, 32
          %s376 = smul.addr %s375, 4
          %s377 = scalar_lea.vmem %s2, %s376
        $region60: #{tpu_custom_call.1} parent=47 // pred_fallthru
          _
      $region48: #{tpu_custom_call.1} parent=5 // pred_fallthru
        _
      %p378 = scmp.le.s32.totalorder 1, %s20
      %p379 = scmp.lt.s32.totalorder %s20, 5
      %p380 = pnand %p378, %p379
      %p381 = pneg %p380
      // Predicated region
      $region61: #{tpu_custom_call.1} parent=5 // pred_check
        _
      $region62: #{tpu_custom_call.1} parent=5 // pred_check_branch
        %383 = sbr.rel (%p380) target = $region64
      $region63: #{tpu_custom_call.1} parent=5 // pred_region
        %s384 = ssub.s32 %s20, 1
        %s385 = smul.u32 16, %s30
        %p386 = scmp.lt.s32.totalorder %s29, 1
        %s387 = scalar_select %p386, %s29, 1
        %p388 = scmp.lt.s32.totalorder %s385, 31
        %s389 = scalar_select %p388, %s385, 31
        %s390 = smul.addr %s387, 32
        %s391 = sadd.s32 %s389, %s390
        %s392 = smul.addr %s391, 4
        %s393 = scalar_lea.vmem %s0, %s392
        %p394 = pneg %p60
        %p395 = pneg %p57
        %p396 = scmp.lt.s32.totalorder %s29, 1
        %s397 = scalar_select %p396, %s29, 1
        %s398 = smul.addr %s397, 32
        %s399 = smul.addr %s398, 4
        %s400 = scalar_lea.vmem %s1, %s399
        %p401 = pneg %p86
        %p402 = pneg %p83
        %p403 = scmp.lt.s32.totalorder %s29, 1
        %s404 = scalar_select %p403, %s29, 1
        %s405 = smul.addr %s404, 32
        %s406 = smul.addr %s405, 4
        %s407 = scalar_lea.vmem %s2, %s406
        %p408 = pneg %p112
        %p409 = pneg %p109
        %p410 = pneg %p133
        %p411 = pneg %p130
        %p412 = pneg %p154
        %p413 = pneg %p151
        %p414 = pneg %p175
        %p415 = pneg %p172
        %p416 = pneg %p196
        %p417 = pneg %p193
        %p418 = pneg %p217
        %p419 = pneg %p214
        %p420 = pneg %p238
        %p421 = pneg %p235
        %p422 = pneg %p259
        %p423 = pneg %p256
        %p424 = pneg %p280
        %p425 = pneg %p277
        %p426 = pneg %p306
        %p427 = pneg %p303
        %s428 = sand.u32 %s293, 1
        %s429 = scalar_lea.sflag [#allocation7], %s428
        %s430 = sand.u32 %s293, 1
        %s431 = smul.addr %s430, 128
        %s432 = scalar_lea.vmem [#allocation6], %s431
        %s433 = smul.u32 16, %s30
        %p434 = scmp.lt.s32.totalorder %s29, 1
        %s435 = scalar_select %p434, %s29, 1
        %p436 = scmp.lt.s32.totalorder %s433, 31
        %s437 = scalar_select %p436, %s433, 31
        %s438 = smul.addr %s435, 32
        %s439 = sadd.s32 %s437, %s438
        %s440 = smul.addr %s439, 4
        %s441 = scalar_lea.vmem %s0, %s440
        %s442 = smul.u32 16, %s30
        %p443 = scmp.lt.s32.totalorder %s29, 1
        %s444 = scalar_select %p443, %s29, 1
        %s445 = smul.addr %s444, 32
        %s446 = smul.addr %s445, 4
        %s447 = scalar_lea.vmem %s1, %s446
        %p448 = scmp.lt.s32.totalorder %s29, 1
        %s449 = scalar_select %p448, %s29, 1
        %s450 = smul.addr %s449, 32
        %s451 = smul.addr %s450, 4
        %s452 = scalar_lea.vmem %s2, %s451
        %p454 = scmp.eq.s32.totalorder %s30, 0
        // Predicated region
        $region65: #{tpu_custom_call.1} parent=63 // pred_check
          %p455 = pneg %p454
        $region66: #{tpu_custom_call.1} parent=63 // pred_check_branch
          %457 = sbr.rel (%p455) target = $region68
        $region67: #{tpu_custom_call.1} parent=63 // pred_region
          %v458 = vld [vmem:[%s447] sm:$0xf]
          %v459 = vld [vmem:[%s447 + $0x4] sm:$0xf]
          %v460 = vld [vmem:[%s447 + $0x8] sm:$0xf]
          %v461 = vld [vmem:[%s447 + $0xc] sm:$0xf]
          %v462 = vld [vmem:[%s447 + $0x10] sm:$0xf]
          %v463 = vld [vmem:[%s447 + $0x14] sm:$0xf]
          %v464 = vld [vmem:[%s447 + $0x18] sm:$0xf]
          %v465 = vld [vmem:[%s447 + $0x1c] sm:$0xf]
          %v466 = vld [vmem:[%s447 + $0x20] sm:$0xf]
          %v467 = vld [vmem:[%s447 + $0x24] sm:$0xf]
          %v468 = vld [vmem:[%s447 + $0x28] sm:$0xf]
          %v469 = vld [vmem:[%s447 + $0x2c] sm:$0xf]
          %v470 = vld [vmem:[%s447 + $0x30] sm:$0xf]
          %v471 = vld [vmem:[%s447 + $0x34] sm:$0xf]
          %v472 = vld [vmem:[%s447 + $0x38] sm:$0xf]
          %v473 = vld [vmem:[%s447 + $0x3c] sm:$0xf]
          %v474 = vld [vmem:[%s447 + $0x40] sm:$0xf]
          %v475 = vld [vmem:[%s447 + $0x44] sm:$0xf]
          %v476 = vld [vmem:[%s447 + $0x48] sm:$0xf]
          %v477 = vld [vmem:[%s447 + $0x4c] sm:$0xf]
          %v478 = vld [vmem:[%s447 + $0x50] sm:$0xf]
          %v479 = vld [vmem:[%s447 + $0x54] sm:$0xf]
          %v480 = vld [vmem:[%s447 + $0x58] sm:$0xf]
          %v481 = vld [vmem:[%s447 + $0x5c] sm:$0xf]
          %v482 = vld [vmem:[%s447 + $0x60] sm:$0xf]
          %v483 = vld [vmem:[%s447 + $0x64] sm:$0xf]
          %v484 = vld [vmem:[%s447 + $0x68] sm:$0xf]
          %v485 = vld [vmem:[%s447 + $0x6c] sm:$0xf]
          %v486 = vld [vmem:[%s447 + $0x70] sm:$0xf]
          %v487 = vld [vmem:[%s447 + $0x74] sm:$0xf]
          %v488 = vld [vmem:[%s447 + $0x78] sm:$0xf]
          %v489 = vld [vmem:[%s447 + $0x7c] sm:$0xf]
          %v490 = vld [vmem:[%s452] sm:$0xf]
          %v491 = vld [vmem:[%s452 + $0x4] sm:$0xf]
          %v492 = vld [vmem:[%s452 + $0x8] sm:$0xf]
          %v493 = vld [vmem:[%s452 + $0xc] sm:$0xf]
          %v494 = vld [vmem:[%s452 + $0x10] sm:$0xf]
          %v495 = vld [vmem:[%s452 + $0x14] sm:$0xf]
          %v496 = vld [vmem:[%s452 + $0x18] sm:$0xf]
          %v497 = vld [vmem:[%s452 + $0x1c] sm:$0xf]
          %v498 = vld [vmem:[%s452 + $0x20] sm:$0xf]
          %v499 = vld [vmem:[%s452 + $0x24] sm:$0xf]
          %v500 = vld [vmem:[%s452 + $0x28] sm:$0xf]
          %v501 = vld [vmem:[%s452 + $0x2c] sm:$0xf]
          %v502 = vld [vmem:[%s452 + $0x30] sm:$0xf]
          %v503 = vld [vmem:[%s452 + $0x34] sm:$0xf]
          %v504 = vld [vmem:[%s452 + $0x38] sm:$0xf]
          %v505 = vld [vmem:[%s452 + $0x3c] sm:$0xf]
          %v506 = vld [vmem:[%s452 + $0x40] sm:$0xf]
          %v507 = vld [vmem:[%s452 + $0x44] sm:$0xf]
          %v508 = vld [vmem:[%s452 + $0x48] sm:$0xf]
          %v509 = vld [vmem:[%s452 + $0x4c] sm:$0xf]
          %v510 = vld [vmem:[%s452 + $0x50] sm:$0xf]
          %v511 = vld [vmem:[%s452 + $0x54] sm:$0xf]
          %v512 = vld [vmem:[%s452 + $0x58] sm:$0xf]
          %v513 = vld [vmem:[%s452 + $0x5c] sm:$0xf]
          %v514 = vld [vmem:[%s452 + $0x60] sm:$0xf]
          %v515 = vld [vmem:[%s452 + $0x64] sm:$0xf]
          %v516 = vld [vmem:[%s452 + $0x68] sm:$0xf]
          %v517 = vld [vmem:[%s452 + $0x6c] sm:$0xf]
          %v518 = vld [vmem:[%s452 + $0x70] sm:$0xf]
          %v519 = vld [vmem:[%s452 + $0x74] sm:$0xf]
          %v520 = vld [vmem:[%s452 + $0x78] sm:$0xf]
          %v521 = vld [vmem:[%s452 + $0x7c] sm:$0xf]
          %v522 = vld [vmem:[%s4] sm:$0xf]
          %v523 = vld [vmem:[%s4 + $0x4] sm:$0xf]
          %v524 = vld [vmem:[%s4 + $0x8] sm:$0xf]
          %v525 = vld [vmem:[%s4 + $0xc] sm:$0xf]
          %v526 = vld [vmem:[%s4 + $0x10] sm:$0xf]
          %v527 = vld [vmem:[%s4 + $0x14] sm:$0xf]
          %v528 = vld [vmem:[%s4 + $0x18] sm:$0xf]
          %v529 = vld [vmem:[%s4 + $0x1c] sm:$0xf]
          %v530 = vld [vmem:[%s4 + $0x20] sm:$0xf]
          %v531 = vld [vmem:[%s4 + $0x24] sm:$0xf]
          %v532 = vld [vmem:[%s4 + $0x28] sm:$0xf]
          %v533 = vld [vmem:[%s4 + $0x2c] sm:$0xf]
          %v534 = vld [vmem:[%s4 + $0x30] sm:$0xf]
          %v535 = vld [vmem:[%s4 + $0x34] sm:$0xf]
          %v536 = vld [vmem:[%s4 + $0x38] sm:$0xf]
          %v537 = vld [vmem:[%s4 + $0x3c] sm:$0xf]
          %v554 = vunpack.c.l.b16 %v522
          %v555 = vunpack.c.l.b16 %v523
          %v556 = vunpack.c.l.b16 %v524
          %v557 = vunpack.c.l.b16 %v525
          %v558 = vunpack.c.l.b16 %v526
          %v559 = vunpack.c.l.b16 %v527
          %v560 = vunpack.c.l.b16 %v528
          %v561 = vunpack.c.l.b16 %v529
          %v562 = vunpack.c.l.b16 %v530
          %v563 = vunpack.c.l.b16 %v531
          %v564 = vunpack.c.l.b16 %v532
          %v565 = vunpack.c.l.b16 %v533
          %v566 = vunpack.c.l.b16 %v534
          %v567 = vunpack.c.l.b16 %v535
          %v568 = vunpack.c.l.b16 %v536
          %v569 = vunpack.c.l.b16 %v537
          %v570 = vpack.c.b16 %v555, %v554
          %v571 = vpack.c.b16 %v557, %v556
          %v572 = vpack.c.b16 %v559, %v558
          %v573 = vpack.c.b16 %v561, %v560
          %v574 = vpack.c.b16 %v563, %v562
          %v575 = vpack.c.b16 %v565, %v564
          %v576 = vpack.c.b16 %v567, %v566
          %v577 = vpack.c.b16 %v569, %v568
          %v610 = vunpack.c.l.b16 %v458
          %v611 = vunpack.c.l.b16 %v459
          %v612 = vunpack.c.l.b16 %v460
          %v613 = vunpack.c.l.b16 %v461
          %v614 = vunpack.c.l.b16 %v462
          %v615 = vunpack.c.l.b16 %v463
          %v616 = vunpack.c.l.b16 %v464
          %v617 = vunpack.c.l.b16 %v465
          %v618 = vunpack.c.l.b16 %v466
          %v619 = vunpack.c.l.b16 %v467
          %v620 = vunpack.c.l.b16 %v468
          %v621 = vunpack.c.l.b16 %v469
          %v622 = vunpack.c.l.b16 %v470
          %v623 = vunpack.c.l.b16 %v471
          %v624 = vunpack.c.l.b16 %v472
          %v625 = vunpack.c.l.b16 %v473
          %v626 = vunpack.c.l.b16 %v474
          %v627 = vunpack.c.l.b16 %v475
          %v628 = vunpack.c.l.b16 %v476
          %v629 = vunpack.c.l.b16 %v477
          %v630 = vunpack.c.l.b16 %v478
          %v631 = vunpack.c.l.b16 %v479
          %v632 = vunpack.c.l.b16 %v480
          %v633 = vunpack.c.l.b16 %v481
          %v634 = vunpack.c.l.b16 %v482
          %v635 = vunpack.c.l.b16 %v483
          %v636 = vunpack.c.l.b16 %v484
          %v637 = vunpack.c.l.b16 %v485
          %v638 = vunpack.c.l.b16 %v486
          %v639 = vunpack.c.l.b16 %v487
          %v640 = vunpack.c.l.b16 %v488
          %v641 = vunpack.c.l.b16 %v489
          %v642 = vpack.c.b16 %v611, %v610
          %v643 = vpack.c.b16 %v613, %v612
          %v644 = vpack.c.b16 %v615, %v614
          %v645 = vpack.c.b16 %v617, %v616
          %v646 = vpack.c.b16 %v619, %v618
          %v647 = vpack.c.b16 %v621, %v620
          %v648 = vpack.c.b16 %v623, %v622
          %v649 = vpack.c.b16 %v625, %v624
          %v650 = vpack.c.b16 %v627, %v626
          %v651 = vpack.c.b16 %v629, %v628
          %v652 = vpack.c.b16 %v631, %v630
          %v653 = vpack.c.b16 %v633, %v632
          %v654 = vpack.c.b16 %v635, %v634
          %v655 = vpack.c.b16 %v637, %v636
          %v656 = vpack.c.b16 %v639, %v638
          %v657 = vpack.c.b16 %v641, %v640
          %vm658 = vcmask 523264
          %v660 = vsel %vm658, %v570, 0
          %v663 = vsel %vm658, %v571, 0
          %v666 = vsel %vm658, %v572, 0
          %v669 = vsel %vm658, %v573, 0
          %v672 = vsel %vm658, %v574, 0
          %v675 = vsel %vm658, %v575, 0
          %v678 = vsel %vm658, %v576, 0
          %v681 = vsel %vm658, %v577, 0
          %v684 = vsel %vm658, %v642, 0
          %v687 = vsel %vm658, %v643, 0
          %v690 = vsel %vm658, %v644, 0
          %v693 = vsel %vm658, %v645, 0
          %v696 = vsel %vm658, %v646, 0
          %v699 = vsel %vm658, %v647, 0
          %v702 = vsel %vm658, %v648, 0
          %v705 = vsel %vm658, %v649, 0
          %v708 = vsel %vm658, %v650, 0
          %v711 = vsel %vm658, %v651, 0
          %v714 = vsel %vm658, %v652, 0
          %v717 = vsel %vm658, %v653, 0
          %v720 = vsel %vm658, %v654, 0
          %v723 = vsel %vm658, %v655, 0
          %v726 = vsel %vm658, %v656, 0
          %v729 = vsel %vm658, %v657, 0
          %731 = vmatprep.subr.bf16.mxu0 0
          %732 = vmatpush1.bf16.xpose.msra.mxu0 %v705
          %733 = vmatprep.subr.bf16.mxu0 0
          %734 = vmatpush1.bf16.xpose.msra.mxu0 %v702
          %735 = vmatprep.subr.bf16.mxu0 0
          %736 = vmatpush1.bf16.xpose.msra.mxu0 %v699
          %737 = vmatprep.subr.bf16.mxu0 0
          %738 = vmatpush1.bf16.xpose.msra.mxu0 %v696
          %739 = vmatprep.subr.bf16.mxu0 0
          %740 = vmatpush1.bf16.xpose.msra.mxu0 %v693
          %741 = vmatprep.subr.bf16.mxu0 0
          %742 = vmatpush1.bf16.xpose.msra.mxu0 %v690
          %743 = vmatprep.subr.bf16.mxu0 0
          %744 = vmatpush1.bf16.xpose.msra.mxu0 %v687
          %745 = vmatprep.subr.bf16.mxu0 0
          %746 = vmatpush1.bf16.xpose.msra.mxu0 %v684
          %747 = vmatprep.subr.bf16.mxu0 0
          %748 = vmatpush2.bf16.xpose.msra.mxu0 %v729
          %749 = vmatprep.subr.bf16.mxu0 0
          %750 = vmatpush2.bf16.xpose.msra.mxu0 %v726
          %751 = vmatprep.subr.bf16.mxu0 0
          %752 = vmatpush2.bf16.xpose.msra.mxu0 %v723
          %753 = vmatprep.subr.bf16.mxu0 0
          %754 = vmatpush2.bf16.xpose.msra.mxu0 %v720
          %755 = vmatprep.subr.bf16.mxu0 0
          %756 = vmatpush2.bf16.xpose.msra.mxu0 %v717
          %757 = vmatprep.subr.bf16.mxu0 0
          %758 = vmatpush2.bf16.xpose.msra.mxu0 %v714
          %759 = vmatprep.subr.bf16.mxu0 0
          %760 = vmatpush2.bf16.xpose.msra.mxu0 %v711
          %761 = vmatprep.subr.bf16.mxu0 0
          %762 = vmatpush2.bf16.xpose.msra.mxu0 %v708
          %763 = vmatprep.mubr.bf16.mxu0 0
          %764 = vmatmul.mubr.bf16.gmra.mxu0 %v660
          %v765 = vpop.f32.mrf.mxu0
          %v766 = vadd.f32 0.0, %v765
          %v767 = vpop.f32.mrf.mxu0
          %v768 = vadd.f32 0.0, %v767
          %v769 = vpop.f32.mrf.mxu0
          %v770 = vadd.f32 0.0, %v769
          %v771 = vpop.f32.mrf.mxu0
          %v772 = vadd.f32 0.0, %v771
          %773 = vmatprep.mubr.bf16.mxu0 0
          %774 = vmatmul.mubr.bf16.gmra.mxu0 %v663
          %v775 = vpop.f32.mrf.mxu0
          %v776 = vadd.f32 0.0, %v775
          %v777 = vpop.f32.mrf.mxu0
          %v778 = vadd.f32 0.0, %v777
          %v779 = vpop.f32.mrf.mxu0
          %v780 = vadd.f32 0.0, %v779
          %v781 = vpop.f32.mrf.mxu0
          %v782 = vadd.f32 0.0, %v781
          %783 = vmatprep.mubr.bf16.mxu0 0
          %784 = vmatmul.mubr.bf16.gmra.mxu0 %v666
          %v785 = vpop.f32.mrf.mxu0
          %v786 = vadd.f32 0.0, %v785
          %v787 = vpop.f32.mrf.mxu0
          %v788 = vadd.f32 0.0, %v787
          %v789 = vpop.f32.mrf.mxu0
          %v790 = vadd.f32 0.0, %v789
          %v791 = vpop.f32.mrf.mxu0
          %v792 = vadd.f32 0.0, %v791
          %793 = vmatprep.mubr.bf16.mxu0 0
          %794 = vmatmul.mubr.bf16.gmra.mxu0 %v669
          %v795 = vpop.f32.mrf.mxu0
          %v796 = vadd.f32 0.0, %v795
          %v797 = vpop.f32.mrf.mxu0
          %v798 = vadd.f32 0.0, %v797
          %v799 = vpop.f32.mrf.mxu0
          %v800 = vadd.f32 0.0, %v799
          %v801 = vpop.f32.mrf.mxu0
          %v802 = vadd.f32 0.0, %v801
          %803 = vmatprep.mubr.bf16.mxu0 0
          %804 = vmatmul.mubr.bf16.gmra.mxu0 %v672
          %v805 = vpop.f32.mrf.mxu0
          %v806 = vadd.f32 0.0, %v805
          %v807 = vpop.f32.mrf.mxu0
          %v808 = vadd.f32 0.0, %v807
          %v809 = vpop.f32.mrf.mxu0
          %v810 = vadd.f32 0.0, %v809
          %v811 = vpop.f32.mrf.mxu0
          %v812 = vadd.f32 0.0, %v811
          %813 = vmatprep.mubr.bf16.mxu0 0
          %814 = vmatmul.mubr.bf16.gmra.mxu0 %v675
          %v815 = vpop.f32.mrf.mxu0
          %v816 = vadd.f32 0.0, %v815
          %v817 = vpop.f32.mrf.mxu0
          %v818 = vadd.f32 0.0, %v817
          %v819 = vpop.f32.mrf.mxu0
          %v820 = vadd.f32 0.0, %v819
          %v821 = vpop.f32.mrf.mxu0
          %v822 = vadd.f32 0.0, %v821
          %823 = vmatprep.mubr.bf16.mxu0 0
          %824 = vmatmul.mubr.bf16.gmra.mxu0 %v678
          %v825 = vpop.f32.mrf.mxu0
          %v826 = vadd.f32 0.0, %v825
          %v827 = vpop.f32.mrf.mxu0
          %v828 = vadd.f32 0.0, %v827
          %v829 = vpop.f32.mrf.mxu0
          %v830 = vadd.f32 0.0, %v829
          %v831 = vpop.f32.mrf.mxu0
          %v832 = vadd.f32 0.0, %v831
          %833 = vmatprep.mubr.bf16.mxu0 0
          %834 = vmatmul.mubr.bf16.gmra.mxu0 %v681
          %v835 = vpop.f32.mrf.mxu0
          %v836 = vadd.f32 0.0, %v835
          %v837 = vpop.f32.mrf.mxu0
          %v838 = vadd.f32 0.0, %v837
          %v839 = vpop.f32.mrf.mxu0
          %v840 = vadd.f32 0.0, %v839
          %v841 = vpop.f32.mrf.mxu0
          %v842 = vadd.f32 0.0, %v841
          %843 = vdwg.mxu0
          %v844 = vpack.c.bf16 %v770, %v766
          %v845 = vpack.c.bf16 %v772, %v768
          %v846 = vpack.c.bf16 %v780, %v776
          %v847 = vpack.c.bf16 %v782, %v778
          %v848 = vpack.c.bf16 %v790, %v786
          %v849 = vpack.c.bf16 %v792, %v788
          %v850 = vpack.c.bf16 %v800, %v796
          %v851 = vpack.c.bf16 %v802, %v798
          %v852 = vpack.c.bf16 %v810, %v806
          %v853 = vpack.c.bf16 %v812, %v808
          %v854 = vpack.c.bf16 %v820, %v816
          %v855 = vpack.c.bf16 %v822, %v818
          %v856 = vpack.c.bf16 %v830, %v826
          %v857 = vpack.c.bf16 %v832, %v828
          %v858 = vpack.c.bf16 %v840, %v836
          %v859 = vpack.c.bf16 %v842, %v838
          %v876 = vunpack.c.l.b16 %v844
          %v877 = vunpack.c.l.b16 %v845
          %v878 = vunpack.c.h.b16 %v844
          %v879 = vunpack.c.h.b16 %v845
          %v880 = vunpack.c.l.b16 %v846
          %v881 = vunpack.c.l.b16 %v847
          %v882 = vunpack.c.h.b16 %v846
          %v883 = vunpack.c.h.b16 %v847
          %v884 = vunpack.c.l.b16 %v848
          %v885 = vunpack.c.l.b16 %v849
          %v886 = vunpack.c.h.b16 %v848
          %v887 = vunpack.c.h.b16 %v849
          %v888 = vunpack.c.l.b16 %v850
          %v889 = vunpack.c.l.b16 %v851
          %v890 = vunpack.c.h.b16 %v850
          %v891 = vunpack.c.h.b16 %v851
          %v892 = vunpack.c.l.b16 %v852
          %v893 = vunpack.c.l.b16 %v853
          %v894 = vunpack.c.h.b16 %v852
          %v895 = vunpack.c.h.b16 %v853
          %v896 = vunpack.c.l.b16 %v854
          %v897 = vunpack.c.l.b16 %v855
          %v898 = vunpack.c.h.b16 %v854
          %v899 = vunpack.c.h.b16 %v855
          %v900 = vunpack.c.l.b16 %v856
          %v901 = vunpack.c.l.b16 %v857
          %v902 = vunpack.c.h.b16 %v856
          %v903 = vunpack.c.h.b16 %v857
          %v904 = vunpack.c.l.b16 %v858
          %v905 = vunpack.c.l.b16 %v859
          %v906 = vunpack.c.h.b16 %v858
          %v907 = vunpack.c.h.b16 %v859
          %v908 = vpack.c.b16 %v877, %v876
          %v909 = vpack.c.b16 %v879, %v878
          %v910 = vpack.c.b16 %v881, %v880
          %v911 = vpack.c.b16 %v883, %v882
          %v912 = vpack.c.b16 %v885, %v884
          %v913 = vpack.c.b16 %v887, %v886
          %v914 = vpack.c.b16 %v889, %v888
          %v915 = vpack.c.b16 %v891, %v890
          %v916 = vpack.c.b16 %v893, %v892
          %v917 = vpack.c.b16 %v895, %v894
          %v918 = vpack.c.b16 %v897, %v896
          %v919 = vpack.c.b16 %v899, %v898
          %v920 = vpack.c.b16 %v901, %v900
          %v921 = vpack.c.b16 %v903, %v902
          %v922 = vpack.c.b16 %v905, %v904
          %v923 = vpack.c.b16 %v907, %v906
          %940 = vst [vmem:[#allocation2] sm:$0xff] %v908
          %941 = vst [vmem:[#allocation2 + $0x8] sm:$0xff] %v909
          %942 = vst [vmem:[#allocation2 + $0x10] sm:$0xff] %v910
          %943 = vst [vmem:[#allocation2 + $0x18] sm:$0xff] %v911
          %944 = vst [vmem:[#allocation2 + $0x20] sm:$0xff] %v912
          %945 = vst [vmem:[#allocation2 + $0x28] sm:$0xff] %v913
          %946 = vst [vmem:[#allocation2 + $0x30] sm:$0xff] %v914
          %947 = vst [vmem:[#allocation2 + $0x38] sm:$0xff] %v915
          %948 = vst [vmem:[#allocation2 + $0x40] sm:$0xff] %v916
          %949 = vst [vmem:[#allocation2 + $0x48] sm:$0xff] %v917
          %950 = vst [vmem:[#allocation2 + $0x50] sm:$0xff] %v918
          %951 = vst [vmem:[#allocation2 + $0x58] sm:$0xff] %v919
          %952 = vst [vmem:[#allocation2 + $0x60] sm:$0xff] %v920
          %953 = vst [vmem:[#allocation2 + $0x68] sm:$0xff] %v921
          %954 = vst [vmem:[#allocation2 + $0x70] sm:$0xff] %v922
          %955 = vst [vmem:[#allocation2 + $0x78] sm:$0xff] %v923
          %v956 = vld [vmem:[%s5] sm:$0xf]
          %v957 = vld [vmem:[%s5 + $0x4] sm:$0xf]
          %v958 = vld [vmem:[%s5 + $0x8] sm:$0xf]
          %v959 = vld [vmem:[%s5 + $0xc] sm:$0xf]
          %v960 = vld [vmem:[%s5 + $0x10] sm:$0xf]
          %v961 = vld [vmem:[%s5 + $0x14] sm:$0xf]
          %v962 = vld [vmem:[%s5 + $0x18] sm:$0xf]
          %v963 = vld [vmem:[%s5 + $0x1c] sm:$0xf]
          %v996 = vunpack.c.l.b16 %v490
          %v997 = vunpack.c.l.b16 %v491
          %v998 = vunpack.c.l.b16 %v492
          %v999 = vunpack.c.l.b16 %v493
          %v1000 = vunpack.c.l.b16 %v494
          %v1001 = vunpack.c.l.b16 %v495
          %v1002 = vunpack.c.l.b16 %v496
          %v1003 = vunpack.c.l.b16 %v497
          %v1004 = vunpack.c.l.b16 %v498
          %v1005 = vunpack.c.l.b16 %v499
          %v1006 = vunpack.c.l.b16 %v500
          %v1007 = vunpack.c.l.b16 %v501
          %v1008 = vunpack.c.l.b16 %v502
          %v1009 = vunpack.c.l.b16 %v503
          %v1010 = vunpack.c.l.b16 %v504
          %v1011 = vunpack.c.l.b16 %v505
          %v1012 = vunpack.c.l.b16 %v506
          %v1013 = vunpack.c.l.b16 %v507
          %v1014 = vunpack.c.l.b16 %v508
          %v1015 = vunpack.c.l.b16 %v509
          %v1016 = vunpack.c.l.b16 %v510
          %v1017 = vunpack.c.l.b16 %v511
          %v1018 = vunpack.c.l.b16 %v512
          %v1019 = vunpack.c.l.b16 %v513
          %v1020 = vunpack.c.l.b16 %v514
          %v1021 = vunpack.c.l.b16 %v515
          %v1022 = vunpack.c.l.b16 %v516
          %v1023 = vunpack.c.l.b16 %v517
          %v1024 = vunpack.c.l.b16 %v518
          %v1025 = vunpack.c.l.b16 %v519
          %v1026 = vunpack.c.l.b16 %v520
          %v1027 = vunpack.c.l.b16 %v521
          %v1028 = vpack.c.b16 %v997, %v996
          %v1029 = vpack.c.b16 %v999, %v998
          %v1030 = vpack.c.b16 %v1001, %v1000
          %v1031 = vpack.c.b16 %v1003, %v1002
          %v1032 = vpack.c.b16 %v1005, %v1004
          %v1033 = vpack.c.b16 %v1007, %v1006
          %v1034 = vpack.c.b16 %v1009, %v1008
          %v1035 = vpack.c.b16 %v1011, %v1010
          %v1036 = vpack.c.b16 %v1013, %v1012
          %v1037 = vpack.c.b16 %v1015, %v1014
          %v1038 = vpack.c.b16 %v1017, %v1016
          %v1039 = vpack.c.b16 %v1019, %v1018
          %v1040 = vpack.c.b16 %v1021, %v1020
          %v1041 = vpack.c.b16 %v1023, %v1022
          %v1042 = vpack.c.b16 %v1025, %v1024
          %v1043 = vpack.c.b16 %v1027, %v1026
          %v1052 = vunpack.c.l.b16 %v956
          %v1053 = vunpack.c.l.b16 %v957
          %v1054 = vunpack.c.l.b16 %v958
          %v1055 = vunpack.c.l.b16 %v959
          %v1056 = vunpack.c.l.b16 %v960
          %v1057 = vunpack.c.l.b16 %v961
          %v1058 = vunpack.c.l.b16 %v962
          %v1059 = vunpack.c.l.b16 %v963
          %v1060 = vpack.c.b16 %v1053, %v1052
          %v1061 = vpack.c.b16 %v1055, %v1054
          %v1062 = vpack.c.b16 %v1057, %v1056
          %v1063 = vpack.c.b16 %v1059, %v1058
          %v1069 = vsel %vm658, %v1028, 0
          %v1072 = vsel %vm658, %v1029, 0
          %v1075 = vsel %vm658, %v1030, 0
          %v1078 = vsel %vm658, %v1031, 0
          %v1081 = vsel %vm658, %v1032, 0
          %v1084 = vsel %vm658, %v1033, 0
          %v1087 = vsel %vm658, %v1034, 0
          %v1090 = vsel %vm658, %v1035, 0
          %v1093 = vsel %vm658, %v1036, 0
          %v1096 = vsel %vm658, %v1037, 0
          %v1099 = vsel %vm658, %v1038, 0
          %v1102 = vsel %vm658, %v1039, 0
          %v1105 = vsel %vm658, %v1040, 0
          %v1108 = vsel %vm658, %v1041, 0
          %v1111 = vsel %vm658, %v1042, 0
          %v1114 = vsel %vm658, %v1043, 0
          %1116 = vmatprep.subr.bf16.mxu0 0
          %1117 = vmatpush1.bf16.msra.mxu0 0
          %1118 = vmatprep.subr.bf16.mxu0 0
          %1119 = vmatpush1.bf16.msra.mxu0 0
          %1120 = vmatprep.subr.bf16.mxu0 0
          %1121 = vmatpush1.bf16.msra.mxu0 0
          %1122 = vmatprep.subr.bf16.mxu0 0
          %1123 = vmatpush1.bf16.msra.mxu0 0
          %1124 = vmatprep.subr.bf16.mxu0 0
          %1125 = vmatpush1.bf16.msra.mxu0 %v1063
          %1126 = vmatprep.subr.bf16.mxu0 0
          %1127 = vmatpush1.bf16.msra.mxu0 %v1062
          %1128 = vmatprep.subr.bf16.mxu0 0
          %1129 = vmatpush1.bf16.msra.mxu0 %v1061
          %1130 = vmatprep.subr.bf16.mxu0 0
          %1131 = vmatpush1.bf16.msra.mxu0 %v1060
          %1132 = vmatprep.subr.bf16.mxu0 0
          %1133 = vmatpush2.bf16.msra.mxu0 0
          %1134 = vmatprep.subr.bf16.mxu0 0
          %1135 = vmatpush2.bf16.msra.mxu0 0
          %1136 = vmatprep.subr.bf16.mxu0 0
          %1137 = vmatpush2.bf16.msra.mxu0 0
          %1138 = vmatprep.subr.bf16.mxu0 0
          %1139 = vmatpush2.bf16.msra.mxu0 0
          %1140 = vmatprep.subr.bf16.mxu0 0
          %1141 = vmatpush2.bf16.msra.mxu0 0
          %1142 = vmatprep.subr.bf16.mxu0 0
          %1143 = vmatpush2.bf16.msra.mxu0 0
          %1144 = vmatprep.subr.bf16.mxu0 0
          %1145 = vmatpush2.bf16.msra.mxu0 0
          %1146 = vmatprep.subr.bf16.mxu0 0
          %1147 = vmatpush2.bf16.msra.mxu0 0
          %1148 = vmatprep.mubr.bf16.mxu0 0
          %1149 = vmatmul.mubr.bf16.gmra.mxu0 %v1069
          %v1150 = vpop.f32.mrf.mxu0
          %v1151 = vadd.f32 0.0, %v1150
          %v1152 = vpop.f32.mrf.mxu0
          %v1153 = vpop.f32.mrf.mxu0
          %v1154 = vadd.f32 0.0, %v1153
          %v1155 = vpop.f32.mrf.mxu0
          %1156 = vmatprep.mubr.bf16.mxu0 0
          %1157 = vmatmul.mubr.bf16.gmra.mxu0 %v1072
          %v1158 = vpop.f32.mrf.mxu0
          %v1159 = vadd.f32 0.0, %v1158
          %v1160 = vpop.f32.mrf.mxu0
          %v1161 = vpop.f32.mrf.mxu0
          %v1162 = vadd.f32 0.0, %v1161
          %v1163 = vpop.f32.mrf.mxu0
          %1164 = vmatprep.mubr.bf16.mxu0 0
          %1165 = vmatmul.mubr.bf16.gmra.mxu0 %v1075
          %v1166 = vpop.f32.mrf.mxu0
          %v1167 = vadd.f32 0.0, %v1166
          %v1168 = vpop.f32.mrf.mxu0
          %v1169 = vpop.f32.mrf.mxu0
          %v1170 = vadd.f32 0.0, %v1169
          %v1171 = vpop.f32.mrf.mxu0
          %1172 = vmatprep.mubr.bf16.mxu0 0
          %1173 = vmatmul.mubr.bf16.gmra.mxu0 %v1078
          %v1174 = vpop.f32.mrf.mxu0
          %v1175 = vadd.f32 0.0, %v1174
          %v1176 = vpop.f32.mrf.mxu0
          %v1177 = vpop.f32.mrf.mxu0
          %v1178 = vadd.f32 0.0, %v1177
          %v1179 = vpop.f32.mrf.mxu0
          %1180 = vmatprep.mubr.bf16.mxu0 0
          %1181 = vmatmul.mubr.bf16.gmra.mxu0 %v1081
          %v1182 = vpop.f32.mrf.mxu0
          %v1183 = vadd.f32 0.0, %v1182
          %v1184 = vpop.f32.mrf.mxu0
          %v1185 = vpop.f32.mrf.mxu0
          %v1186 = vadd.f32 0.0, %v1185
          %v1187 = vpop.f32.mrf.mxu0
          %1188 = vmatprep.mubr.bf16.mxu0 0
          %1189 = vmatmul.mubr.bf16.gmra.mxu0 %v1084
          %v1190 = vpop.f32.mrf.mxu0
          %v1191 = vadd.f32 0.0, %v1190
          %v1192 = vpop.f32.mrf.mxu0
          %v1193 = vpop.f32.mrf.mxu0
          %v1194 = vadd.f32 0.0, %v1193
          %v1195 = vpop.f32.mrf.mxu0
          %1196 = vmatprep.mubr.bf16.mxu0 0
          %1197 = vmatmul.mubr.bf16.gmra.mxu0 %v1087
          %v1198 = vpop.f32.mrf.mxu0
          %v1199 = vadd.f32 0.0, %v1198
          %v1200 = vpop.f32.mrf.mxu0
          %v1201 = vpop.f32.mrf.mxu0
          %v1202 = vadd.f32 0.0, %v1201
          %v1203 = vpop.f32.mrf.mxu0
          %1204 = vmatprep.mubr.bf16.mxu0 0
          %1205 = vmatmul.mubr.bf16.gmra.mxu0 %v1090
          %v1206 = vpop.f32.mrf.mxu0
          %v1207 = vadd.f32 0.0, %v1206
          %v1208 = vpop.f32.mrf.mxu0
          %v1209 = vpop.f32.mrf.mxu0
          %v1210 = vadd.f32 0.0, %v1209
          %v1211 = vpop.f32.mrf.mxu0
          %1212 = vmatprep.mubr.bf16.mxu0 0
          %1213 = vmatmul.mubr.bf16.gmra.mxu0 %v1093
          %v1214 = vpop.f32.mrf.mxu0
          %v1215 = vadd.f32 0.0, %v1214
          %v1216 = vpop.f32.mrf.mxu0
          %v1217 = vpop.f32.mrf.mxu0
          %v1218 = vadd.f32 0.0, %v1217
          %v1219 = vpop.f32.mrf.mxu0
          %1220 = vmatprep.mubr.bf16.mxu0 0
          %1221 = vmatmul.mubr.bf16.gmra.mxu0 %v1096
          %v1222 = vpop.f32.mrf.mxu0
          %v1223 = vadd.f32 0.0, %v1222
          %v1224 = vpop.f32.mrf.mxu0
          %v1225 = vpop.f32.mrf.mxu0
          %v1226 = vadd.f32 0.0, %v1225
          %v1227 = vpop.f32.mrf.mxu0
          %1228 = vmatprep.mubr.bf16.mxu0 0
          %1229 = vmatmul.mubr.bf16.gmra.mxu0 %v1099
          %v1230 = vpop.f32.mrf.mxu0
          %v1231 = vadd.f32 0.0, %v1230
          %v1232 = vpop.f32.mrf.mxu0
          %v1233 = vpop.f32.mrf.mxu0
          %v1234 = vadd.f32 0.0, %v1233
          %v1235 = vpop.f32.mrf.mxu0
          %1236 = vmatprep.mubr.bf16.mxu0 0
          %1237 = vmatmul.mubr.bf16.gmra.mxu0 %v1102
          %v1238 = vpop.f32.mrf.mxu0
          %v1239 = vadd.f32 0.0, %v1238
          %v1240 = vpop.f32.mrf.mxu0
          %v1241 = vpop.f32.mrf.mxu0
          %v1242 = vadd.f32 0.0, %v1241
          %v1243 = vpop.f32.mrf.mxu0
          %1244 = vmatprep.mubr.bf16.mxu0 0
          %1245 = vmatmul.mubr.bf16.gmra.mxu0 %v1105
          %v1246 = vpop.f32.mrf.mxu0
          %v1247 = vadd.f32 0.0, %v1246
          %v1248 = vpop.f32.mrf.mxu0
          %v1249 = vpop.f32.mrf.mxu0
          %v1250 = vadd.f32 0.0, %v1249
          %v1251 = vpop.f32.mrf.mxu0
          %1252 = vmatprep.mubr.bf16.mxu0 0
          %1253 = vmatmul.mubr.bf16.gmra.mxu0 %v1108
          %v1254 = vpop.f32.mrf.mxu0
          %v1255 = vadd.f32 0.0, %v1254
          %v1256 = vpop.f32.mrf.mxu0
          %v1257 = vpop.f32.mrf.mxu0
          %v1258 = vadd.f32 0.0, %v1257
          %v1259 = vpop.f32.mrf.mxu0
          %1260 = vmatprep.mubr.bf16.mxu0 0
          %1261 = vmatmul.mubr.bf16.gmra.mxu0 %v1111
          %v1262 = vpop.f32.mrf.mxu0
          %v1263 = vadd.f32 0.0, %v1262
          %v1264 = vpop.f32.mrf.mxu0
          %v1265 = vpop.f32.mrf.mxu0
          %v1266 = vadd.f32 0.0, %v1265
          %v1267 = vpop.f32.mrf.mxu0
          %1268 = vmatprep.mubr.bf16.mxu0 0
          %1269 = vmatmul.mubr.bf16.gmra.mxu0 %v1114
          %v1270 = vpop.f32.mrf.mxu0
          %v1271 = vadd.f32 0.0, %v1270
          %v1272 = vpop.f32.mrf.mxu0
          %v1273 = vpop.f32.mrf.mxu0
          %v1274 = vadd.f32 0.0, %v1273
          %v1275 = vpop.f32.mrf.mxu0
          %1276 = vdwg.mxu0
          %v1277 = vpack.c.bf16 %v1154, %v1151
          %v1278 = vpack.c.bf16 %v1162, %v1159
          %v1279 = vpack.c.bf16 %v1170, %v1167
          %v1280 = vpack.c.bf16 %v1178, %v1175
          %v1281 = vpack.c.bf16 %v1186, %v1183
          %v1282 = vpack.c.bf16 %v1194, %v1191
          %v1283 = vpack.c.bf16 %v1202, %v1199
          %v1284 = vpack.c.bf16 %v1210, %v1207
          %v1285 = vpack.c.bf16 %v1218, %v1215
          %v1286 = vpack.c.bf16 %v1226, %v1223
          %v1287 = vpack.c.bf16 %v1234, %v1231
          %v1288 = vpack.c.bf16 %v1242, %v1239
          %v1289 = vpack.c.bf16 %v1250, %v1247
          %v1290 = vpack.c.bf16 %v1258, %v1255
          %v1291 = vpack.c.bf16 %v1266, %v1263
          %v1292 = vpack.c.bf16 %v1274, %v1271
          %v1309 = vunpack.c.l.b16 %v1277
          %v1310 = vunpack.c.h.b16 %v1277
          %v1311 = vunpack.c.l.b16 %v1278
          %v1312 = vunpack.c.h.b16 %v1278
          %v1313 = vunpack.c.l.b16 %v1279
          %v1314 = vunpack.c.h.b16 %v1279
          %v1315 = vunpack.c.l.b16 %v1280
          %v1316 = vunpack.c.h.b16 %v1280
          %v1317 = vunpack.c.l.b16 %v1281
          %v1318 = vunpack.c.h.b16 %v1281
          %v1319 = vunpack.c.l.b16 %v1282
          %v1320 = vunpack.c.h.b16 %v1282
          %v1321 = vunpack.c.l.b16 %v1283
          %v1322 = vunpack.c.h.b16 %v1283
          %v1323 = vunpack.c.l.b16 %v1284
          %v1324 = vunpack.c.h.b16 %v1284
          %v1325 = vunpack.c.l.b16 %v1285
          %v1326 = vunpack.c.h.b16 %v1285
          %v1327 = vunpack.c.l.b16 %v1286
          %v1328 = vunpack.c.h.b16 %v1286
          %v1329 = vunpack.c.l.b16 %v1287
          %v1330 = vunpack.c.h.b16 %v1287
          %v1331 = vunpack.c.l.b16 %v1288
          %v1332 = vunpack.c.h.b16 %v1288
          %v1333 = vunpack.c.l.b16 %v1289
          %v1334 = vunpack.c.h.b16 %v1289
          %v1335 = vunpack.c.l.b16 %v1290
          %v1336 = vunpack.c.h.b16 %v1290
          %v1337 = vunpack.c.l.b16 %v1291
          %v1338 = vunpack.c.h.b16 %v1291
          %v1339 = vunpack.c.l.b16 %v1292
          %v1340 = vunpack.c.h.b16 %v1292
          %v1341 = vpack.c.b16 %v1309, %v1309
          %v1342 = vpack.c.b16 %v1310, %v1310
          %v1343 = vpack.c.b16 %v1311, %v1311
          %v1344 = vpack.c.b16 %v1312, %v1312
          %v1345 = vpack.c.b16 %v1313, %v1313
          %v1346 = vpack.c.b16 %v1314, %v1314
          %v1347 = vpack.c.b16 %v1315, %v1315
          %v1348 = vpack.c.b16 %v1316, %v1316
          %v1349 = vpack.c.b16 %v1317, %v1317
          %v1350 = vpack.c.b16 %v1318, %v1318
          %v1351 = vpack.c.b16 %v1319, %v1319
          %v1352 = vpack.c.b16 %v1320, %v1320
          %v1353 = vpack.c.b16 %v1321, %v1321
          %v1354 = vpack.c.b16 %v1322, %v1322
          %v1355 = vpack.c.b16 %v1323, %v1323
          %v1356 = vpack.c.b16 %v1324, %v1324
          %v1357 = vpack.c.b16 %v1325, %v1325
          %v1358 = vpack.c.b16 %v1326, %v1326
          %v1359 = vpack.c.b16 %v1327, %v1327
          %v1360 = vpack.c.b16 %v1328, %v1328
          %v1361 = vpack.c.b16 %v1329, %v1329
          %v1362 = vpack.c.b16 %v1330, %v1330
          %v1363 = vpack.c.b16 %v1331, %v1331
          %v1364 = vpack.c.b16 %v1332, %v1332
          %v1365 = vpack.c.b16 %v1333, %v1333
          %v1366 = vpack.c.b16 %v1334, %v1334
          %v1367 = vpack.c.b16 %v1335, %v1335
          %v1368 = vpack.c.b16 %v1336, %v1336
          %v1369 = vpack.c.b16 %v1337, %v1337
          %v1370 = vpack.c.b16 %v1338, %v1338
          %v1371 = vpack.c.b16 %v1339, %v1339
          %v1372 = vpack.c.b16 %v1340, %v1340
          %1405 = vst [vmem:[%s432] sm:$0xf] %v1341
          %1406 = vst [vmem:[%s432 + $0x4] sm:$0xf] %v1342
          %1407 = vst [vmem:[%s432 + $0x8] sm:$0xf] %v1343
          %1408 = vst [vmem:[%s432 + $0xc] sm:$0xf] %v1344
          %1409 = vst [vmem:[%s432 + $0x10] sm:$0xf] %v1345
          %1410 = vst [vmem:[%s432 + $0x14] sm:$0xf] %v1346
          %1411 = vst [vmem:[%s432 + $0x18] sm:$0xf] %v1347
          %1412 = vst [vmem:[%s432 + $0x1c] sm:$0xf] %v1348
          %1413 = vst [vmem:[%s432 + $0x20] sm:$0xf] %v1349
          %1414 = vst [vmem:[%s432 + $0x24] sm:$0xf] %v1350
          %1415 = vst [vmem:[%s432 + $0x28] sm:$0xf] %v1351
          %1416 = vst [vmem:[%s432 + $0x2c] sm:$0xf] %v1352
          %1417 = vst [vmem:[%s432 + $0x30] sm:$0xf] %v1353
          %1418 = vst [vmem:[%s432 + $0x34] sm:$0xf] %v1354
          %1419 = vst [vmem:[%s432 + $0x38] sm:$0xf] %v1355
          %1420 = vst [vmem:[%s432 + $0x3c] sm:$0xf] %v1356
          %1421 = vst [vmem:[%s432 + $0x40] sm:$0xf] %v1357
          %1422 = vst [vmem:[%s432 + $0x44] sm:$0xf] %v1358
          %1423 = vst [vmem:[%s432 + $0x48] sm:$0xf] %v1359
          %1424 = vst [vmem:[%s432 + $0x4c] sm:$0xf] %v1360
          %1425 = vst [vmem:[%s432 + $0x50] sm:$0xf] %v1361
          %1426 = vst [vmem:[%s432 + $0x54] sm:$0xf] %v1362
          %1427 = vst [vmem:[%s432 + $0x58] sm:$0xf] %v1363
          %1428 = vst [vmem:[%s432 + $0x5c] sm:$0xf] %v1364
          %1429 = vst [vmem:[%s432 + $0x60] sm:$0xf] %v1365
          %1430 = vst [vmem:[%s432 + $0x64] sm:$0xf] %v1366
          %1431 = vst [vmem:[%s432 + $0x68] sm:$0xf] %v1367
          %1432 = vst [vmem:[%s432 + $0x6c] sm:$0xf] %v1368
          %1433 = vst [vmem:[%s432 + $0x70] sm:$0xf] %v1369
          %1434 = vst [vmem:[%s432 + $0x74] sm:$0xf] %v1370
          %1435 = vst [vmem:[%s432 + $0x78] sm:$0xf] %v1371
          %1436 = vst [vmem:[%s432 + $0x7c] sm:$0xf] %v1372
          %vm1437 = vcmask 519168
          %1438 = vst.msk [vmem:[#allocation3] sm:$0xf] %vm1437, %v1341
          %1439 = vst.msk [vmem:[#allocation3 + $0x4] sm:$0xf] %vm1437, %v1342
          %1440 = vst.msk [vmem:[#allocation3 + $0x8] sm:$0xf] %vm1437, %v1343
          %1441 = vst.msk [vmem:[#allocation3 + $0xc] sm:$0xf] %vm1437, %v1344
          %1442 = vst.msk [vmem:[#allocation3 + $0x10] sm:$0xf] %vm1437, %v1345
          %1443 = vst.msk [vmem:[#allocation3 + $0x14] sm:$0xf] %vm1437, %v1346
          %1444 = vst.msk [vmem:[#allocation3 + $0x18] sm:$0xf] %vm1437, %v1347
          %1445 = vst.msk [vmem:[#allocation3 + $0x1c] sm:$0xf] %vm1437, %v1348
          %1446 = vst.msk [vmem:[#allocation3 + $0x20] sm:$0xf] %vm1437, %v1349
          %1447 = vst.msk [vmem:[#allocation3 + $0x24] sm:$0xf] %vm1437, %v1350
          %1448 = vst.msk [vmem:[#allocation3 + $0x28] sm:$0xf] %vm1437, %v1351
          %1449 = vst.msk [vmem:[#allocation3 + $0x2c] sm:$0xf] %vm1437, %v1352
          %1450 = vst.msk [vmem:[#allocation3 + $0x30] sm:$0xf] %vm1437, %v1353
          %1451 = vst.msk [vmem:[#allocation3 + $0x34] sm:$0xf] %vm1437, %v1354
          %1452 = vst.msk [vmem:[#allocation3 + $0x38] sm:$0xf] %vm1437, %v1355
          %1453 = vst.msk [vmem:[#allocation3 + $0x3c] sm:$0xf] %vm1437, %v1356
          %1454 = vst.msk [vmem:[#allocation3 + $0x40] sm:$0xf] %vm1437, %v1357
          %1455 = vst.msk [vmem:[#allocation3 + $0x44] sm:$0xf] %vm1437, %v1358
          %1456 = vst.msk [vmem:[#allocation3 + $0x48] sm:$0xf] %vm1437, %v1359
          %1457 = vst.msk [vmem:[#allocation3 + $0x4c] sm:$0xf] %vm1437, %v1360
          %1458 = vst.msk [vmem:[#allocation3 + $0x50] sm:$0xf] %vm1437, %v1361
          %1459 = vst.msk [vmem:[#allocation3 + $0x54] sm:$0xf] %vm1437, %v1362
          %1460 = vst.msk [vmem:[#allocation3 + $0x58] sm:$0xf] %vm1437, %v1363
          %1461 = vst.msk [vmem:[#allocation3 + $0x5c] sm:$0xf] %vm1437, %v1364
          %1462 = vst.msk [vmem:[#allocation3 + $0x60] sm:$0xf] %vm1437, %v1365
          %1463 = vst.msk [vmem:[#allocation3 + $0x64] sm:$0xf] %vm1437, %v1366
          %1464 = vst.msk [vmem:[#allocation3 + $0x68] sm:$0xf] %vm1437, %v1367
          %1465 = vst.msk [vmem:[#allocation3 + $0x6c] sm:$0xf] %vm1437, %v1368
          %1466 = vst.msk [vmem:[#allocation3 + $0x70] sm:$0xf] %vm1437, %v1369
          %1467 = vst.msk [vmem:[#allocation3 + $0x74] sm:$0xf] %vm1437, %v1370
          %1468 = vst.msk [vmem:[#allocation3 + $0x78] sm:$0xf] %vm1437, %v1371
          %1469 = vst.msk [vmem:[#allocation3 + $0x7c] sm:$0xf] %vm1437, %v1372
          %1470 = vrot.lane.b32.xlu0 %v1341, 64
          %v1471 = vpop.permute.xlu0 %1470
          %1472 = vrot.lane.b32.xlu0 %v1342, 64
          %v1473 = vpop.permute.xlu0 %1472
          %1474 = vrot.lane.b32.xlu0 %v1343, 64
          %v1475 = vpop.permute.xlu0 %1474
          %1476 = vrot.lane.b32.xlu0 %v1344, 64
          %v1477 = vpop.permute.xlu0 %1476
          %1478 = vrot.lane.b32.xlu0 %v1345, 64
          %v1479 = vpop.permute.xlu0 %1478
          %1480 = vrot.lane.b32.xlu0 %v1346, 64
          %v1481 = vpop.permute.xlu0 %1480
          %1482 = vrot.lane.b32.xlu0 %v1347, 64
          %v1483 = vpop.permute.xlu0 %1482
          %1484 = vrot.lane.b32.xlu0 %v1348, 64
          %v1485 = vpop.permute.xlu0 %1484
          %1486 = vrot.lane.b32.xlu0 %v1349, 64
          %v1487 = vpop.permute.xlu0 %1486
          %1488 = vrot.lane.b32.xlu0 %v1350, 64
          %v1489 = vpop.permute.xlu0 %1488
          %1490 = vrot.lane.b32.xlu0 %v1351, 64
          %v1491 = vpop.permute.xlu0 %1490
          %1492 = vrot.lane.b32.xlu0 %v1352, 64
          %v1493 = vpop.permute.xlu0 %1492
          %1494 = vrot.lane.b32.xlu0 %v1353, 64
          %v1495 = vpop.permute.xlu0 %1494
          %1496 = vrot.lane.b32.xlu0 %v1354, 64
          %v1497 = vpop.permute.xlu0 %1496
          %1498 = vrot.lane.b32.xlu0 %v1355, 64
          %v1499 = vpop.permute.xlu0 %1498
          %1500 = vrot.lane.b32.xlu0 %v1356, 64
          %v1501 = vpop.permute.xlu0 %1500
          %1502 = vrot.lane.b32.xlu0 %v1357, 64
          %v1503 = vpop.permute.xlu0 %1502
          %1504 = vrot.lane.b32.xlu0 %v1358, 64
          %v1505 = vpop.permute.xlu0 %1504
          %1506 = vrot.lane.b32.xlu0 %v1359, 64
          %v1507 = vpop.permute.xlu0 %1506
          %1508 = vrot.lane.b32.xlu0 %v1360, 64
          %v1509 = vpop.permute.xlu0 %1508
          %1510 = vrot.lane.b32.xlu0 %v1361, 64
          %v1511 = vpop.permute.xlu0 %1510
          %1512 = vrot.lane.b32.xlu0 %v1362, 64
          %v1513 = vpop.permute.xlu0 %1512
          %1514 = vrot.lane.b32.xlu0 %v1363, 64
          %v1515 = vpop.permute.xlu0 %1514
          %1516 = vrot.lane.b32.xlu0 %v1364, 64
          %v1517 = vpop.permute.xlu0 %1516
          %1518 = vrot.lane.b32.xlu0 %v1365, 64
          %v1519 = vpop.permute.xlu0 %1518
          %1520 = vrot.lane.b32.xlu0 %v1366, 64
          %v1521 = vpop.permute.xlu0 %1520
          %1522 = vrot.lane.b32.xlu0 %v1367, 64
          %v1523 = vpop.permute.xlu0 %1522
          %1524 = vrot.lane.b32.xlu0 %v1368, 64
          %v1525 = vpop.permute.xlu0 %1524
          %1526 = vrot.lane.b32.xlu0 %v1369, 64
          %v1527 = vpop.permute.xlu0 %1526
          %1528 = vrot.lane.b32.xlu0 %v1370, 64
          %v1529 = vpop.permute.xlu0 %1528
          %1530 = vrot.lane.b32.xlu0 %v1371, 64
          %v1531 = vpop.permute.xlu0 %1530
          %1532 = vrot.lane.b32.xlu0 %v1372, 64
          %v1533 = vpop.permute.xlu0 %1532
          %s1566 = scalar_lea.vmem [#allocation3], 128
          %1567 = vst.msk [vmem:[%s1566] sm:$0xf] %vm1437, %v1471
          %1568 = vst.msk [vmem:[%s1566 + $0x4] sm:$0xf] %vm1437, %v1473
          %1569 = vst.msk [vmem:[%s1566 + $0x8] sm:$0xf] %vm1437, %v1475
          %1570 = vst.msk [vmem:[%s1566 + $0xc] sm:$0xf] %vm1437, %v1477
          %1571 = vst.msk [vmem:[%s1566 + $0x10] sm:$0xf] %vm1437, %v1479
          %1572 = vst.msk [vmem:[%s1566 + $0x14] sm:$0xf] %vm1437, %v1481
          %1573 = vst.msk [vmem:[%s1566 + $0x18] sm:$0xf] %vm1437, %v1483
          %1574 = vst.msk [vmem:[%s1566 + $0x1c] sm:$0xf] %vm1437, %v1485
          %1575 = vst.msk [vmem:[%s1566 + $0x20] sm:$0xf] %vm1437, %v1487
          %1576 = vst.msk [vmem:[%s1566 + $0x24] sm:$0xf] %vm1437, %v1489
          %1577 = vst.msk [vmem:[%s1566 + $0x28] sm:$0xf] %vm1437, %v1491
          %1578 = vst.msk [vmem:[%s1566 + $0x2c] sm:$0xf] %vm1437, %v1493
          %1579 = vst.msk [vmem:[%s1566 + $0x30] sm:$0xf] %vm1437, %v1495
          %1580 = vst.msk [vmem:[%s1566 + $0x34] sm:$0xf] %vm1437, %v1497
          %1581 = vst.msk [vmem:[%s1566 + $0x38] sm:$0xf] %vm1437, %v1499
          %1582 = vst.msk [vmem:[%s1566 + $0x3c] sm:$0xf] %vm1437, %v1501
          %1583 = vst.msk [vmem:[%s1566 + $0x40] sm:$0xf] %vm1437, %v1503
          %1584 = vst.msk [vmem:[%s1566 + $0x44] sm:$0xf] %vm1437, %v1505
          %1585 = vst.msk [vmem:[%s1566 + $0x48] sm:$0xf] %vm1437, %v1507
          %1586 = vst.msk [vmem:[%s1566 + $0x4c] sm:$0xf] %vm1437, %v1509
          %1587 = vst.msk [vmem:[%s1566 + $0x50] sm:$0xf] %vm1437, %v1511
          %1588 = vst.msk [vmem:[%s1566 + $0x54] sm:$0xf] %vm1437, %v1513
          %1589 = vst.msk [vmem:[%s1566 + $0x58] sm:$0xf] %vm1437, %v1515
          %1590 = vst.msk [vmem:[%s1566 + $0x5c] sm:$0xf] %vm1437, %v1517
          %1591 = vst.msk [vmem:[%s1566 + $0x60] sm:$0xf] %vm1437, %v1519
          %1592 = vst.msk [vmem:[%s1566 + $0x64] sm:$0xf] %vm1437, %v1521
          %1593 = vst.msk [vmem:[%s1566 + $0x68] sm:$0xf] %vm1437, %v1523
          %1594 = vst.msk [vmem:[%s1566 + $0x6c] sm:$0xf] %vm1437, %v1525
          %1595 = vst.msk [vmem:[%s1566 + $0x70] sm:$0xf] %vm1437, %v1527
          %1596 = vst.msk [vmem:[%s1566 + $0x74] sm:$0xf] %vm1437, %v1529
          %1597 = vst.msk [vmem:[%s1566 + $0x78] sm:$0xf] %vm1437, %v1531
          %1598 = vst.msk [vmem:[%s1566 + $0x7c] sm:$0xf] %vm1437, %v1533
          %1599 = vst [vmem:[#allocation4] sm:$0x1] 0.0
          %1600 = vst [vmem:[#allocation5] sm:$0x1] 0.0
        $region68: #{tpu_custom_call.1} parent=63 // pred_fallthru
          _
        %s1601 = smul.u32 %s30, 128
        %v1602 = vld [vmem:[%s441] sm:$0xf]
        %v1603 = vld [vmem:[%s441 + $0x4] sm:$0xf]
        %v1604 = vld [vmem:[%s441 + $0x8] sm:$0xf]
        %v1605 = vld [vmem:[%s441 + $0xc] sm:$0xf]
        %v1606 = vld [vmem:[%s441 + $0x10] sm:$0xf]
        %v1607 = vld [vmem:[%s441 + $0x14] sm:$0xf]
        %v1608 = vld [vmem:[%s441 + $0x18] sm:$0xf]
        %v1609 = vld [vmem:[%s441 + $0x1c] sm:$0xf]
        %v1610 = vld [vmem:[%s441 + $0x20] sm:$0xf]
        %v1611 = vld [vmem:[%s441 + $0x24] sm:$0xf]
        %v1612 = vld [vmem:[%s441 + $0x28] sm:$0xf]
        %v1613 = vld [vmem:[%s441 + $0x2c] sm:$0xf]
        %v1614 = vld [vmem:[%s441 + $0x30] sm:$0xf]
        %v1615 = vld [vmem:[%s441 + $0x34] sm:$0xf]
        %v1616 = vld [vmem:[%s441 + $0x38] sm:$0xf]
        %v1617 = vld [vmem:[%s441 + $0x3c] sm:$0xf]
        %v1618 = vld [vmem:[%s3] sm:$0xf]
        %v1619 = vld [vmem:[%s3 + $0x4] sm:$0xf]
        %v1620 = vld [vmem:[%s3 + $0x8] sm:$0xf]
        %v1621 = vld [vmem:[%s3 + $0xc] sm:$0xf]
        %v1622 = vld [vmem:[%s3 + $0x10] sm:$0xf]
        %v1623 = vld [vmem:[%s3 + $0x14] sm:$0xf]
        %v1624 = vld [vmem:[%s3 + $0x18] sm:$0xf]
        %v1625 = vld [vmem:[%s3 + $0x1c] sm:$0xf]
        %v1642 = vunpack.c.l.b16 %v1602
        %v1643 = vunpack.c.l.b16 %v1603
        %v1644 = vunpack.c.l.b16 %v1604
        %v1645 = vunpack.c.l.b16 %v1605
        %v1646 = vunpack.c.l.b16 %v1606
        %v1647 = vunpack.c.l.b16 %v1607
        %v1648 = vunpack.c.l.b16 %v1608
        %v1649 = vunpack.c.l.b16 %v1609
        %v1650 = vunpack.c.l.b16 %v1610
        %v1651 = vunpack.c.l.b16 %v1611
        %v1652 = vunpack.c.l.b16 %v1612
        %v1653 = vunpack.c.l.b16 %v1613
        %v1654 = vunpack.c.l.b16 %v1614
        %v1655 = vunpack.c.l.b16 %v1615
        %v1656 = vunpack.c.l.b16 %v1616
        %v1657 = vunpack.c.l.b16 %v1617
        %v1658 = vpack.c.b16 %v1643, %v1642
        %v1659 = vpack.c.b16 %v1645, %v1644
        %v1660 = vpack.c.b16 %v1647, %v1646
        %v1661 = vpack.c.b16 %v1649, %v1648
        %v1662 = vpack.c.b16 %v1651, %v1650
        %v1663 = vpack.c.b16 %v1653, %v1652
        %v1664 = vpack.c.b16 %v1655, %v1654
        %v1665 = vpack.c.b16 %v1657, %v1656
        %v1674 = vunpack.c.l.b16 %v1618
        %v1675 = vunpack.c.l.b16 %v1619
        %v1676 = vunpack.c.l.b16 %v1620
        %v1677 = vunpack.c.l.b16 %v1621
        %v1678 = vunpack.c.l.b16 %v1622
        %v1679 = vunpack.c.l.b16 %v1623
        %v1680 = vunpack.c.l.b16 %v1624
        %v1681 = vunpack.c.l.b16 %v1625
        %v1682 = vpack.c.b16 %v1675, %v1674
        %v1683 = vpack.c.b16 %v1677, %v1676
        %v1684 = vpack.c.b16 %v1679, %v1678
        %v1685 = vpack.c.b16 %v1681, %v1680
        %vm1690 = vcmask 523264
        %v1692 = vsel %vm1690, %v1658, 0
        %v1695 = vsel %vm1690, %v1659, 0
        %v1698 = vsel %vm1690, %v1660, 0
        %v1701 = vsel %vm1690, %v1661, 0
        %v1704 = vsel %vm1690, %v1662, 0
        %v1707 = vsel %vm1690, %v1663, 0
        %v1710 = vsel %vm1690, %v1664, 0
        %v1713 = vsel %vm1690, %v1665, 0
        %1715 = vmatprep.subr.bf16.mxu0 0
        %1716 = vmatpush1.bf16.msra.mxu0 0
        %1717 = vmatprep.subr.bf16.mxu0 0
        %1718 = vmatpush1.bf16.msra.mxu0 0
        %1719 = vmatprep.subr.bf16.mxu0 0
        %1720 = vmatpush1.bf16.msra.mxu0 0
        %1721 = vmatprep.subr.bf16.mxu0 0
        %1722 = vmatpush1.bf16.msra.mxu0 0
        %1723 = vmatprep.subr.bf16.mxu0 0
        %1724 = vmatpush1.bf16.msra.mxu0 %v1685
        %1725 = vmatprep.subr.bf16.mxu0 0
        %1726 = vmatpush1.bf16.msra.mxu0 %v1684
        %1727 = vmatprep.subr.bf16.mxu0 0
        %1728 = vmatpush1.bf16.msra.mxu0 %v1683
        %1729 = vmatprep.subr.bf16.mxu0 0
        %1730 = vmatpush1.bf16.msra.mxu0 %v1682
        %1731 = vmatprep.subr.bf16.mxu0 0
        %1732 = vmatpush2.bf16.msra.mxu0 0
        %1733 = vmatprep.subr.bf16.mxu0 0
        %1734 = vmatpush2.bf16.msra.mxu0 0
        %1735 = vmatprep.subr.bf16.mxu0 0
        %1736 = vmatpush2.bf16.msra.mxu0 0
        %1737 = vmatprep.subr.bf16.mxu0 0
        %1738 = vmatpush2.bf16.msra.mxu0 0
        %1739 = vmatprep.subr.bf16.mxu0 0
        %1740 = vmatpush2.bf16.msra.mxu0 0
        %1741 = vmatprep.subr.bf16.mxu0 0
        %1742 = vmatpush2.bf16.msra.mxu0 0
        %1743 = vmatprep.subr.bf16.mxu0 0
        %1744 = vmatpush2.bf16.msra.mxu0 0
        %1745 = vmatprep.subr.bf16.mxu0 0
        %1746 = vmatpush2.bf16.msra.mxu0 0
        %1747 = vmatprep.mubr.bf16.mxu0 0
        %1748 = vmatmul.mubr.bf16.gmra.mxu0 %v1692
        %v1749 = vpop.f32.mrf.mxu0
        %v1750 = vadd.f32 0.0, %v1749
        %v1751 = vpop.f32.mrf.mxu0
        %v1752 = vpop.f32.mrf.mxu0
        %v1753 = vadd.f32 0.0, %v1752
        %v1754 = vpop.f32.mrf.mxu0
        %1755 = vmatprep.mubr.bf16.mxu0 0
        %1756 = vmatmul.mubr.bf16.gmra.mxu0 %v1695
        %v1757 = vpop.f32.mrf.mxu0
        %v1758 = vadd.f32 0.0, %v1757
        %v1759 = vpop.f32.mrf.mxu0
        %v1760 = vpop.f32.mrf.mxu0
        %v1761 = vadd.f32 0.0, %v1760
        %v1762 = vpop.f32.mrf.mxu0
        %1763 = vmatprep.mubr.bf16.mxu0 0
        %1764 = vmatmul.mubr.bf16.gmra.mxu0 %v1698
        %v1765 = vpop.f32.mrf.mxu0
        %v1766 = vadd.f32 0.0, %v1765
        %v1767 = vpop.f32.mrf.mxu0
        %v1768 = vpop.f32.mrf.mxu0
        %v1769 = vadd.f32 0.0, %v1768
        %v1770 = vpop.f32.mrf.mxu0
        %1771 = vmatprep.mubr.bf16.mxu0 0
        %1772 = vmatmul.mubr.bf16.gmra.mxu0 %v1701
        %v1773 = vpop.f32.mrf.mxu0
        %v1774 = vadd.f32 0.0, %v1773
        %v1775 = vpop.f32.mrf.mxu0
        %v1776 = vpop.f32.mrf.mxu0
        %v1777 = vadd.f32 0.0, %v1776
        %v1778 = vpop.f32.mrf.mxu0
        %1779 = vmatprep.mubr.bf16.mxu0 0
        %1780 = vmatmul.mubr.bf16.gmra.mxu0 %v1704
        %v1781 = vpop.f32.mrf.mxu0
        %v1782 = vadd.f32 0.0, %v1781
        %v1783 = vpop.f32.mrf.mxu0
        %v1784 = vpop.f32.mrf.mxu0
        %v1785 = vadd.f32 0.0, %v1784
        %v1786 = vpop.f32.mrf.mxu0
        %1787 = vmatprep.mubr.bf16.mxu0 0
        %1788 = vmatmul.mubr.bf16.gmra.mxu0 %v1707
        %v1789 = vpop.f32.mrf.mxu0
        %v1790 = vadd.f32 0.0, %v1789
        %v1791 = vpop.f32.mrf.mxu0
        %v1792 = vpop.f32.mrf.mxu0
        %v1793 = vadd.f32 0.0, %v1792
        %v1794 = vpop.f32.mrf.mxu0
        %1795 = vmatprep.mubr.bf16.mxu0 0
        %1796 = vmatmul.mubr.bf16.gmra.mxu0 %v1710
        %v1797 = vpop.f32.mrf.mxu0
        %v1798 = vadd.f32 0.0, %v1797
        %v1799 = vpop.f32.mrf.mxu0
        %v1800 = vpop.f32.mrf.mxu0
        %v1801 = vadd.f32 0.0, %v1800
        %v1802 = vpop.f32.mrf.mxu0
        %1803 = vmatprep.mubr.bf16.mxu0 0
        %1804 = vmatmul.mubr.bf16.gmra.mxu0 %v1713
        %v1805 = vpop.f32.mrf.mxu0
        %v1806 = vadd.f32 0.0, %v1805
        %v1807 = vpop.f32.mrf.mxu0
        %v1808 = vpop.f32.mrf.mxu0
        %v1809 = vadd.f32 0.0, %v1808
        %v1810 = vpop.f32.mrf.mxu0
        %1811 = vdwg.mxu0
        %s1812 = sshra.s32 %s1601, 3
        %s1813 = sand.u32 %s1601, 7
        %s1814 = smul.addr %s1812, 4
        %s1815 = scalar_lea.vmem %s432, %s1814 [#allocation6]
        %v1816 = vld [vmem:[%s1815] sm:$0xf]
        %v1817 = vld [vmem:[%s1815 + $0x4] sm:$0xf]
        %v1818 = vld [vmem:[%s1815 + $0x8] sm:$0xf]
        %v1819 = vld [vmem:[%s1815 + $0xc] sm:$0xf]
        %v1820 = vld [vmem:[%s1815 + $0x10] sm:$0xf]
        %v1821 = vld [vmem:[%s1815 + $0x14] sm:$0xf]
        %v1822 = vld [vmem:[%s1815 + $0x18] sm:$0xf]
        %v1823 = vld [vmem:[%s1815 + $0x1c] sm:$0xf]
        %v1824 = vld [vmem:[%s1815 + $0x20] sm:$0xf]
        %v1825 = vld [vmem:[%s1815 + $0x24] sm:$0xf]
        %v1826 = vld [vmem:[%s1815 + $0x28] sm:$0xf]
        %v1827 = vld [vmem:[%s1815 + $0x2c] sm:$0xf]
        %v1828 = vld [vmem:[%s1815 + $0x30] sm:$0xf]
        %v1829 = vld [vmem:[%s1815 + $0x34] sm:$0xf]
        %v1830 = vld [vmem:[%s1815 + $0x38] sm:$0xf]
        %v1831 = vld [vmem:[%s1815 + $0x3c] sm:$0xf]
        %v1832 = vunpack.c.l.bf16 %v1816
        %v1833 = vunpack.c.l.bf16 %v1817
        %v1834 = vunpack.c.l.bf16 %v1818
        %v1835 = vunpack.c.l.bf16 %v1819
        %v1836 = vunpack.c.l.bf16 %v1820
        %v1837 = vunpack.c.l.bf16 %v1821
        %v1838 = vunpack.c.l.bf16 %v1822
        %v1839 = vunpack.c.l.bf16 %v1823
        %v1840 = vunpack.c.l.bf16 %v1824
        %v1841 = vunpack.c.l.bf16 %v1825
        %v1842 = vunpack.c.l.bf16 %v1826
        %v1843 = vunpack.c.l.bf16 %v1827
        %v1844 = vunpack.c.l.bf16 %v1828
        %v1845 = vunpack.c.l.bf16 %v1829
        %v1846 = vunpack.c.l.bf16 %v1830
        %v1847 = vunpack.c.l.bf16 %v1831
        %v1848 = vpack.c.bf16 %v1753, %v1750
        %v1849 = vpack.c.bf16 %v1761, %v1758
        %v1850 = vpack.c.bf16 %v1769, %v1766
        %v1851 = vpack.c.bf16 %v1777, %v1774
        %v1852 = vpack.c.bf16 %v1785, %v1782
        %v1853 = vpack.c.bf16 %v1793, %v1790
        %v1854 = vpack.c.bf16 %v1801, %v1798
        %v1855 = vpack.c.bf16 %v1809, %v1806
        %v1856 = vld [vmem:[#allocation2] sm:$0xff]
        %v1857 = vld [vmem:[#allocation2 + $0x8] sm:$0xff]
        %v1858 = vld [vmem:[#allocation2 + $0x10] sm:$0xff]
        %v1859 = vld [vmem:[#allocation2 + $0x18] sm:$0xff]
        %v1860 = vld [vmem:[#allocation2 + $0x20] sm:$0xff]
        %v1861 = vld [vmem:[#allocation2 + $0x28] sm:$0xff]
        %v1862 = vld [vmem:[#allocation2 + $0x30] sm:$0xff]
        %v1863 = vld [vmem:[#allocation2 + $0x38] sm:$0xff]
        %v1872 = vunpack.c.l.b16 %v1856
        %v1873 = vunpack.c.h.b16 %v1856
        %v1874 = vunpack.c.l.b16 %v1857
        %v1875 = vunpack.c.h.b16 %v1857
        %v1876 = vunpack.c.l.b16 %v1858
        %v1877 = vunpack.c.h.b16 %v1858
        %v1878 = vunpack.c.l.b16 %v1859
        %v1879 = vunpack.c.h.b16 %v1859
        %v1880 = vunpack.c.l.b16 %v1860
        %v1881 = vunpack.c.h.b16 %v1860
        %v1882 = vunpack.c.l.b16 %v1861
        %v1883 = vunpack.c.h.b16 %v1861
        %v1884 = vunpack.c.l.b16 %v1862
        %v1885 = vunpack.c.h.b16 %v1862
        %v1886 = vunpack.c.l.b16 %v1863
        %v1887 = vunpack.c.h.b16 %v1863
        %v1888 = vpack.c.b16 %v1874, %v1872
        %v1889 = vpack.c.b16 %v1875, %v1873
        %v1890 = vpack.c.b16 %v1878, %v1876
        %v1891 = vpack.c.b16 %v1879, %v1877
        %v1892 = vpack.c.b16 %v1882, %v1880
        %v1893 = vpack.c.b16 %v1883, %v1881
        %v1894 = vpack.c.b16 %v1886, %v1884
        %v1895 = vpack.c.b16 %v1887, %v1885
        %v1905 = vsel %vm1690, %v1848, 0
        %v1908 = vsel %vm1690, %v1849, 0
        %v1911 = vsel %vm1690, %v1850, 0
        %v1914 = vsel %vm1690, %v1851, 0
        %v1917 = vsel %vm1690, %v1852, 0
        %v1920 = vsel %vm1690, %v1853, 0
        %v1923 = vsel %vm1690, %v1854, 0
        %v1926 = vsel %vm1690, %v1855, 0
        %1928 = vmatprep.subr.bf16.mxu0 0
        %1929 = vmatpush1.bf16.msra.mxu0 0
        %1930 = vmatprep.subr.bf16.mxu0 0
        %1931 = vmatpush1.bf16.msra.mxu0 0
        %1932 = vmatprep.subr.bf16.mxu0 0
        %1933 = vmatpush1.bf16.msra.mxu0 0
        %1934 = vmatprep.subr.bf16.mxu0 0
        %1935 = vmatpush1.bf16.msra.mxu0 0
        %1936 = vmatprep.subr.bf16.mxu0 %v1895
        %1937 = vmatpush1.bf16.msra.mxu0 %v1894
        %1938 = vmatprep.subr.bf16.mxu0 %v1893
        %1939 = vmatpush1.bf16.msra.mxu0 %v1892
        %1940 = vmatprep.subr.bf16.mxu0 %v1891
        %1941 = vmatpush1.bf16.msra.mxu0 %v1890
        %1942 = vmatprep.subr.bf16.mxu0 %v1889
        %1943 = vmatpush1.bf16.msra.mxu0 %v1888
        %1944 = vmatprep.subr.bf16.mxu0 0
        %1945 = vmatpush2.bf16.msra.mxu0 0
        %1946 = vmatprep.subr.bf16.mxu0 0
        %1947 = vmatpush2.bf16.msra.mxu0 0
        %1948 = vmatprep.subr.bf16.mxu0 0
        %1949 = vmatpush2.bf16.msra.mxu0 0
        %1950 = vmatprep.subr.bf16.mxu0 0
        %1951 = vmatpush2.bf16.msra.mxu0 0
        %1952 = vmatprep.subr.bf16.mxu0 0
        %1953 = vmatpush2.bf16.msra.mxu0 0
        %1954 = vmatprep.subr.bf16.mxu0 0
        %1955 = vmatpush2.bf16.msra.mxu0 0
        %1956 = vmatprep.subr.bf16.mxu0 0
        %1957 = vmatpush2.bf16.msra.mxu0 0
        %1958 = vmatprep.subr.bf16.mxu0 0
        %1959 = vmatpush2.bf16.msra.mxu0 0
        %1960 = vmatprep.mubr.bf16.mxu0 0
        %1961 = vmatmul.mubr.bf16.gmra.mxu0 %v1905
        %v1962 = vpop.f32.mrf.mxu0
        %v1963 = vadd.f32 0.0, %v1962
        %v1964 = vpop.f32.mrf.mxu0
        %v1965 = vadd.f32 0.0, %v1964
        %v1966 = vpop.f32.mrf.mxu0
        %v1967 = vadd.f32 0.0, %v1966
        %v1968 = vpop.f32.mrf.mxu0
        %v1969 = vadd.f32 0.0, %v1968
        %1970 = vmatprep.mubr.bf16.mxu0 0
        %1971 = vmatmul.mubr.bf16.gmra.mxu0 %v1908
        %v1972 = vpop.f32.mrf.mxu0
        %v1973 = vadd.f32 0.0, %v1972
        %v1974 = vpop.f32.mrf.mxu0
        %v1975 = vadd.f32 0.0, %v1974
        %v1976 = vpop.f32.mrf.mxu0
        %v1977 = vadd.f32 0.0, %v1976
        %v1978 = vpop.f32.mrf.mxu0
        %v1979 = vadd.f32 0.0, %v1978
        %1980 = vmatprep.mubr.bf16.mxu0 0
        %1981 = vmatmul.mubr.bf16.gmra.mxu0 %v1911
        %v1982 = vpop.f32.mrf.mxu0
        %v1983 = vadd.f32 0.0, %v1982
        %v1984 = vpop.f32.mrf.mxu0
        %v1985 = vadd.f32 0.0, %v1984
        %v1986 = vpop.f32.mrf.mxu0
        %v1987 = vadd.f32 0.0, %v1986
        %v1988 = vpop.f32.mrf.mxu0
        %v1989 = vadd.f32 0.0, %v1988
        %1990 = vmatprep.mubr.bf16.mxu0 0
        %1991 = vmatmul.mubr.bf16.gmra.mxu0 %v1914
        %v1992 = vpop.f32.mrf.mxu0
        %v1993 = vadd.f32 0.0, %v1992
        %v1994 = vpop.f32.mrf.mxu0
        %v1995 = vadd.f32 0.0, %v1994
        %v1996 = vpop.f32.mrf.mxu0
        %v1997 = vadd.f32 0.0, %v1996
        %v1998 = vpop.f32.mrf.mxu0
        %v1999 = vadd.f32 0.0, %v1998
        %2000 = vmatprep.mubr.bf16.mxu0 0
        %2001 = vmatmul.mubr.bf16.gmra.mxu0 %v1917
        %v2002 = vpop.f32.mrf.mxu0
        %v2003 = vadd.f32 0.0, %v2002
        %v2004 = vpop.f32.mrf.mxu0
        %v2005 = vadd.f32 0.0, %v2004
        %v2006 = vpop.f32.mrf.mxu0
        %v2007 = vadd.f32 0.0, %v2006
        %v2008 = vpop.f32.mrf.mxu0
        %v2009 = vadd.f32 0.0, %v2008
        %2010 = vmatprep.mubr.bf16.mxu0 0
        %2011 = vmatmul.mubr.bf16.gmra.mxu0 %v1920
        %v2012 = vpop.f32.mrf.mxu0
        %v2013 = vadd.f32 0.0, %v2012
        %v2014 = vpop.f32.mrf.mxu0
        %v2015 = vadd.f32 0.0, %v2014
        %v2016 = vpop.f32.mrf.mxu0
        %v2017 = vadd.f32 0.0, %v2016
        %v2018 = vpop.f32.mrf.mxu0
        %v2019 = vadd.f32 0.0, %v2018
        %2020 = vmatprep.mubr.bf16.mxu0 0
        %2021 = vmatmul.mubr.bf16.gmra.mxu0 %v1923
        %v2022 = vpop.f32.mrf.mxu0
        %v2023 = vadd.f32 0.0, %v2022
        %v2024 = vpop.f32.mrf.mxu0
        %v2025 = vadd.f32 0.0, %v2024
        %v2026 = vpop.f32.mrf.mxu0
        %v2027 = vadd.f32 0.0, %v2026
        %v2028 = vpop.f32.mrf.mxu0
        %v2029 = vadd.f32 0.0, %v2028
        %2030 = vmatprep.mubr.bf16.mxu0 0
        %2031 = vmatmul.mubr.bf16.gmra.mxu0 %v1926
        %v2032 = vpop.f32.mrf.mxu0
        %v2033 = vadd.f32 0.0, %v2032
        %v2034 = vpop.f32.mrf.mxu0
        %v2035 = vadd.f32 0.0, %v2034
        %v2036 = vpop.f32.mrf.mxu0
        %v2037 = vadd.f32 0.0, %v2036
        %v2038 = vpop.f32.mrf.mxu0
        %v2039 = vadd.f32 0.0, %v2038
        %2040 = vdwg.mxu0
        %v2041 = vmax.f32 %v1963, %v1965
        %2042 = vmax.xlane.f32.xlu0 %v2041
        %v2043 = vpop.xlane.xlu0 %2042
        %v2044 = vmax.f32 %v1967, %v1969
        %2045 = vmax.xlane.f32.xlu0 %v2044
        %v2046 = vpop.xlane.xlu0 %2045
        %v2047 = vmax.f32 %v1973, %v1975
        %2048 = vmax.xlane.f32.xlu0 %v2047
        %v2049 = vpop.xlane.xlu0 %2048
        %v2050 = vmax.f32 %v1977, %v1979
        %2051 = vmax.xlane.f32.xlu0 %v2050
        %v2052 = vpop.xlane.xlu0 %2051
        %v2053 = vmax.f32 %v1983, %v1985
        %2054 = vmax.xlane.f32.xlu0 %v2053
        %v2055 = vpop.xlane.xlu0 %2054
        %v2056 = vmax.f32 %v1987, %v1989
        %2057 = vmax.xlane.f32.xlu0 %v2056
        %v2058 = vpop.xlane.xlu0 %2057
        %v2059 = vmax.f32 %v1993, %v1995
        %2060 = vmax.xlane.f32.xlu0 %v2059
        %v2061 = vpop.xlane.xlu0 %2060
        %v2062 = vmax.f32 %v1997, %v1999
        %2063 = vmax.xlane.f32.xlu0 %v2062
        %v2064 = vpop.xlane.xlu0 %2063
        %v2065 = vmax.f32 %v2003, %v2005
        %2066 = vmax.xlane.f32.xlu0 %v2065
        %v2067 = vpop.xlane.xlu0 %2066
        %v2068 = vmax.f32 %v2007, %v2009
        %2069 = vmax.xlane.f32.xlu0 %v2068
        %v2070 = vpop.xlane.xlu0 %2069
        %v2071 = vmax.f32 %v2013, %v2015
        %2072 = vmax.xlane.f32.xlu0 %v2071
        %v2073 = vpop.xlane.xlu0 %2072
        %v2074 = vmax.f32 %v2017, %v2019
        %2075 = vmax.xlane.f32.xlu0 %v2074
        %v2076 = vpop.xlane.xlu0 %2075
        %v2077 = vmax.f32 %v2023, %v2025
        %2078 = vmax.xlane.f32.xlu0 %v2077
        %v2079 = vpop.xlane.xlu0 %2078
        %v2080 = vmax.f32 %v2027, %v2029
        %2081 = vmax.xlane.f32.xlu0 %v2080
        %v2082 = vpop.xlane.xlu0 %2081
        %v2083 = vmax.f32 %v2033, %v2035
        %2084 = vmax.xlane.f32.xlu0 %v2083
        %v2085 = vpop.xlane.xlu0 %2084
        %v2086 = vmax.f32 %v2037, %v2039
        %2087 = vmax.xlane.f32.xlu0 %v2086
        %v2088 = vpop.xlane.xlu0 %2087
        %v2089 = vsub.f32 %v1963, %v2043
        %v2090 = vsub.f32 %v1965, %v2043
        %v2091 = vsub.f32 %v1967, %v2046
        %v2092 = vsub.f32 %v1969, %v2046
        %v2093 = vsub.f32 %v1973, %v2049
        %v2094 = vsub.f32 %v1975, %v2049
        %v2095 = vsub.f32 %v1977, %v2052
        %v2096 = vsub.f32 %v1979, %v2052
        %v2097 = vsub.f32 %v1983, %v2055
        %v2098 = vsub.f32 %v1985, %v2055
        %v2099 = vsub.f32 %v1987, %v2058
        %v2100 = vsub.f32 %v1989, %v2058
        %v2101 = vsub.f32 %v1993, %v2061
        %v2102 = vsub.f32 %v1995, %v2061
        %v2103 = vsub.f32 %v1997, %v2064
        %v2104 = vsub.f32 %v1999, %v2064
        %v2105 = vsub.f32 %v2003, %v2067
        %v2106 = vsub.f32 %v2005, %v2067
        %v2107 = vsub.f32 %v2007, %v2070
        %v2108 = vsub.f32 %v2009, %v2070
        %v2109 = vsub.f32 %v2013, %v2073
        %v2110 = vsub.f32 %v2015, %v2073
        %v2111 = vsub.f32 %v2017, %v2076
        %v2112 = vsub.f32 %v2019, %v2076
        %v2113 = vsub.f32 %v2023, %v2079
        %v2114 = vsub.f32 %v2025, %v2079
        %v2115 = vsub.f32 %v2027, %v2082
        %v2116 = vsub.f32 %v2029, %v2082
        %v2117 = vsub.f32 %v2033, %v2085
        %v2118 = vsub.f32 %v2035, %v2085
        %v2119 = vsub.f32 %v2037, %v2088
        %v2120 = vsub.f32 %v2039, %v2088
        %v2121 = vmul.f32 %v2089, 1.442695
        %v2122 = vpow.pop %v2121
        %v2123 = vmul.f32 %v2090, 1.442695
        %v2124 = vpow.pop %v2123
        %v2125 = vmul.f32 %v2091, 1.442695
        %v2126 = vpow.pop %v2125
        %v2127 = vmul.f32 %v2092, 1.442695
        %v2128 = vpow.pop %v2127
        %v2129 = vmul.f32 %v2093, 1.442695
        %v2130 = vpow.pop %v2129
        %v2131 = vmul.f32 %v2094, 1.442695
        %v2132 = vpow.pop %v2131
        %v2133 = vmul.f32 %v2095, 1.442695
        %v2134 = vpow.pop %v2133
        %v2135 = vmul.f32 %v2096, 1.442695
        %v2136 = vpow.pop %v2135
        %v2137 = vmul.f32 %v2097, 1.442695
        %v2138 = vpow.pop %v2137
        %v2139 = vmul.f32 %v2098, 1.442695
        %v2140 = vpow.pop %v2139
        %v2141 = vmul.f32 %v2099, 1.442695
        %v2142 = vpow.pop %v2141
        %v2143 = vmul.f32 %v2100, 1.442695
        %v2144 = vpow.pop %v2143
        %v2145 = vmul.f32 %v2101, 1.442695
        %v2146 = vpow.pop %v2145
        %v2147 = vmul.f32 %v2102, 1.442695
        %v2148 = vpow.pop %v2147
        %v2149 = vmul.f32 %v2103, 1.442695
        %v2150 = vpow.pop %v2149
        %v2151 = vmul.f32 %v2104, 1.442695
        %v2152 = vpow.pop %v2151
        %v2153 = vmul.f32 %v2105, 1.442695
        %v2154 = vpow.pop %v2153
        %v2155 = vmul.f32 %v2106, 1.442695
        %v2156 = vpow.pop %v2155
        %v2157 = vmul.f32 %v2107, 1.442695
        %v2158 = vpow.pop %v2157
        %v2159 = vmul.f32 %v2108, 1.442695
        %v2160 = vpow.pop %v2159
        %v2161 = vmul.f32 %v2109, 1.442695
        %v2162 = vpow.pop %v2161
        %v2163 = vmul.f32 %v2110, 1.442695
        %v2164 = vpow.pop %v2163
        %v2165 = vmul.f32 %v2111, 1.442695
        %v2166 = vpow.pop %v2165
        %v2167 = vmul.f32 %v2112, 1.442695
        %v2168 = vpow.pop %v2167
        %v2169 = vmul.f32 %v2113, 1.442695
        %v2170 = vpow.pop %v2169
        %v2171 = vmul.f32 %v2114, 1.442695
        %v2172 = vpow.pop %v2171
        %v2173 = vmul.f32 %v2115, 1.442695
        %v2174 = vpow.pop %v2173
        %v2175 = vmul.f32 %v2116, 1.442695
        %v2176 = vpow.pop %v2175
        %v2177 = vmul.f32 %v2117, 1.442695
        %v2178 = vpow.pop %v2177
        %v2179 = vmul.f32 %v2118, 1.442695
        %v2180 = vpow.pop %v2179
        %v2181 = vmul.f32 %v2119, 1.442695
        %v2182 = vpow.pop %v2181
        %v2183 = vmul.f32 %v2120, 1.442695
        %v2184 = vpow.pop %v2183
        %v2185 = vadd.f32 %v2122, %v2124
        %2186 = vadd.xlane.f32.xlu0 %v2185
        %v2187 = vpop.xlane.xlu0 %2186
        %v2188 = vadd.f32 %v2126, %v2128
        %2189 = vadd.xlane.f32.xlu0 %v2188
        %v2190 = vpop.xlane.xlu0 %2189
        %v2191 = vadd.f32 %v2130, %v2132
        %2192 = vadd.xlane.f32.xlu0 %v2191
        %v2193 = vpop.xlane.xlu0 %2192
        %v2194 = vadd.f32 %v2134, %v2136
        %2195 = vadd.xlane.f32.xlu0 %v2194
        %v2196 = vpop.xlane.xlu0 %2195
        %v2197 = vadd.f32 %v2138, %v2140
        %2198 = vadd.xlane.f32.xlu0 %v2197
        %v2199 = vpop.xlane.xlu0 %2198
        %v2200 = vadd.f32 %v2142, %v2144
        %2201 = vadd.xlane.f32.xlu0 %v2200
        %v2202 = vpop.xlane.xlu0 %2201
        %v2203 = vadd.f32 %v2146, %v2148
        %2204 = vadd.xlane.f32.xlu0 %v2203
        %v2205 = vpop.xlane.xlu0 %2204
        %v2206 = vadd.f32 %v2150, %v2152
        %2207 = vadd.xlane.f32.xlu0 %v2206
        %v2208 = vpop.xlane.xlu0 %2207
        %v2209 = vadd.f32 %v2154, %v2156
        %2210 = vadd.xlane.f32.xlu0 %v2209
        %v2211 = vpop.xlane.xlu0 %2210
        %v2212 = vadd.f32 %v2158, %v2160
        %2213 = vadd.xlane.f32.xlu0 %v2212
        %v2214 = vpop.xlane.xlu0 %2213
        %v2215 = vadd.f32 %v2162, %v2164
        %2216 = vadd.xlane.f32.xlu0 %v2215
        %v2217 = vpop.xlane.xlu0 %2216
        %v2218 = vadd.f32 %v2166, %v2168
        %2219 = vadd.xlane.f32.xlu0 %v2218
        %v2220 = vpop.xlane.xlu0 %2219
        %v2221 = vadd.f32 %v2170, %v2172
        %2222 = vadd.xlane.f32.xlu0 %v2221
        %v2223 = vpop.xlane.xlu0 %2222
        %v2224 = vadd.f32 %v2174, %v2176
        %2225 = vadd.xlane.f32.xlu0 %v2224
        %v2226 = vpop.xlane.xlu0 %2225
        %v2227 = vadd.f32 %v2178, %v2180
        %2228 = vadd.xlane.f32.xlu0 %v2227
        %v2229 = vpop.xlane.xlu0 %2228
        %v2230 = vadd.f32 %v2182, %v2184
        %2231 = vadd.xlane.f32.xlu0 %v2230
        %v2232 = vpop.xlane.xlu0 %2231
        %v2233 = vrcp.pop %v2187
        %v2234 = vrcp.pop %v2190
        %v2235 = vrcp.pop %v2193
        %v2236 = vrcp.pop %v2196
        %v2237 = vrcp.pop %v2199
        %v2238 = vrcp.pop %v2202
        %v2239 = vrcp.pop %v2205
        %v2240 = vrcp.pop %v2208
        %v2241 = vrcp.pop %v2211
        %v2242 = vrcp.pop %v2214
        %v2243 = vrcp.pop %v2217
        %v2244 = vrcp.pop %v2220
        %v2245 = vrcp.pop %v2223
        %v2246 = vrcp.pop %v2226
        %v2247 = vrcp.pop %v2229
        %v2248 = vrcp.pop %v2232
        %v2249 = vmul.f32 %v2122, %v2233
        %v2250 = vmul.f32 %v2124, %v2233
        %v2251 = vmul.f32 %v2126, %v2234
        %v2252 = vmul.f32 %v2128, %v2234
        %v2253 = vmul.f32 %v2130, %v2235
        %v2254 = vmul.f32 %v2132, %v2235
        %v2255 = vmul.f32 %v2134, %v2236
        %v2256 = vmul.f32 %v2136, %v2236
        %v2257 = vmul.f32 %v2138, %v2237
        %v2258 = vmul.f32 %v2140, %v2237
        %v2259 = vmul.f32 %v2142, %v2238
        %v2260 = vmul.f32 %v2144, %v2238
        %v2261 = vmul.f32 %v2146, %v2239
        %v2262 = vmul.f32 %v2148, %v2239
        %v2263 = vmul.f32 %v2150, %v2240
        %v2264 = vmul.f32 %v2152, %v2240
        %v2265 = vmul.f32 %v2154, %v2241
        %v2266 = vmul.f32 %v2156, %v2241
        %v2267 = vmul.f32 %v2158, %v2242
        %v2268 = vmul.f32 %v2160, %v2242
        %v2269 = vmul.f32 %v2162, %v2243
        %v2270 = vmul.f32 %v2164, %v2243
        %v2271 = vmul.f32 %v2166, %v2244
        %v2272 = vmul.f32 %v2168, %v2244
        %v2273 = vmul.f32 %v2170, %v2245
        %v2274 = vmul.f32 %v2172, %v2245
        %v2275 = vmul.f32 %v2174, %v2246
        %v2276 = vmul.f32 %v2176, %v2246
        %v2277 = vmul.f32 %v2178, %v2247
        %v2278 = vmul.f32 %v2180, %v2247
        %v2279 = vmul.f32 %v2182, %v2248
        %v2280 = vmul.f32 %v2184, %v2248
        %v2281 = vpack.c.bf16 %v2251, %v2249
        %v2282 = vpack.c.bf16 %v2252, %v2250
        %v2283 = vpack.c.bf16 %v2255, %v2253
        %v2284 = vpack.c.bf16 %v2256, %v2254
        %v2285 = vpack.c.bf16 %v2259, %v2257
        %v2286 = vpack.c.bf16 %v2260, %v2258
        %v2287 = vpack.c.bf16 %v2263, %v2261
        %v2288 = vpack.c.bf16 %v2264, %v2262
        %v2289 = vpack.c.bf16 %v2267, %v2265
        %v2290 = vpack.c.bf16 %v2268, %v2266
        %v2291 = vpack.c.bf16 %v2271, %v2269
        %v2292 = vpack.c.bf16 %v2272, %v2270
        %v2293 = vpack.c.bf16 %v2275, %v2273
        %v2294 = vpack.c.bf16 %v2276, %v2274
        %v2295 = vpack.c.bf16 %v2279, %v2277
        %v2296 = vpack.c.bf16 %v2280, %v2278
        %v2297 = vld [vmem:[#allocation3] sm:$0xf]
        %v2298 = vld [vmem:[#allocation3 + $0x4] sm:$0xf]
        %v2299 = vld [vmem:[#allocation3 + $0x8] sm:$0xf]
        %v2300 = vld [vmem:[#allocation3 + $0xc] sm:$0xf]
        %v2301 = vld [vmem:[#allocation3 + $0x10] sm:$0xf]
        %v2302 = vld [vmem:[#allocation3 + $0x14] sm:$0xf]
        %v2303 = vld [vmem:[#allocation3 + $0x18] sm:$0xf]
        %v2304 = vld [vmem:[#allocation3 + $0x1c] sm:$0xf]
        %v2305 = vld [vmem:[#allocation3 + $0x20] sm:$0xf]
        %v2306 = vld [vmem:[#allocation3 + $0x24] sm:$0xf]
        %v2307 = vld [vmem:[#allocation3 + $0x28] sm:$0xf]
        %v2308 = vld [vmem:[#allocation3 + $0x2c] sm:$0xf]
        %v2309 = vld [vmem:[#allocation3 + $0x30] sm:$0xf]
        %v2310 = vld [vmem:[#allocation3 + $0x34] sm:$0xf]
        %v2311 = vld [vmem:[#allocation3 + $0x38] sm:$0xf]
        %v2312 = vld [vmem:[#allocation3 + $0x3c] sm:$0xf]
        %v2313 = vld [vmem:[#allocation3 + $0x40] sm:$0xf]
        %v2314 = vld [vmem:[#allocation3 + $0x44] sm:$0xf]
        %v2315 = vld [vmem:[#allocation3 + $0x48] sm:$0xf]
        %v2316 = vld [vmem:[#allocation3 + $0x4c] sm:$0xf]
        %v2317 = vld [vmem:[#allocation3 + $0x50] sm:$0xf]
        %v2318 = vld [vmem:[#allocation3 + $0x54] sm:$0xf]
        %v2319 = vld [vmem:[#allocation3 + $0x58] sm:$0xf]
        %v2320 = vld [vmem:[#allocation3 + $0x5c] sm:$0xf]
        %v2321 = vld [vmem:[#allocation3 + $0x60] sm:$0xf]
        %v2322 = vld [vmem:[#allocation3 + $0x64] sm:$0xf]
        %v2323 = vld [vmem:[#allocation3 + $0x68] sm:$0xf]
        %v2324 = vld [vmem:[#allocation3 + $0x6c] sm:$0xf]
        %v2325 = vld [vmem:[#allocation3 + $0x70] sm:$0xf]
        %v2326 = vld [vmem:[#allocation3 + $0x74] sm:$0xf]
        %v2327 = vld [vmem:[#allocation3 + $0x78] sm:$0xf]
        %v2328 = vld [vmem:[#allocation3 + $0x7c] sm:$0xf]
        %v2361 = vunpack.c.l.b16 %v2297
        %v2362 = vunpack.c.l.b16 %v2298
        %v2363 = vunpack.c.l.b16 %v2299
        %v2364 = vunpack.c.l.b16 %v2300
        %v2365 = vunpack.c.l.b16 %v2301
        %v2366 = vunpack.c.l.b16 %v2302
        %v2367 = vunpack.c.l.b16 %v2303
        %v2368 = vunpack.c.l.b16 %v2304
        %v2369 = vunpack.c.l.b16 %v2305
        %v2370 = vunpack.c.l.b16 %v2306
        %v2371 = vunpack.c.l.b16 %v2307
        %v2372 = vunpack.c.l.b16 %v2308
        %v2373 = vunpack.c.l.b16 %v2309
        %v2374 = vunpack.c.l.b16 %v2310
        %v2375 = vunpack.c.l.b16 %v2311
        %v2376 = vunpack.c.l.b16 %v2312
        %v2377 = vunpack.c.l.b16 %v2313
        %v2378 = vunpack.c.l.b16 %v2314
        %v2379 = vunpack.c.l.b16 %v2315
        %v2380 = vunpack.c.l.b16 %v2316
        %v2381 = vunpack.c.l.b16 %v2317
        %v2382 = vunpack.c.l.b16 %v2318
        %v2383 = vunpack.c.l.b16 %v2319
        %v2384 = vunpack.c.l.b16 %v2320
        %v2385 = vunpack.c.l.b16 %v2321
        %v2386 = vunpack.c.l.b16 %v2322
        %v2387 = vunpack.c.l.b16 %v2323
        %v2388 = vunpack.c.l.b16 %v2324
        %v2389 = vunpack.c.l.b16 %v2325
        %v2390 = vunpack.c.l.b16 %v2326
        %v2391 = vunpack.c.l.b16 %v2327
        %v2392 = vunpack.c.l.b16 %v2328
        %v2393 = vpack.c.b16 %v2362, %v2361
        %v2394 = vpack.c.b16 %v2364, %v2363
        %v2395 = vpack.c.b16 %v2366, %v2365
        %v2396 = vpack.c.b16 %v2368, %v2367
        %v2397 = vpack.c.b16 %v2370, %v2369
        %v2398 = vpack.c.b16 %v2372, %v2371
        %v2399 = vpack.c.b16 %v2374, %v2373
        %v2400 = vpack.c.b16 %v2376, %v2375
        %v2401 = vpack.c.b16 %v2378, %v2377
        %v2402 = vpack.c.b16 %v2380, %v2379
        %v2403 = vpack.c.b16 %v2382, %v2381
        %v2404 = vpack.c.b16 %v2384, %v2383
        %v2405 = vpack.c.b16 %v2386, %v2385
        %v2406 = vpack.c.b16 %v2388, %v2387
        %v2407 = vpack.c.b16 %v2390, %v2389
        %v2408 = vpack.c.b16 %v2392, %v2391
        %2425 = vmatprep.subr.bf16.mxu0 0
        %2426 = vmatpush1.bf16.msra.mxu0 %v2400
        %2427 = vmatprep.subr.bf16.mxu0 0
        %2428 = vmatpush1.bf16.msra.mxu0 %v2399
        %2429 = vmatprep.subr.bf16.mxu0 0
        %2430 = vmatpush1.bf16.msra.mxu0 %v2398
        %2431 = vmatprep.subr.bf16.mxu0 0
        %2432 = vmatpush1.bf16.msra.mxu0 %v2397
        %2433 = vmatprep.subr.bf16.mxu0 0
        %2434 = vmatpush1.bf16.msra.mxu0 %v2396
        %2435 = vmatprep.subr.bf16.mxu0 0
        %2436 = vmatpush1.bf16.msra.mxu0 %v2395
        %2437 = vmatprep.subr.bf16.mxu0 0
        %2438 = vmatpush1.bf16.msra.mxu0 %v2394
        %2439 = vmatprep.subr.bf16.mxu0 0
        %2440 = vmatpush1.bf16.msra.mxu0 %v2393
        %2441 = vmatprep.subr.bf16.mxu0 0
        %2442 = vmatpush2.bf16.msra.mxu0 %v2408
        %2443 = vmatprep.subr.bf16.mxu0 0
        %2444 = vmatpush2.bf16.msra.mxu0 %v2407
        %2445 = vmatprep.subr.bf16.mxu0 0
        %2446 = vmatpush2.bf16.msra.mxu0 %v2406
        %2447 = vmatprep.subr.bf16.mxu0 0
        %2448 = vmatpush2.bf16.msra.mxu0 %v2405
        %2449 = vmatprep.subr.bf16.mxu0 0
        %2450 = vmatpush2.bf16.msra.mxu0 %v2404
        %2451 = vmatprep.subr.bf16.mxu0 0
        %2452 = vmatpush2.bf16.msra.mxu0 %v2403
        %2453 = vmatprep.subr.bf16.mxu0 0
        %2454 = vmatpush2.bf16.msra.mxu0 %v2402
        %2455 = vmatprep.subr.bf16.mxu0 0
        %2456 = vmatpush2.bf16.msra.mxu0 %v2401
        %2457 = vmatprep.mubr.bf16.mxu0 %v2282
        %2458 = vmatmul.mubr.bf16.gmra.mxu0 %v2281
        %v2459 = vpop.f32.mrf.mxu0
        %v2460 = vadd.f32 0.0, %v2459
        %v2461 = vpop.f32.mrf.mxu0
        %v2462 = vpop.f32.mrf.mxu0
        %v2463 = vadd.f32 0.0, %v2462
        %v2464 = vpop.f32.mrf.mxu0
        %2465 = vmatprep.mubr.bf16.mxu0 %v2284
        %2466 = vmatmul.mubr.bf16.gmra.mxu0 %v2283
        %v2467 = vpop.f32.mrf.mxu0
        %v2468 = vadd.f32 0.0, %v2467
        %v2469 = vpop.f32.mrf.mxu0
        %v2470 = vpop.f32.mrf.mxu0
        %v2471 = vadd.f32 0.0, %v2470
        %v2472 = vpop.f32.mrf.mxu0
        %2473 = vmatprep.mubr.bf16.mxu0 %v2286
        %2474 = vmatmul.mubr.bf16.gmra.mxu0 %v2285
        %v2475 = vpop.f32.mrf.mxu0
        %v2476 = vadd.f32 0.0, %v2475
        %v2477 = vpop.f32.mrf.mxu0
        %v2478 = vpop.f32.mrf.mxu0
        %v2479 = vadd.f32 0.0, %v2478
        %v2480 = vpop.f32.mrf.mxu0
        %2481 = vmatprep.mubr.bf16.mxu0 %v2288
        %2482 = vmatmul.mubr.bf16.gmra.mxu0 %v2287
        %v2483 = vpop.f32.mrf.mxu0
        %v2484 = vadd.f32 0.0, %v2483
        %v2485 = vpop.f32.mrf.mxu0
        %v2486 = vpop.f32.mrf.mxu0
        %v2487 = vadd.f32 0.0, %v2486
        %v2488 = vpop.f32.mrf.mxu0
        %2489 = vmatprep.mubr.bf16.mxu0 %v2290
        %2490 = vmatmul.mubr.bf16.gmra.mxu0 %v2289
        %v2491 = vpop.f32.mrf.mxu0
        %v2492 = vadd.f32 0.0, %v2491
        %v2493 = vpop.f32.mrf.mxu0
        %v2494 = vpop.f32.mrf.mxu0
        %v2495 = vadd.f32 0.0, %v2494
        %v2496 = vpop.f32.mrf.mxu0
        %2497 = vmatprep.mubr.bf16.mxu0 %v2292
        %2498 = vmatmul.mubr.bf16.gmra.mxu0 %v2291
        %v2499 = vpop.f32.mrf.mxu0
        %v2500 = vadd.f32 0.0, %v2499
        %v2501 = vpop.f32.mrf.mxu0
        %v2502 = vpop.f32.mrf.mxu0
        %v2503 = vadd.f32 0.0, %v2502
        %v2504 = vpop.f32.mrf.mxu0
        %2505 = vmatprep.mubr.bf16.mxu0 %v2294
        %2506 = vmatmul.mubr.bf16.gmra.mxu0 %v2293
        %v2507 = vpop.f32.mrf.mxu0
        %v2508 = vadd.f32 0.0, %v2507
        %v2509 = vpop.f32.mrf.mxu0
        %v2510 = vpop.f32.mrf.mxu0
        %v2511 = vadd.f32 0.0, %v2510
        %v2512 = vpop.f32.mrf.mxu0
        %2513 = vmatprep.mubr.bf16.mxu0 %v2296
        %2514 = vmatmul.mubr.bf16.gmra.mxu0 %v2295
        %v2515 = vpop.f32.mrf.mxu0
        %v2516 = vadd.f32 0.0, %v2515
        %v2517 = vpop.f32.mrf.mxu0
        %v2518 = vpop.f32.mrf.mxu0
        %v2519 = vadd.f32 0.0, %v2518
        %v2520 = vpop.f32.mrf.mxu0
        %2521 = vdwg.mxu0
        %v2522 = vpack.c.bf16 %v2463, %v2460
        %v2523 = vpack.c.bf16 %v2471, %v2468
        %v2524 = vpack.c.bf16 %v2479, %v2476
        %v2525 = vpack.c.bf16 %v2487, %v2484
        %v2526 = vpack.c.bf16 %v2495, %v2492
        %v2527 = vpack.c.bf16 %v2503, %v2500
        %v2528 = vpack.c.bf16 %v2511, %v2508
        %v2529 = vpack.c.bf16 %v2519, %v2516
        %v2530 = vld [vmem:[%s6] sm:$0xf]
        %v2531 = vld [vmem:[%s6 + $0x4] sm:$0xf]
        %v2532 = vld [vmem:[%s6 + $0x8] sm:$0xf]
        %v2533 = vld [vmem:[%s6 + $0xc] sm:$0xf]
        %v2534 = vld [vmem:[%s6 + $0x10] sm:$0xf]
        %v2535 = vld [vmem:[%s6 + $0x14] sm:$0xf]
        %v2536 = vld [vmem:[%s6 + $0x18] sm:$0xf]
        %v2537 = vld [vmem:[%s6 + $0x1c] sm:$0xf]
        %v2546 = vunpack.c.l.b16 %v2530
        %v2547 = vunpack.c.l.b16 %v2531
        %v2548 = vunpack.c.l.b16 %v2532
        %v2549 = vunpack.c.l.b16 %v2533
        %v2550 = vunpack.c.l.b16 %v2534
        %v2551 = vunpack.c.l.b16 %v2535
        %v2552 = vunpack.c.l.b16 %v2536
        %v2553 = vunpack.c.l.b16 %v2537
        %v2554 = vpack.c.b16 %v2547, %v2546
        %v2555 = vpack.c.b16 %v2549, %v2548
        %v2556 = vpack.c.b16 %v2551, %v2550
        %v2557 = vpack.c.b16 %v2553, %v2552
        %v2563 = vsel %vm1690, %v2522, 0
        %v2566 = vsel %vm1690, %v2523, 0
        %v2569 = vsel %vm1690, %v2524, 0
        %v2572 = vsel %vm1690, %v2525, 0
        %v2575 = vsel %vm1690, %v2526, 0
        %v2578 = vsel %vm1690, %v2527, 0
        %v2581 = vsel %vm1690, %v2528, 0
        %v2584 = vsel %vm1690, %v2529, 0
        %2586 = vmatprep.subr.bf16.mxu0 0
        %2587 = vmatpush1.bf16.msra.mxu0 0
        %2588 = vmatprep.subr.bf16.mxu0 0
        %2589 = vmatpush1.bf16.msra.mxu0 0
        %2590 = vmatprep.subr.bf16.mxu0 0
        %2591 = vmatpush1.bf16.msra.mxu0 0
        %2592 = vmatprep.subr.bf16.mxu0 0
        %2593 = vmatpush1.bf16.msra.mxu0 0
        %2594 = vmatprep.subr.bf16.mxu0 0
        %2595 = vmatpush1.bf16.msra.mxu0 %v2557
        %2596 = vmatprep.subr.bf16.mxu0 0
        %2597 = vmatpush1.bf16.msra.mxu0 %v2556
        %2598 = vmatprep.subr.bf16.mxu0 0
        %2599 = vmatpush1.bf16.msra.mxu0 %v2555
        %2600 = vmatprep.subr.bf16.mxu0 0
        %2601 = vmatpush1.bf16.msra.mxu0 %v2554
        %2602 = vmatprep.subr.bf16.mxu0 0
        %2603 = vmatpush2.bf16.msra.mxu0 0
        %2604 = vmatprep.subr.bf16.mxu0 0
        %2605 = vmatpush2.bf16.msra.mxu0 0
        %2606 = vmatprep.subr.bf16.mxu0 0
        %2607 = vmatpush2.bf16.msra.mxu0 0
        %2608 = vmatprep.subr.bf16.mxu0 0
        %2609 = vmatpush2.bf16.msra.mxu0 0
        %2610 = vmatprep.subr.bf16.mxu0 0
        %2611 = vmatpush2.bf16.msra.mxu0 0
        %2612 = vmatprep.subr.bf16.mxu0 0
        %2613 = vmatpush2.bf16.msra.mxu0 0
        %2614 = vmatprep.subr.bf16.mxu0 0
        %2615 = vmatpush2.bf16.msra.mxu0 0
        %2616 = vmatprep.subr.bf16.mxu0 0
        %2617 = vmatpush2.bf16.msra.mxu0 0
        %2618 = vmatprep.mubr.bf16.mxu0 0
        %2619 = vmatmul.mubr.bf16.gmra.mxu0 %v2563
        %v2620 = vpop.f32.mrf.mxu0
        %v2621 = vadd.f32 0.0, %v2620
        %v2622 = vpop.f32.mrf.mxu0
        %v2623 = vpop.f32.mrf.mxu0
        %v2624 = vadd.f32 0.0, %v2623
        %v2625 = vpop.f32.mrf.mxu0
        %2626 = vmatprep.mubr.bf16.mxu0 0
        %2627 = vmatmul.mubr.bf16.gmra.mxu0 %v2566
        %v2628 = vpop.f32.mrf.mxu0
        %v2629 = vadd.f32 0.0, %v2628
        %v2630 = vpop.f32.mrf.mxu0
        %v2631 = vpop.f32.mrf.mxu0
        %v2632 = vadd.f32 0.0, %v2631
        %v2633 = vpop.f32.mrf.mxu0
        %2634 = vmatprep.mubr.bf16.mxu0 0
        %2635 = vmatmul.mubr.bf16.gmra.mxu0 %v2569
        %v2636 = vpop.f32.mrf.mxu0
        %v2637 = vadd.f32 0.0, %v2636
        %v2638 = vpop.f32.mrf.mxu0
        %v2639 = vpop.f32.mrf.mxu0
        %v2640 = vadd.f32 0.0, %v2639
        %v2641 = vpop.f32.mrf.mxu0
        %2642 = vmatprep.mubr.bf16.mxu0 0
        %2643 = vmatmul.mubr.bf16.gmra.mxu0 %v2572
        %v2644 = vpop.f32.mrf.mxu0
        %v2645 = vadd.f32 0.0, %v2644
        %v2646 = vpop.f32.mrf.mxu0
        %v2647 = vpop.f32.mrf.mxu0
        %v2648 = vadd.f32 0.0, %v2647
        %v2649 = vpop.f32.mrf.mxu0
        %2650 = vmatprep.mubr.bf16.mxu0 0
        %2651 = vmatmul.mubr.bf16.gmra.mxu0 %v2575
        %v2652 = vpop.f32.mrf.mxu0
        %v2653 = vadd.f32 0.0, %v2652
        %v2654 = vpop.f32.mrf.mxu0
        %v2655 = vpop.f32.mrf.mxu0
        %v2656 = vadd.f32 0.0, %v2655
        %v2657 = vpop.f32.mrf.mxu0
        %2658 = vmatprep.mubr.bf16.mxu0 0
        %2659 = vmatmul.mubr.bf16.gmra.mxu0 %v2578
        %v2660 = vpop.f32.mrf.mxu0
        %v2661 = vadd.f32 0.0, %v2660
        %v2662 = vpop.f32.mrf.mxu0
        %v2663 = vpop.f32.mrf.mxu0
        %v2664 = vadd.f32 0.0, %v2663
        %v2665 = vpop.f32.mrf.mxu0
        %2666 = vmatprep.mubr.bf16.mxu0 0
        %2667 = vmatmul.mubr.bf16.gmra.mxu0 %v2581
        %v2668 = vpop.f32.mrf.mxu0
        %v2669 = vadd.f32 0.0, %v2668
        %v2670 = vpop.f32.mrf.mxu0
        %v2671 = vpop.f32.mrf.mxu0
        %v2672 = vadd.f32 0.0, %v2671
        %v2673 = vpop.f32.mrf.mxu0
        %2674 = vmatprep.mubr.bf16.mxu0 0
        %2675 = vmatmul.mubr.bf16.gmra.mxu0 %v2584
        %v2676 = vpop.f32.mrf.mxu0
        %v2677 = vadd.f32 0.0, %v2676
        %v2678 = vpop.f32.mrf.mxu0
        %v2679 = vpop.f32.mrf.mxu0
        %v2680 = vadd.f32 0.0, %v2679
        %v2681 = vpop.f32.mrf.mxu0
        %2682 = vdwg.mxu0
        %v2683 = vadd.f32 %v1832, %v2621
        %v2684 = vadd.f32 %v1833, %v2624
        %v2685 = vadd.f32 %v1834, %v2629
        %v2686 = vadd.f32 %v1835, %v2632
        %v2687 = vadd.f32 %v1836, %v2637
        %v2688 = vadd.f32 %v1837, %v2640
        %v2689 = vadd.f32 %v1838, %v2645
        %v2690 = vadd.f32 %v1839, %v2648
        %v2691 = vadd.f32 %v1840, %v2653
        %v2692 = vadd.f32 %v1841, %v2656
        %v2693 = vadd.f32 %v1842, %v2661
        %v2694 = vadd.f32 %v1843, %v2664
        %v2695 = vadd.f32 %v1844, %v2669
        %v2696 = vadd.f32 %v1845, %v2672
        %v2697 = vadd.f32 %v1846, %v2677
        %v2698 = vadd.f32 %v1847, %v2680
        %v2699 = vld [vmem:[#allocation2 + $0x40] sm:$0xff]
        %v2700 = vld [vmem:[#allocation2 + $0x48] sm:$0xff]
        %v2701 = vld [vmem:[#allocation2 + $0x50] sm:$0xff]
        %v2702 = vld [vmem:[#allocation2 + $0x58] sm:$0xff]
        %v2703 = vld [vmem:[#allocation2 + $0x60] sm:$0xff]
        %v2704 = vld [vmem:[#allocation2 + $0x68] sm:$0xff]
        %v2705 = vld [vmem:[#allocation2 + $0x70] sm:$0xff]
        %v2706 = vld [vmem:[#allocation2 + $0x78] sm:$0xff]
        %2715 = vrot.lane.b32.xlu0 %v1848, 64
        %v2716 = vpop.permute.xlu0 %2715
        %2717 = vrot.lane.b32.xlu0 %v1849, 64
        %v2718 = vpop.permute.xlu0 %2717
        %2719 = vrot.lane.b32.xlu0 %v1850, 64
        %v2720 = vpop.permute.xlu0 %2719
        %2721 = vrot.lane.b32.xlu0 %v1851, 64
        %v2722 = vpop.permute.xlu0 %2721
        %2723 = vrot.lane.b32.xlu0 %v1852, 64
        %v2724 = vpop.permute.xlu0 %2723
        %2725 = vrot.lane.b32.xlu0 %v1853, 64
        %v2726 = vpop.permute.xlu0 %2725
        %2727 = vrot.lane.b32.xlu0 %v1854, 64
        %v2728 = vpop.permute.xlu0 %2727
        %2729 = vrot.lane.b32.xlu0 %v1855, 64
        %v2730 = vpop.permute.xlu0 %2729
        %v2739 = vunpack.c.l.b16 %v2699
        %v2740 = vunpack.c.h.b16 %v2699
        %v2741 = vunpack.c.l.b16 %v2700
        %v2742 = vunpack.c.h.b16 %v2700
        %v2743 = vunpack.c.l.b16 %v2701
        %v2744 = vunpack.c.h.b16 %v2701
        %v2745 = vunpack.c.l.b16 %v2702
        %v2746 = vunpack.c.h.b16 %v2702
        %v2747 = vunpack.c.l.b16 %v2703
        %v2748 = vunpack.c.h.b16 %v2703
        %v2749 = vunpack.c.l.b16 %v2704
        %v2750 = vunpack.c.h.b16 %v2704
        %v2751 = vunpack.c.l.b16 %v2705
        %v2752 = vunpack.c.h.b16 %v2705
        %v2753 = vunpack.c.l.b16 %v2706
        %v2754 = vunpack.c.h.b16 %v2706
        %v2755 = vpack.c.b16 %v2741, %v2739
        %v2756 = vpack.c.b16 %v2742, %v2740
        %v2757 = vpack.c.b16 %v2745, %v2743
        %v2758 = vpack.c.b16 %v2746, %v2744
        %v2759 = vpack.c.b16 %v2749, %v2747
        %v2760 = vpack.c.b16 %v2750, %v2748
        %v2761 = vpack.c.b16 %v2753, %v2751
        %v2762 = vpack.c.b16 %v2754, %v2752
        %v2772 = vsel %vm1690, %v2716, 0
        %v2775 = vsel %vm1690, %v2718, 0
        %v2778 = vsel %vm1690, %v2720, 0
        %v2781 = vsel %vm1690, %v2722, 0
        %v2784 = vsel %vm1690, %v2724, 0
        %v2787 = vsel %vm1690, %v2726, 0
        %v2790 = vsel %vm1690, %v2728, 0
        %v2793 = vsel %vm1690, %v2730, 0
        %2795 = vmatprep.subr.bf16.mxu0 0
        %2796 = vmatpush1.bf16.msra.mxu0 0
        %2797 = vmatprep.subr.bf16.mxu0 0
        %2798 = vmatpush1.bf16.msra.mxu0 0
        %2799 = vmatprep.subr.bf16.mxu0 0
        %2800 = vmatpush1.bf16.msra.mxu0 0
        %2801 = vmatprep.subr.bf16.mxu0 0
        %2802 = vmatpush1.bf16.msra.mxu0 0
        %2803 = vmatprep.subr.bf16.mxu0 %v2762
        %2804 = vmatpush1.bf16.msra.mxu0 %v2761
        %2805 = vmatprep.subr.bf16.mxu0 %v2760
        %2806 = vmatpush1.bf16.msra.mxu0 %v2759
        %2807 = vmatprep.subr.bf16.mxu0 %v2758
        %2808 = vmatpush1.bf16.msra.mxu0 %v2757
        %2809 = vmatprep.subr.bf16.mxu0 %v2756
        %2810 = vmatpush1.bf16.msra.mxu0 %v2755
        %2811 = vmatprep.subr.bf16.mxu0 0
        %2812 = vmatpush2.bf16.msra.mxu0 0
        %2813 = vmatprep.subr.bf16.mxu0 0
        %2814 = vmatpush2.bf16.msra.mxu0 0
        %2815 = vmatprep.subr.bf16.mxu0 0
        %2816 = vmatpush2.bf16.msra.mxu0 0
        %2817 = vmatprep.subr.bf16.mxu0 0
        %2818 = vmatpush2.bf16.msra.mxu0 0
        %2819 = vmatprep.subr.bf16.mxu0 0
        %2820 = vmatpush2.bf16.msra.mxu0 0
        %2821 = vmatprep.subr.bf16.mxu0 0
        %2822 = vmatpush2.bf16.msra.mxu0 0
        %2823 = vmatprep.subr.bf16.mxu0 0
        %2824 = vmatpush2.bf16.msra.mxu0 0
        %2825 = vmatprep.subr.bf16.mxu0 0
        %2826 = vmatpush2.bf16.msra.mxu0 0
        %2827 = vmatprep.mubr.bf16.mxu0 0
        %2828 = vmatmul.mubr.bf16.gmra.mxu0 %v2772
        %v2829 = vpop.f32.mrf.mxu0
        %v2830 = vadd.f32 0.0, %v2829
        %v2831 = vpop.f32.mrf.mxu0
        %v2832 = vadd.f32 0.0, %v2831
        %v2833 = vpop.f32.mrf.mxu0
        %v2834 = vadd.f32 0.0, %v2833
        %v2835 = vpop.f32.mrf.mxu0
        %v2836 = vadd.f32 0.0, %v2835
        %2837 = vmatprep.mubr.bf16.mxu0 0
        %2838 = vmatmul.mubr.bf16.gmra.mxu0 %v2775
        %v2839 = vpop.f32.mrf.mxu0
        %v2840 = vadd.f32 0.0, %v2839
        %v2841 = vpop.f32.mrf.mxu0
        %v2842 = vadd.f32 0.0, %v2841
        %v2843 = vpop.f32.mrf.mxu0
        %v2844 = vadd.f32 0.0, %v2843
        %v2845 = vpop.f32.mrf.mxu0
        %v2846 = vadd.f32 0.0, %v2845
        %2847 = vmatprep.mubr.bf16.mxu0 0
        %2848 = vmatmul.mubr.bf16.gmra.mxu0 %v2778
        %v2849 = vpop.f32.mrf.mxu0
        %v2850 = vadd.f32 0.0, %v2849
        %v2851 = vpop.f32.mrf.mxu0
        %v2852 = vadd.f32 0.0, %v2851
        %v2853 = vpop.f32.mrf.mxu0
        %v2854 = vadd.f32 0.0, %v2853
        %v2855 = vpop.f32.mrf.mxu0
        %v2856 = vadd.f32 0.0, %v2855
        %2857 = vmatprep.mubr.bf16.mxu0 0
        %2858 = vmatmul.mubr.bf16.gmra.mxu0 %v2781
        %v2859 = vpop.f32.mrf.mxu0
        %v2860 = vadd.f32 0.0, %v2859
        %v2861 = vpop.f32.mrf.mxu0
        %v2862 = vadd.f32 0.0, %v2861
        %v2863 = vpop.f32.mrf.mxu0
        %v2864 = vadd.f32 0.0, %v2863
        %v2865 = vpop.f32.mrf.mxu0
        %v2866 = vadd.f32 0.0, %v2865
        %2867 = vmatprep.mubr.bf16.mxu0 0
        %2868 = vmatmul.mubr.bf16.gmra.mxu0 %v2784
        %v2869 = vpop.f32.mrf.mxu0
        %v2870 = vadd.f32 0.0, %v2869
        %v2871 = vpop.f32.mrf.mxu0
        %v2872 = vadd.f32 0.0, %v2871
        %v2873 = vpop.f32.mrf.mxu0
        %v2874 = vadd.f32 0.0, %v2873
        %v2875 = vpop.f32.mrf.mxu0
        %v2876 = vadd.f32 0.0, %v2875
        %2877 = vmatprep.mubr.bf16.mxu0 0
        %2878 = vmatmul.mubr.bf16.gmra.mxu0 %v2787
        %v2879 = vpop.f32.mrf.mxu0
        %v2880 = vadd.f32 0.0, %v2879
        %v2881 = vpop.f32.mrf.mxu0
        %v2882 = vadd.f32 0.0, %v2881
        %v2883 = vpop.f32.mrf.mxu0
        %v2884 = vadd.f32 0.0, %v2883
        %v2885 = vpop.f32.mrf.mxu0
        %v2886 = vadd.f32 0.0, %v2885
        %2887 = vmatprep.mubr.bf16.mxu0 0
        %2888 = vmatmul.mubr.bf16.gmra.mxu0 %v2790
        %v2889 = vpop.f32.mrf.mxu0
        %v2890 = vadd.f32 0.0, %v2889
        %v2891 = vpop.f32.mrf.mxu0
        %v2892 = vadd.f32 0.0, %v2891
        %v2893 = vpop.f32.mrf.mxu0
        %v2894 = vadd.f32 0.0, %v2893
        %v2895 = vpop.f32.mrf.mxu0
        %v2896 = vadd.f32 0.0, %v2895
        %2897 = vmatprep.mubr.bf16.mxu0 0
        %2898 = vmatmul.mubr.bf16.gmra.mxu0 %v2793
        %v2899 = vpop.f32.mrf.mxu0
        %v2900 = vadd.f32 0.0, %v2899
        %v2901 = vpop.f32.mrf.mxu0
        %v2902 = vadd.f32 0.0, %v2901
        %v2903 = vpop.f32.mrf.mxu0
        %v2904 = vadd.f32 0.0, %v2903
        %v2905 = vpop.f32.mrf.mxu0
        %v2906 = vadd.f32 0.0, %v2905
        %2907 = vdwg.mxu0
        %v2908 = vmax.f32 %v2830, %v2832
        %2909 = vmax.xlane.f32.xlu0 %v2908
        %v2910 = vpop.xlane.xlu0 %2909
        %v2911 = vmax.f32 %v2834, %v2836
        %2912 = vmax.xlane.f32.xlu0 %v2911
        %v2913 = vpop.xlane.xlu0 %2912
        %v2914 = vmax.f32 %v2840, %v2842
        %2915 = vmax.xlane.f32.xlu0 %v2914
        %v2916 = vpop.xlane.xlu0 %2915
        %v2917 = vmax.f32 %v2844, %v2846
        %2918 = vmax.xlane.f32.xlu0 %v2917
        %v2919 = vpop.xlane.xlu0 %2918
        %v2920 = vmax.f32 %v2850, %v2852
        %2921 = vmax.xlane.f32.xlu0 %v2920
        %v2922 = vpop.xlane.xlu0 %2921
        %v2923 = vmax.f32 %v2854, %v2856
        %2924 = vmax.xlane.f32.xlu0 %v2923
        %v2925 = vpop.xlane.xlu0 %2924
        %v2926 = vmax.f32 %v2860, %v2862
        %2927 = vmax.xlane.f32.xlu0 %v2926
        %v2928 = vpop.xlane.xlu0 %2927
        %v2929 = vmax.f32 %v2864, %v2866
        %2930 = vmax.xlane.f32.xlu0 %v2929
        %v2931 = vpop.xlane.xlu0 %2930
        %v2932 = vmax.f32 %v2870, %v2872
        %2933 = vmax.xlane.f32.xlu0 %v2932
        %v2934 = vpop.xlane.xlu0 %2933
        %v2935 = vmax.f32 %v2874, %v2876
        %2936 = vmax.xlane.f32.xlu0 %v2935
        %v2937 = vpop.xlane.xlu0 %2936
        %v2938 = vmax.f32 %v2880, %v2882
        %2939 = vmax.xlane.f32.xlu0 %v2938
        %v2940 = vpop.xlane.xlu0 %2939
        %v2941 = vmax.f32 %v2884, %v2886
        %2942 = vmax.xlane.f32.xlu0 %v2941
        %v2943 = vpop.xlane.xlu0 %2942
        %v2944 = vmax.f32 %v2890, %v2892
        %2945 = vmax.xlane.f32.xlu0 %v2944
        %v2946 = vpop.xlane.xlu0 %2945
        %v2947 = vmax.f32 %v2894, %v2896
        %2948 = vmax.xlane.f32.xlu0 %v2947
        %v2949 = vpop.xlane.xlu0 %2948
        %v2950 = vmax.f32 %v2900, %v2902
        %2951 = vmax.xlane.f32.xlu0 %v2950
        %v2952 = vpop.xlane.xlu0 %2951
        %v2953 = vmax.f32 %v2904, %v2906
        %2954 = vmax.xlane.f32.xlu0 %v2953
        %v2955 = vpop.xlane.xlu0 %2954
        %v2956 = vsub.f32 %v2830, %v2910
        %v2957 = vsub.f32 %v2832, %v2910
        %v2958 = vsub.f32 %v2834, %v2913
        %v2959 = vsub.f32 %v2836, %v2913
        %v2960 = vsub.f32 %v2840, %v2916
        %v2961 = vsub.f32 %v2842, %v2916
        %v2962 = vsub.f32 %v2844, %v2919
        %v2963 = vsub.f32 %v2846, %v2919
        %v2964 = vsub.f32 %v2850, %v2922
        %v2965 = vsub.f32 %v2852, %v2922
        %v2966 = vsub.f32 %v2854, %v2925
        %v2967 = vsub.f32 %v2856, %v2925
        %v2968 = vsub.f32 %v2860, %v2928
        %v2969 = vsub.f32 %v2862, %v2928
        %v2970 = vsub.f32 %v2864, %v2931
        %v2971 = vsub.f32 %v2866, %v2931
        %v2972 = vsub.f32 %v2870, %v2934
        %v2973 = vsub.f32 %v2872, %v2934
        %v2974 = vsub.f32 %v2874, %v2937
        %v2975 = vsub.f32 %v2876, %v2937
        %v2976 = vsub.f32 %v2880, %v2940
        %v2977 = vsub.f32 %v2882, %v2940
        %v2978 = vsub.f32 %v2884, %v2943
        %v2979 = vsub.f32 %v2886, %v2943
        %v2980 = vsub.f32 %v2890, %v2946
        %v2981 = vsub.f32 %v2892, %v2946
        %v2982 = vsub.f32 %v2894, %v2949
        %v2983 = vsub.f32 %v2896, %v2949
        %v2984 = vsub.f32 %v2900, %v2952
        %v2985 = vsub.f32 %v2902, %v2952
        %v2986 = vsub.f32 %v2904, %v2955
        %v2987 = vsub.f32 %v2906, %v2955
        %v2988 = vmul.f32 %v2956, 1.442695
        %v2989 = vpow.pop %v2988
        %v2990 = vmul.f32 %v2957, 1.442695
        %v2991 = vpow.pop %v2990
        %v2992 = vmul.f32 %v2958, 1.442695
        %v2993 = vpow.pop %v2992
        %v2994 = vmul.f32 %v2959, 1.442695
        %v2995 = vpow.pop %v2994
        %v2996 = vmul.f32 %v2960, 1.442695
        %v2997 = vpow.pop %v2996
        %v2998 = vmul.f32 %v2961, 1.442695
        %v2999 = vpow.pop %v2998
        %v3000 = vmul.f32 %v2962, 1.442695
        %v3001 = vpow.pop %v3000
        %v3002 = vmul.f32 %v2963, 1.442695
        %v3003 = vpow.pop %v3002
        %v3004 = vmul.f32 %v2964, 1.442695
        %v3005 = vpow.pop %v3004
        %v3006 = vmul.f32 %v2965, 1.442695
        %v3007 = vpow.pop %v3006
        %v3008 = vmul.f32 %v2966, 1.442695
        %v3009 = vpow.pop %v3008
        %v3010 = vmul.f32 %v2967, 1.442695
        %v3011 = vpow.pop %v3010
        %v3012 = vmul.f32 %v2968, 1.442695
        %v3013 = vpow.pop %v3012
        %v3014 = vmul.f32 %v2969, 1.442695
        %v3015 = vpow.pop %v3014
        %v3016 = vmul.f32 %v2970, 1.442695
        %v3017 = vpow.pop %v3016
        %v3018 = vmul.f32 %v2971, 1.442695
        %v3019 = vpow.pop %v3018
        %v3020 = vmul.f32 %v2972, 1.442695
        %v3021 = vpow.pop %v3020
        %v3022 = vmul.f32 %v2973, 1.442695
        %v3023 = vpow.pop %v3022
        %v3024 = vmul.f32 %v2974, 1.442695
        %v3025 = vpow.pop %v3024
        %v3026 = vmul.f32 %v2975, 1.442695
        %v3027 = vpow.pop %v3026
        %v3028 = vmul.f32 %v2976, 1.442695
        %v3029 = vpow.pop %v3028
        %v3030 = vmul.f32 %v2977, 1.442695
        %v3031 = vpow.pop %v3030
        %v3032 = vmul.f32 %v2978, 1.442695
        %v3033 = vpow.pop %v3032
        %v3034 = vmul.f32 %v2979, 1.442695
        %v3035 = vpow.pop %v3034
        %v3036 = vmul.f32 %v2980, 1.442695
        %v3037 = vpow.pop %v3036
        %v3038 = vmul.f32 %v2981, 1.442695
        %v3039 = vpow.pop %v3038
        %v3040 = vmul.f32 %v2982, 1.442695
        %v3041 = vpow.pop %v3040
        %v3042 = vmul.f32 %v2983, 1.442695
        %v3043 = vpow.pop %v3042
        %v3044 = vmul.f32 %v2984, 1.442695
        %v3045 = vpow.pop %v3044
        %v3046 = vmul.f32 %v2985, 1.442695
        %v3047 = vpow.pop %v3046
        %v3048 = vmul.f32 %v2986, 1.442695
        %v3049 = vpow.pop %v3048
        %v3050 = vmul.f32 %v2987, 1.442695
        %v3051 = vpow.pop %v3050
        %v3052 = vadd.f32 %v2989, %v2991
        %3053 = vadd.xlane.f32.xlu0 %v3052
        %v3054 = vpop.xlane.xlu0 %3053
        %v3055 = vadd.f32 %v2993, %v2995
        %3056 = vadd.xlane.f32.xlu0 %v3055
        %v3057 = vpop.xlane.xlu0 %3056
        %v3058 = vadd.f32 %v2997, %v2999
        %3059 = vadd.xlane.f32.xlu0 %v3058
        %v3060 = vpop.xlane.xlu0 %3059
        %v3061 = vadd.f32 %v3001, %v3003
        %3062 = vadd.xlane.f32.xlu0 %v3061
        %v3063 = vpop.xlane.xlu0 %3062
        %v3064 = vadd.f32 %v3005, %v3007
        %3065 = vadd.xlane.f32.xlu0 %v3064
        %v3066 = vpop.xlane.xlu0 %3065
        %v3067 = vadd.f32 %v3009, %v3011
        %3068 = vadd.xlane.f32.xlu0 %v3067
        %v3069 = vpop.xlane.xlu0 %3068
        %v3070 = vadd.f32 %v3013, %v3015
        %3071 = vadd.xlane.f32.xlu0 %v3070
        %v3072 = vpop.xlane.xlu0 %3071
        %v3073 = vadd.f32 %v3017, %v3019
        %3074 = vadd.xlane.f32.xlu0 %v3073
        %v3075 = vpop.xlane.xlu0 %3074
        %v3076 = vadd.f32 %v3021, %v3023
        %3077 = vadd.xlane.f32.xlu0 %v3076
        %v3078 = vpop.xlane.xlu0 %3077
        %v3079 = vadd.f32 %v3025, %v3027
        %3080 = vadd.xlane.f32.xlu0 %v3079
        %v3081 = vpop.xlane.xlu0 %3080
        %v3082 = vadd.f32 %v3029, %v3031
        %3083 = vadd.xlane.f32.xlu0 %v3082
        %v3084 = vpop.xlane.xlu0 %3083
        %v3085 = vadd.f32 %v3033, %v3035
        %3086 = vadd.xlane.f32.xlu0 %v3085
        %v3087 = vpop.xlane.xlu0 %3086
        %v3088 = vadd.f32 %v3037, %v3039
        %3089 = vadd.xlane.f32.xlu0 %v3088
        %v3090 = vpop.xlane.xlu0 %3089
        %v3091 = vadd.f32 %v3041, %v3043
        %3092 = vadd.xlane.f32.xlu0 %v3091
        %v3093 = vpop.xlane.xlu0 %3092
        %v3094 = vadd.f32 %v3045, %v3047
        %3095 = vadd.xlane.f32.xlu0 %v3094
        %v3096 = vpop.xlane.xlu0 %3095
        %v3097 = vadd.f32 %v3049, %v3051
        %3098 = vadd.xlane.f32.xlu0 %v3097
        %v3099 = vpop.xlane.xlu0 %3098
        %v3100 = vrcp.pop %v3054
        %v3101 = vrcp.pop %v3057
        %v3102 = vrcp.pop %v3060
        %v3103 = vrcp.pop %v3063
        %v3104 = vrcp.pop %v3066
        %v3105 = vrcp.pop %v3069
        %v3106 = vrcp.pop %v3072
        %v3107 = vrcp.pop %v3075
        %v3108 = vrcp.pop %v3078
        %v3109 = vrcp.pop %v3081
        %v3110 = vrcp.pop %v3084
        %v3111 = vrcp.pop %v3087
        %v3112 = vrcp.pop %v3090
        %v3113 = vrcp.pop %v3093
        %v3114 = vrcp.pop %v3096
        %v3115 = vrcp.pop %v3099
        %v3116 = vmul.f32 %v2989, %v3100
        %v3117 = vmul.f32 %v2991, %v3100
        %v3118 = vmul.f32 %v2993, %v3101
        %v3119 = vmul.f32 %v2995, %v3101
        %v3120 = vmul.f32 %v2997, %v3102
        %v3121 = vmul.f32 %v2999, %v3102
        %v3122 = vmul.f32 %v3001, %v3103
        %v3123 = vmul.f32 %v3003, %v3103
        %v3124 = vmul.f32 %v3005, %v3104
        %v3125 = vmul.f32 %v3007, %v3104
        %v3126 = vmul.f32 %v3009, %v3105
        %v3127 = vmul.f32 %v3011, %v3105
        %v3128 = vmul.f32 %v3013, %v3106
        %v3129 = vmul.f32 %v3015, %v3106
        %v3130 = vmul.f32 %v3017, %v3107
        %v3131 = vmul.f32 %v3019, %v3107
        %v3132 = vmul.f32 %v3021, %v3108
        %v3133 = vmul.f32 %v3023, %v3108
        %v3134 = vmul.f32 %v3025, %v3109
        %v3135 = vmul.f32 %v3027, %v3109
        %v3136 = vmul.f32 %v3029, %v3110
        %v3137 = vmul.f32 %v3031, %v3110
        %v3138 = vmul.f32 %v3033, %v3111
        %v3139 = vmul.f32 %v3035, %v3111
        %v3140 = vmul.f32 %v3037, %v3112
        %v3141 = vmul.f32 %v3039, %v3112
        %v3142 = vmul.f32 %v3041, %v3113
        %v3143 = vmul.f32 %v3043, %v3113
        %v3144 = vmul.f32 %v3045, %v3114
        %v3145 = vmul.f32 %v3047, %v3114
        %v3146 = vmul.f32 %v3049, %v3115
        %v3147 = vmul.f32 %v3051, %v3115
        %v3148 = vpack.c.bf16 %v3118, %v3116
        %v3149 = vpack.c.bf16 %v3119, %v3117
        %v3150 = vpack.c.bf16 %v3122, %v3120
        %v3151 = vpack.c.bf16 %v3123, %v3121
        %v3152 = vpack.c.bf16 %v3126, %v3124
        %v3153 = vpack.c.bf16 %v3127, %v3125
        %v3154 = vpack.c.bf16 %v3130, %v3128
        %v3155 = vpack.c.bf16 %v3131, %v3129
        %v3156 = vpack.c.bf16 %v3134, %v3132
        %v3157 = vpack.c.bf16 %v3135, %v3133
        %v3158 = vpack.c.bf16 %v3138, %v3136
        %v3159 = vpack.c.bf16 %v3139, %v3137
        %v3160 = vpack.c.bf16 %v3142, %v3140
        %v3161 = vpack.c.bf16 %v3143, %v3141
        %v3162 = vpack.c.bf16 %v3146, %v3144
        %v3163 = vpack.c.bf16 %v3147, %v3145
        %s3164 = scalar_lea.vmem [#allocation3], 128
        %v3165 = vld [vmem:[%s3164] sm:$0xf]
        %v3166 = vld [vmem:[%s3164 + $0x4] sm:$0xf]
        %v3167 = vld [vmem:[%s3164 + $0x8] sm:$0xf]
        %v3168 = vld [vmem:[%s3164 + $0xc] sm:$0xf]
        %v3169 = vld [vmem:[%s3164 + $0x10] sm:$0xf]
        %v3170 = vld [vmem:[%s3164 + $0x14] sm:$0xf]
        %v3171 = vld [vmem:[%s3164 + $0x18] sm:$0xf]
        %v3172 = vld [vmem:[%s3164 + $0x1c] sm:$0xf]
        %v3173 = vld [vmem:[%s3164 + $0x20] sm:$0xf]
        %v3174 = vld [vmem:[%s3164 + $0x24] sm:$0xf]
        %v3175 = vld [vmem:[%s3164 + $0x28] sm:$0xf]
        %v3176 = vld [vmem:[%s3164 + $0x2c] sm:$0xf]
        %v3177 = vld [vmem:[%s3164 + $0x30] sm:$0xf]
        %v3178 = vld [vmem:[%s3164 + $0x34] sm:$0xf]
        %v3179 = vld [vmem:[%s3164 + $0x38] sm:$0xf]
        %v3180 = vld [vmem:[%s3164 + $0x3c] sm:$0xf]
        %v3181 = vld [vmem:[%s3164 + $0x40] sm:$0xf]
        %v3182 = vld [vmem:[%s3164 + $0x44] sm:$0xf]
        %v3183 = vld [vmem:[%s3164 + $0x48] sm:$0xf]
        %v3184 = vld [vmem:[%s3164 + $0x4c] sm:$0xf]
        %v3185 = vld [vmem:[%s3164 + $0x50] sm:$0xf]
        %v3186 = vld [vmem:[%s3164 + $0x54] sm:$0xf]
        %v3187 = vld [vmem:[%s3164 + $0x58] sm:$0xf]
        %v3188 = vld [vmem:[%s3164 + $0x5c] sm:$0xf]
        %v3189 = vld [vmem:[%s3164 + $0x60] sm:$0xf]
        %v3190 = vld [vmem:[%s3164 + $0x64] sm:$0xf]
        %v3191 = vld [vmem:[%s3164 + $0x68] sm:$0xf]
        %v3192 = vld [vmem:[%s3164 + $0x6c] sm:$0xf]
        %v3193 = vld [vmem:[%s3164 + $0x70] sm:$0xf]
        %v3194 = vld [vmem:[%s3164 + $0x74] sm:$0xf]
        %v3195 = vld [vmem:[%s3164 + $0x78] sm:$0xf]
        %v3196 = vld [vmem:[%s3164 + $0x7c] sm:$0xf]
        %v3229 = vunpack.c.l.b16 %v3165
        %v3230 = vunpack.c.l.b16 %v3166
        %v3231 = vunpack.c.l.b16 %v3167
        %v3232 = vunpack.c.l.b16 %v3168
        %v3233 = vunpack.c.l.b16 %v3169
        %v3234 = vunpack.c.l.b16 %v3170
        %v3235 = vunpack.c.l.b16 %v3171
        %v3236 = vunpack.c.l.b16 %v3172
        %v3237 = vunpack.c.l.b16 %v3173
        %v3238 = vunpack.c.l.b16 %v3174
        %v3239 = vunpack.c.l.b16 %v3175
        %v3240 = vunpack.c.l.b16 %v3176
        %v3241 = vunpack.c.l.b16 %v3177
        %v3242 = vunpack.c.l.b16 %v3178
        %v3243 = vunpack.c.l.b16 %v3179
        %v3244 = vunpack.c.l.b16 %v3180
        %v3245 = vunpack.c.l.b16 %v3181
        %v3246 = vunpack.c.l.b16 %v3182
        %v3247 = vunpack.c.l.b16 %v3183
        %v3248 = vunpack.c.l.b16 %v3184
        %v3249 = vunpack.c.l.b16 %v3185
        %v3250 = vunpack.c.l.b16 %v3186
        %v3251 = vunpack.c.l.b16 %v3187
        %v3252 = vunpack.c.l.b16 %v3188
        %v3253 = vunpack.c.l.b16 %v3189
        %v3254 = vunpack.c.l.b16 %v3190
        %v3255 = vunpack.c.l.b16 %v3191
        %v3256 = vunpack.c.l.b16 %v3192
        %v3257 = vunpack.c.l.b16 %v3193
        %v3258 = vunpack.c.l.b16 %v3194
        %v3259 = vunpack.c.l.b16 %v3195
        %v3260 = vunpack.c.l.b16 %v3196
        %v3261 = vpack.c.b16 %v3230, %v3229
        %v3262 = vpack.c.b16 %v3232, %v3231
        %v3263 = vpack.c.b16 %v3234, %v3233
        %v3264 = vpack.c.b16 %v3236, %v3235
        %v3265 = vpack.c.b16 %v3238, %v3237
        %v3266 = vpack.c.b16 %v3240, %v3239
        %v3267 = vpack.c.b16 %v3242, %v3241
        %v3268 = vpack.c.b16 %v3244, %v3243
        %v3269 = vpack.c.b16 %v3246, %v3245
        %v3270 = vpack.c.b16 %v3248, %v3247
        %v3271 = vpack.c.b16 %v3250, %v3249
        %v3272 = vpack.c.b16 %v3252, %v3251
        %v3273 = vpack.c.b16 %v3254, %v3253
        %v3274 = vpack.c.b16 %v3256, %v3255
        %v3275 = vpack.c.b16 %v3258, %v3257
        %v3276 = vpack.c.b16 %v3260, %v3259
        %3293 = vmatprep.subr.bf16.mxu0 0
        %3294 = vmatpush1.bf16.msra.mxu0 %v3268
        %3295 = vmatprep.subr.bf16.mxu0 0
        %3296 = vmatpush1.bf16.msra.mxu0 %v3267
        %3297 = vmatprep.subr.bf16.mxu0 0
        %3298 = vmatpush1.bf16.msra.mxu0 %v3266
        %3299 = vmatprep.subr.bf16.mxu0 0
        %3300 = vmatpush1.bf16.msra.mxu0 %v3265
        %3301 = vmatprep.subr.bf16.mxu0 0
        %3302 = vmatpush1.bf16.msra.mxu0 %v3264
        %3303 = vmatprep.subr.bf16.mxu0 0
        %3304 = vmatpush1.bf16.msra.mxu0 %v3263
        %3305 = vmatprep.subr.bf16.mxu0 0
        %3306 = vmatpush1.bf16.msra.mxu0 %v3262
        %3307 = vmatprep.subr.bf16.mxu0 0
        %3308 = vmatpush1.bf16.msra.mxu0 %v3261
        %3309 = vmatprep.subr.bf16.mxu0 0
        %3310 = vmatpush2.bf16.msra.mxu0 %v3276
        %3311 = vmatprep.subr.bf16.mxu0 0
        %3312 = vmatpush2.bf16.msra.mxu0 %v3275
        %3313 = vmatprep.subr.bf16.mxu0 0
        %3314 = vmatpush2.bf16.msra.mxu0 %v3274
        %3315 = vmatprep.subr.bf16.mxu0 0
        %3316 = vmatpush2.bf16.msra.mxu0 %v3273
        %3317 = vmatprep.subr.bf16.mxu0 0
        %3318 = vmatpush2.bf16.msra.mxu0 %v3272
        %3319 = vmatprep.subr.bf16.mxu0 0
        %3320 = vmatpush2.bf16.msra.mxu0 %v3271
        %3321 = vmatprep.subr.bf16.mxu0 0
        %3322 = vmatpush2.bf16.msra.mxu0 %v3270
        %3323 = vmatprep.subr.bf16.mxu0 0
        %3324 = vmatpush2.bf16.msra.mxu0 %v3269
        %3325 = vmatprep.mubr.bf16.mxu0 %v3149
        %3326 = vmatmul.mubr.bf16.gmra.mxu0 %v3148
        %v3327 = vpop.f32.mrf.mxu0
        %v3328 = vadd.f32 0.0, %v3327
        %v3329 = vpop.f32.mrf.mxu0
        %v3330 = vpop.f32.mrf.mxu0
        %v3331 = vadd.f32 0.0, %v3330
        %v3332 = vpop.f32.mrf.mxu0
        %3333 = vmatprep.mubr.bf16.mxu0 %v3151
        %3334 = vmatmul.mubr.bf16.gmra.mxu0 %v3150
        %v3335 = vpop.f32.mrf.mxu0
        %v3336 = vadd.f32 0.0, %v3335
        %v3337 = vpop.f32.mrf.mxu0
        %v3338 = vpop.f32.mrf.mxu0
        %v3339 = vadd.f32 0.0, %v3338
        %v3340 = vpop.f32.mrf.mxu0
        %3341 = vmatprep.mubr.bf16.mxu0 %v3153
        %3342 = vmatmul.mubr.bf16.gmra.mxu0 %v3152
        %v3343 = vpop.f32.mrf.mxu0
        %v3344 = vadd.f32 0.0, %v3343
        %v3345 = vpop.f32.mrf.mxu0
        %v3346 = vpop.f32.mrf.mxu0
        %v3347 = vadd.f32 0.0, %v3346
        %v3348 = vpop.f32.mrf.mxu0
        %3349 = vmatprep.mubr.bf16.mxu0 %v3155
        %3350 = vmatmul.mubr.bf16.gmra.mxu0 %v3154
        %v3351 = vpop.f32.mrf.mxu0
        %v3352 = vadd.f32 0.0, %v3351
        %v3353 = vpop.f32.mrf.mxu0
        %v3354 = vpop.f32.mrf.mxu0
        %v3355 = vadd.f32 0.0, %v3354
        %v3356 = vpop.f32.mrf.mxu0
        %3357 = vmatprep.mubr.bf16.mxu0 %v3157
        %3358 = vmatmul.mubr.bf16.gmra.mxu0 %v3156
        %v3359 = vpop.f32.mrf.mxu0
        %v3360 = vadd.f32 0.0, %v3359
        %v3361 = vpop.f32.mrf.mxu0
        %v3362 = vpop.f32.mrf.mxu0
        %v3363 = vadd.f32 0.0, %v3362
        %v3364 = vpop.f32.mrf.mxu0
        %3365 = vmatprep.mubr.bf16.mxu0 %v3159
        %3366 = vmatmul.mubr.bf16.gmra.mxu0 %v3158
        %v3367 = vpop.f32.mrf.mxu0
        %v3368 = vadd.f32 0.0, %v3367
        %v3369 = vpop.f32.mrf.mxu0
        %v3370 = vpop.f32.mrf.mxu0
        %v3371 = vadd.f32 0.0, %v3370
        %v3372 = vpop.f32.mrf.mxu0
        %3373 = vmatprep.mubr.bf16.mxu0 %v3161
        %3374 = vmatmul.mubr.bf16.gmra.mxu0 %v3160
        %v3375 = vpop.f32.mrf.mxu0
        %v3376 = vadd.f32 0.0, %v3375
        %v3377 = vpop.f32.mrf.mxu0
        %v3378 = vpop.f32.mrf.mxu0
        %v3379 = vadd.f32 0.0, %v3378
        %v3380 = vpop.f32.mrf.mxu0
        %3381 = vmatprep.mubr.bf16.mxu0 %v3163
        %3382 = vmatmul.mubr.bf16.gmra.mxu0 %v3162
        %v3383 = vpop.f32.mrf.mxu0
        %v3384 = vadd.f32 0.0, %v3383
        %v3385 = vpop.f32.mrf.mxu0
        %v3386 = vpop.f32.mrf.mxu0
        %v3387 = vadd.f32 0.0, %v3386
        %v3388 = vpop.f32.mrf.mxu0
        %3389 = vdwg.mxu0
        %v3390 = vpack.c.bf16 %v3331, %v3328
        %v3391 = vpack.c.bf16 %v3339, %v3336
        %v3392 = vpack.c.bf16 %v3347, %v3344
        %v3393 = vpack.c.bf16 %v3355, %v3352
        %v3394 = vpack.c.bf16 %v3363, %v3360
        %v3395 = vpack.c.bf16 %v3371, %v3368
        %v3396 = vpack.c.bf16 %v3379, %v3376
        %v3397 = vpack.c.bf16 %v3387, %v3384
        %s3398 = scalar_lea.vmem %s6, 32
        %v3399 = vld [vmem:[%s3398] sm:$0xf]
        %v3400 = vld [vmem:[%s3398 + $0x4] sm:$0xf]
        %v3401 = vld [vmem:[%s3398 + $0x8] sm:$0xf]
        %v3402 = vld [vmem:[%s3398 + $0xc] sm:$0xf]
        %v3403 = vld [vmem:[%s3398 + $0x10] sm:$0xf]
        %v3404 = vld [vmem:[%s3398 + $0x14] sm:$0xf]
        %v3405 = vld [vmem:[%s3398 + $0x18] sm:$0xf]
        %v3406 = vld [vmem:[%s3398 + $0x1c] sm:$0xf]
        %v3415 = vunpack.c.l.b16 %v3399
        %v3416 = vunpack.c.l.b16 %v3400
        %v3417 = vunpack.c.l.b16 %v3401
        %v3418 = vunpack.c.l.b16 %v3402
        %v3419 = vunpack.c.l.b16 %v3403
        %v3420 = vunpack.c.l.b16 %v3404
        %v3421 = vunpack.c.l.b16 %v3405
        %v3422 = vunpack.c.l.b16 %v3406
        %v3423 = vpack.c.b16 %v3416, %v3415
        %v3424 = vpack.c.b16 %v3418, %v3417
        %v3425 = vpack.c.b16 %v3420, %v3419
        %v3426 = vpack.c.b16 %v3422, %v3421
        %v3432 = vsel %vm1690, %v3390, 0
        %v3435 = vsel %vm1690, %v3391, 0
        %v3438 = vsel %vm1690, %v3392, 0
        %v3441 = vsel %vm1690, %v3393, 0
        %v3444 = vsel %vm1690, %v3394, 0
        %v3447 = vsel %vm1690, %v3395, 0
        %v3450 = vsel %vm1690, %v3396, 0
        %v3453 = vsel %vm1690, %v3397, 0
        %3455 = vmatprep.subr.bf16.mxu0 0
        %3456 = vmatpush1.bf16.msra.mxu0 0
        %3457 = vmatprep.subr.bf16.mxu0 0
        %3458 = vmatpush1.bf16.msra.mxu0 0
        %3459 = vmatprep.subr.bf16.mxu0 0
        %3460 = vmatpush1.bf16.msra.mxu0 0
        %3461 = vmatprep.subr.bf16.mxu0 0
        %3462 = vmatpush1.bf16.msra.mxu0 0
        %3463 = vmatprep.subr.bf16.mxu0 0
        %3464 = vmatpush1.bf16.msra.mxu0 %v3426
        %3465 = vmatprep.subr.bf16.mxu0 0
        %3466 = vmatpush1.bf16.msra.mxu0 %v3425
        %3467 = vmatprep.subr.bf16.mxu0 0
        %3468 = vmatpush1.bf16.msra.mxu0 %v3424
        %3469 = vmatprep.subr.bf16.mxu0 0
        %3470 = vmatpush1.bf16.msra.mxu0 %v3423
        %3471 = vmatprep.subr.bf16.mxu0 0
        %3472 = vmatpush2.bf16.msra.mxu0 0
        %3473 = vmatprep.subr.bf16.mxu0 0
        %3474 = vmatpush2.bf16.msra.mxu0 0
        %3475 = vmatprep.subr.bf16.mxu0 0
        %3476 = vmatpush2.bf16.msra.mxu0 0
        %3477 = vmatprep.subr.bf16.mxu0 0
        %3478 = vmatpush2.bf16.msra.mxu0 0
        %3479 = vmatprep.subr.bf16.mxu0 0
        %3480 = vmatpush2.bf16.msra.mxu0 0
        %3481 = vmatprep.subr.bf16.mxu0 0
        %3482 = vmatpush2.bf16.msra.mxu0 0
        %3483 = vmatprep.subr.bf16.mxu0 0
        %3484 = vmatpush2.bf16.msra.mxu0 0
        %3485 = vmatprep.subr.bf16.mxu0 0
        %3486 = vmatpush2.bf16.msra.mxu0 0
        %3487 = vmatprep.mubr.bf16.mxu0 0
        %3488 = vmatmul.mubr.bf16.gmra.mxu0 %v3432
        %v3489 = vpop.f32.mrf.mxu0
        %v3490 = vadd.f32 0.0, %v3489
        %v3491 = vpop.f32.mrf.mxu0
        %v3492 = vpop.f32.mrf.mxu0
        %v3493 = vadd.f32 0.0, %v3492
        %v3494 = vpop.f32.mrf.mxu0
        %3495 = vmatprep.mubr.bf16.mxu0 0
        %3496 = vmatmul.mubr.bf16.gmra.mxu0 %v3435
        %v3497 = vpop.f32.mrf.mxu0
        %v3498 = vadd.f32 0.0, %v3497
        %v3499 = vpop.f32.mrf.mxu0
        %v3500 = vpop.f32.mrf.mxu0
        %v3501 = vadd.f32 0.0, %v3500
        %v3502 = vpop.f32.mrf.mxu0
        %3503 = vmatprep.mubr.bf16.mxu0 0
        %3504 = vmatmul.mubr.bf16.gmra.mxu0 %v3438
        %v3505 = vpop.f32.mrf.mxu0
        %v3506 = vadd.f32 0.0, %v3505
        %v3507 = vpop.f32.mrf.mxu0
        %v3508 = vpop.f32.mrf.mxu0
        %v3509 = vadd.f32 0.0, %v3508
        %v3510 = vpop.f32.mrf.mxu0
        %3511 = vmatprep.mubr.bf16.mxu0 0
        %3512 = vmatmul.mubr.bf16.gmra.mxu0 %v3441
        %v3513 = vpop.f32.mrf.mxu0
        %v3514 = vadd.f32 0.0, %v3513
        %v3515 = vpop.f32.mrf.mxu0
        %v3516 = vpop.f32.mrf.mxu0
        %v3517 = vadd.f32 0.0, %v3516
        %v3518 = vpop.f32.mrf.mxu0
        %3519 = vmatprep.mubr.bf16.mxu0 0
        %3520 = vmatmul.mubr.bf16.gmra.mxu0 %v3444
        %v3521 = vpop.f32.mrf.mxu0
        %v3522 = vadd.f32 0.0, %v3521
        %v3523 = vpop.f32.mrf.mxu0
        %v3524 = vpop.f32.mrf.mxu0
        %v3525 = vadd.f32 0.0, %v3524
        %v3526 = vpop.f32.mrf.mxu0
        %3527 = vmatprep.mubr.bf16.mxu0 0
        %3528 = vmatmul.mubr.bf16.gmra.mxu0 %v3447
        %v3529 = vpop.f32.mrf.mxu0
        %v3530 = vadd.f32 0.0, %v3529
        %v3531 = vpop.f32.mrf.mxu0
        %v3532 = vpop.f32.mrf.mxu0
        %v3533 = vadd.f32 0.0, %v3532
        %v3534 = vpop.f32.mrf.mxu0
        %3535 = vmatprep.mubr.bf16.mxu0 0
        %3536 = vmatmul.mubr.bf16.gmra.mxu0 %v3450
        %v3537 = vpop.f32.mrf.mxu0
        %v3538 = vadd.f32 0.0, %v3537
        %v3539 = vpop.f32.mrf.mxu0
        %v3540 = vpop.f32.mrf.mxu0
        %v3541 = vadd.f32 0.0, %v3540
        %v3542 = vpop.f32.mrf.mxu0
        %3543 = vmatprep.mubr.bf16.mxu0 0
        %3544 = vmatmul.mubr.bf16.gmra.mxu0 %v3453
        %v3545 = vpop.f32.mrf.mxu0
        %v3546 = vadd.f32 0.0, %v3545
        %v3547 = vpop.f32.mrf.mxu0
        %v3548 = vpop.f32.mrf.mxu0
        %v3549 = vadd.f32 0.0, %v3548
        %v3550 = vpop.f32.mrf.mxu0
        %3551 = vdwg.mxu0
        %v3552 = vadd.f32 %v2683, %v3490
        %v3553 = vadd.f32 %v2684, %v3493
        %v3554 = vadd.f32 %v2685, %v3498
        %v3555 = vadd.f32 %v2686, %v3501
        %v3556 = vadd.f32 %v2687, %v3506
        %v3557 = vadd.f32 %v2688, %v3509
        %v3558 = vadd.f32 %v2689, %v3514
        %v3559 = vadd.f32 %v2690, %v3517
        %v3560 = vadd.f32 %v2691, %v3522
        %v3561 = vadd.f32 %v2692, %v3525
        %v3562 = vadd.f32 %v2693, %v3530
        %v3563 = vadd.f32 %v2694, %v3533
        %v3564 = vadd.f32 %v2695, %v3538
        %v3565 = vadd.f32 %v2696, %v3541
        %v3566 = vadd.f32 %v2697, %v3546
        %v3567 = vadd.f32 %v2698, %v3549
        %v3568 = vpack.c.bf16 %v3553, %v3552
        %v3569 = vpack.c.bf16 %v3555, %v3554
        %v3570 = vpack.c.bf16 %v3557, %v3556
        %v3571 = vpack.c.bf16 %v3559, %v3558
        %v3572 = vpack.c.bf16 %v3561, %v3560
        %v3573 = vpack.c.bf16 %v3563, %v3562
        %v3574 = vpack.c.bf16 %v3565, %v3564
        %v3575 = vpack.c.bf16 %v3567, %v3566
        %v3584 = vunpack.c.l.b16 %v3568
        %v3585 = vunpack.c.h.b16 %v3568
        %v3586 = vunpack.c.l.b16 %v3569
        %v3587 = vunpack.c.h.b16 %v3569
        %v3588 = vunpack.c.l.b16 %v3570
        %v3589 = vunpack.c.h.b16 %v3570
        %v3590 = vunpack.c.l.b16 %v3571
        %v3591 = vunpack.c.h.b16 %v3571
        %v3592 = vunpack.c.l.b16 %v3572
        %v3593 = vunpack.c.h.b16 %v3572
        %v3594 = vunpack.c.l.b16 %v3573
        %v3595 = vunpack.c.h.b16 %v3573
        %v3596 = vunpack.c.l.b16 %v3574
        %v3597 = vunpack.c.h.b16 %v3574
        %v3598 = vunpack.c.l.b16 %v3575
        %v3599 = vunpack.c.h.b16 %v3575
        %v3600 = vpack.c.b16 %v3584, %v3584
        %v3601 = vpack.c.b16 %v3585, %v3585
        %v3602 = vpack.c.b16 %v3586, %v3586
        %v3603 = vpack.c.b16 %v3587, %v3587
        %v3604 = vpack.c.b16 %v3588, %v3588
        %v3605 = vpack.c.b16 %v3589, %v3589
        %v3606 = vpack.c.b16 %v3590, %v3590
        %v3607 = vpack.c.b16 %v3591, %v3591
        %v3608 = vpack.c.b16 %v3592, %v3592
        %v3609 = vpack.c.b16 %v3593, %v3593
        %v3610 = vpack.c.b16 %v3594, %v3594
        %v3611 = vpack.c.b16 %v3595, %v3595
        %v3612 = vpack.c.b16 %v3596, %v3596
        %v3613 = vpack.c.b16 %v3597, %v3597
        %v3614 = vpack.c.b16 %v3598, %v3598
        %v3615 = vpack.c.b16 %v3599, %v3599
        %3632 = vst [vmem:[%s1815] sm:$0xf] %v3600
        %3633 = vst [vmem:[%s1815 + $0x4] sm:$0xf] %v3601
        %3634 = vst [vmem:[%s1815 + $0x8] sm:$0xf] %v3602
        %3635 = vst [vmem:[%s1815 + $0xc] sm:$0xf] %v3603
        %3636 = vst [vmem:[%s1815 + $0x10] sm:$0xf] %v3604
        %3637 = vst [vmem:[%s1815 + $0x14] sm:$0xf] %v3605
        %3638 = vst [vmem:[%s1815 + $0x18] sm:$0xf] %v3606
        %3639 = vst [vmem:[%s1815 + $0x1c] sm:$0xf] %v3607
        %3640 = vst [vmem:[%s1815 + $0x20] sm:$0xf] %v3608
        %3641 = vst [vmem:[%s1815 + $0x24] sm:$0xf] %v3609
        %3642 = vst [vmem:[%s1815 + $0x28] sm:$0xf] %v3610
        %3643 = vst [vmem:[%s1815 + $0x2c] sm:$0xf] %v3611
        %3644 = vst [vmem:[%s1815 + $0x30] sm:$0xf] %v3612
        %3645 = vst [vmem:[%s1815 + $0x34] sm:$0xf] %v3613
        %3646 = vst [vmem:[%s1815 + $0x38] sm:$0xf] %v3614
        %3647 = vst [vmem:[%s1815 + $0x3c] sm:$0xf] %v3615
        %v3648 = vld [vmem:[#allocation4] sm:$0x1]
        %v3649 = vadd.f32 %v3552, %v3553
        %v3650 = vadd.f32 %v3649, %v3554
        %v3651 = vadd.f32 %v3650, %v3555
        %v3652 = vadd.f32 %v3651, %v3556
        %v3653 = vadd.f32 %v3652, %v3557
        %v3654 = vadd.f32 %v3653, %v3558
        %v3655 = vadd.f32 %v3654, %v3559
        %v3656 = vadd.f32 %v3655, %v3560
        %v3657 = vadd.f32 %v3656, %v3561
        %v3658 = vadd.f32 %v3657, %v3562
        %v3659 = vadd.f32 %v3658, %v3563
        %v3660 = vadd.f32 %v3659, %v3564
        %v3661 = vadd.f32 %v3660, %v3565
        %v3662 = vadd.f32 %v3661, %v3566
        %v3663 = vadd.f32 %v3662, %v3567
        %v3664 = vrot.slane %v3663, 4
        %v3665 = vadd.f32 %v3663, %v3664
        %v3666 = vrot.slane %v3665, 2
        %v3667 = vadd.f32 %v3665, %v3666
        %v3668 = vrot.slane %v3667, 1
        %v3669 = vadd.f32 %v3667, %v3668
        %v3670 = vadd.f32 %v3648, %v3669
        %3671 = vst [vmem:[#allocation4] sm:$0x1] %v3670
        %v3672 = vld [vmem:[#allocation5] sm:$0x1]
        %v3673 = vmul.f32 %v3552, %v3552
        %v3674 = vmul.f32 %v3553, %v3553
        %v3675 = vmul.f32 %v3554, %v3554
        %v3676 = vmul.f32 %v3555, %v3555
        %v3677 = vmul.f32 %v3556, %v3556
        %v3678 = vmul.f32 %v3557, %v3557
        %v3679 = vmul.f32 %v3558, %v3558
        %v3680 = vmul.f32 %v3559, %v3559
        %v3681 = vmul.f32 %v3560, %v3560
        %v3682 = vmul.f32 %v3561, %v3561
        %v3683 = vmul.f32 %v3562, %v3562
        %v3684 = vmul.f32 %v3563, %v3563
        %v3685 = vmul.f32 %v3564, %v3564
        %v3686 = vmul.f32 %v3565, %v3565
        %v3687 = vmul.f32 %v3566, %v3566
        %v3688 = vmul.f32 %v3567, %v3567
        %v3689 = vadd.f32 %v3673, %v3674
        %v3690 = vadd.f32 %v3689, %v3675
        %v3691 = vadd.f32 %v3690, %v3676
        %v3692 = vadd.f32 %v3691, %v3677
        %v3693 = vadd.f32 %v3692, %v3678
        %v3694 = vadd.f32 %v3693, %v3679
        %v3695 = vadd.f32 %v3694, %v3680
        %v3696 = vadd.f32 %v3695, %v3681
        %v3697 = vadd.f32 %v3696, %v3682
        %v3698 = vadd.f32 %v3697, %v3683
        %v3699 = vadd.f32 %v3698, %v3684
        %v3700 = vadd.f32 %v3699, %v3685
        %v3701 = vadd.f32 %v3700, %v3686
        %v3702 = vadd.f32 %v3701, %v3687
        %v3703 = vadd.f32 %v3702, %v3688
        %v3704 = vrot.slane %v3703, 4
        %v3705 = vadd.f32 %v3703, %v3704
        %v3706 = vrot.slane %v3705, 2
        %v3707 = vadd.f32 %v3705, %v3706
        %v3708 = vrot.slane %v3707, 1
        %v3709 = vadd.f32 %v3707, %v3708
        %v3710 = vadd.f32 %v3672, %v3709
        %3711 = vst [vmem:[#allocation5] sm:$0x1] %v3710
        %p3712 = scmp.eq.s32.totalorder %s30, 1
        // Predicated region
        $region69: #{tpu_custom_call.1} parent=63 // pred_check
          %p3713 = pneg %p3712
        $region70: #{tpu_custom_call.1} parent=63 // pred_check_branch
          %3715 = sbr.rel (%p3713) target = $region72
        $region71: #{tpu_custom_call.1} parent=63 // pred_region
          %v3716 = vld [vmem:[#allocation4] sm:$0x1]
          %v3717 = vld [vmem:[%s9] sm:$0xff]
          %v3718 = vld [vmem:[%s9 + $0x8] sm:$0xff]
          %v3719 = vld [vmem:[%s9 + $0x10] sm:$0xff]
          %v3720 = vld [vmem:[%s9 + $0x18] sm:$0xff]
          %v3721 = vld [vmem:[%s9 + $0x20] sm:$0xff]
          %v3722 = vld [vmem:[%s9 + $0x28] sm:$0xff]
          %v3723 = vld [vmem:[%s9 + $0x30] sm:$0xff]
          %v3724 = vld [vmem:[%s9 + $0x38] sm:$0xff]
          %v3725 = vld [vmem:[%s9 + $0x40] sm:$0xff]
          %v3726 = vld [vmem:[%s9 + $0x48] sm:$0xff]
          %v3727 = vld [vmem:[%s9 + $0x50] sm:$0xff]
          %v3728 = vld [vmem:[%s9 + $0x58] sm:$0xff]
          %v3729 = vld [vmem:[%s9 + $0x60] sm:$0xff]
          %v3730 = vld [vmem:[%s9 + $0x68] sm:$0xff]
          %v3731 = vld [vmem:[%s9 + $0x70] sm:$0xff]
          %v3732 = vld [vmem:[%s9 + $0x78] sm:$0xff]
          %3733 = vmatprep.subr.mxu0 0.0
          %3734 = vmatpush1.msra.mxu0 %v3732
          %3735 = vmatprep.subr.mxu0 0.0
          %3736 = vmatpush1.msra.mxu0 %v3731
          %3737 = vmatprep.subr.mxu0 0.0
          %3738 = vmatpush1.msra.mxu0 %v3730
          %3739 = vmatprep.subr.mxu0 0.0
          %3740 = vmatpush1.msra.mxu0 %v3729
          %3741 = vmatprep.subr.mxu0 0.0
          %3742 = vmatpush1.msra.mxu0 %v3728
          %3743 = vmatprep.subr.mxu0 0.0
          %3744 = vmatpush1.msra.mxu0 %v3727
          %3745 = vmatprep.subr.mxu0 0.0
          %3746 = vmatpush1.msra.mxu0 %v3726
          %3747 = vmatprep.subr.mxu0 0.0
          %3748 = vmatpush1.msra.mxu0 %v3725
          %3749 = vmatprep.subr.mxu0 0.0
          %3750 = vmatpush1.msra.mxu0 %v3724
          %3751 = vmatprep.subr.mxu0 0.0
          %3752 = vmatpush1.msra.mxu0 %v3723
          %3753 = vmatprep.subr.mxu0 0.0
          %3754 = vmatpush1.msra.mxu0 %v3722
          %3755 = vmatprep.subr.mxu0 0.0
          %3756 = vmatpush1.msra.mxu0 %v3721
          %3757 = vmatprep.subr.mxu0 0.0
          %3758 = vmatpush1.msra.mxu0 %v3720
          %3759 = vmatprep.subr.mxu0 0.0
          %3760 = vmatpush1.msra.mxu0 %v3719
          %3761 = vmatprep.subr.mxu0 0.0
          %3762 = vmatpush1.msra.mxu0 %v3718
          %3763 = vmatprep.subr.mxu0 0.0
          %3764 = vmatpush1.msra.mxu0 %v3717
          %3765 = vmatprep.subr.mxu0 0.0
          %3766 = vmatpush2.msra.mxu0 0.0
          %3767 = vmatprep.subr.mxu0 0.0
          %3768 = vmatpush2.msra.mxu0 0.0
          %3769 = vmatprep.subr.mxu0 0.0
          %3770 = vmatpush2.msra.mxu0 0.0
          %3771 = vmatprep.subr.mxu0 0.0
          %3772 = vmatpush2.msra.mxu0 0.0
          %3773 = vmatprep.subr.mxu0 0.0
          %3774 = vmatpush2.msra.mxu0 0.0
          %3775 = vmatprep.subr.mxu0 0.0
          %3776 = vmatpush2.msra.mxu0 0.0
          %3777 = vmatprep.subr.mxu0 0.0
          %3778 = vmatpush2.msra.mxu0 0.0
          %3779 = vmatprep.subr.mxu0 0.0
          %3780 = vmatpush2.msra.mxu0 0.0
          %3781 = vmatprep.subr.mxu0 0.0
          %3782 = vmatpush2.msra.mxu0 0.0
          %3783 = vmatprep.subr.mxu0 0.0
          %3784 = vmatpush2.msra.mxu0 0.0
          %3785 = vmatprep.subr.mxu0 0.0
          %3786 = vmatpush2.msra.mxu0 0.0
          %3787 = vmatprep.subr.mxu0 0.0
          %3788 = vmatpush2.msra.mxu0 0.0
          %3789 = vmatprep.subr.mxu0 0.0
          %3790 = vmatpush2.msra.mxu0 0.0
          %3791 = vmatprep.subr.mxu0 0.0
          %3792 = vmatpush2.msra.mxu0 0.0
          %3793 = vmatprep.subr.mxu0 0.0
          %3794 = vmatpush2.msra.mxu0 0.0
          %3795 = vmatprep.subr.mxu0 0.0
          %3796 = vmatpush2.msra.mxu0 0.0
          %3797 = vmatprep.mubr.f32.mxu0 0.0
          %3798 = vmatmul.mubr.f32.gmra.mxu0 %v3716
          %v3799 = vpop.f32.mrf.mxu0
          %v3800 = vadd.f32 0.0, %v3799
          %v3801 = vpop.f32.mrf.mxu0
          %3802 = vdwg.mxu0
          %v3803 = vld [vmem:[%s10] sm:$0xff]
          %v3804 = vld [vmem:[%s10 + $0x8] sm:$0xff]
          %v3805 = vld [vmem:[%s10 + $0x10] sm:$0xff]
          %v3806 = vld [vmem:[%s10 + $0x18] sm:$0xff]
          %vm3807 = vcmask 261120
          %v3809 = vsel %vm3807, %v3800, 0
          %3811 = vmatprep.subr.mxu0 0.0
          %3812 = vmatpush1.msra.mxu0 0.0
          %3813 = vmatprep.subr.mxu0 0.0
          %3814 = vmatpush1.msra.mxu0 0.0
          %3815 = vmatprep.subr.mxu0 0.0
          %3816 = vmatpush1.msra.mxu0 0.0
          %3817 = vmatprep.subr.mxu0 0.0
          %3818 = vmatpush1.msra.mxu0 0.0
          %3819 = vmatprep.subr.mxu0 0.0
          %3820 = vmatpush1.msra.mxu0 0.0
          %3821 = vmatprep.subr.mxu0 0.0
          %3822 = vmatpush1.msra.mxu0 0.0
          %3823 = vmatprep.subr.mxu0 0.0
          %3824 = vmatpush1.msra.mxu0 0.0
          %3825 = vmatprep.subr.mxu0 0.0
          %3826 = vmatpush1.msra.mxu0 0.0
          %3827 = vmatprep.subr.mxu0 0.0
          %3828 = vmatpush1.msra.mxu0 0.0
          %3829 = vmatprep.subr.mxu0 0.0
          %3830 = vmatpush1.msra.mxu0 0.0
          %3831 = vmatprep.subr.mxu0 0.0
          %3832 = vmatpush1.msra.mxu0 0.0
          %3833 = vmatprep.subr.mxu0 0.0
          %3834 = vmatpush1.msra.mxu0 0.0
          %3835 = vmatprep.subr.mxu0 0.0
          %3836 = vmatpush1.msra.mxu0 %v3806
          %3837 = vmatprep.subr.mxu0 0.0
          %3838 = vmatpush1.msra.mxu0 %v3805
          %3839 = vmatprep.subr.mxu0 0.0
          %3840 = vmatpush1.msra.mxu0 %v3804
          %3841 = vmatprep.subr.mxu0 0.0
          %3842 = vmatpush1.msra.mxu0 %v3803
          %3843 = vmatprep.subr.mxu0 0.0
          %3844 = vmatpush2.msra.mxu0 0.0
          %3845 = vmatprep.subr.mxu0 0.0
          %3846 = vmatpush2.msra.mxu0 0.0
          %3847 = vmatprep.subr.mxu0 0.0
          %3848 = vmatpush2.msra.mxu0 0.0
          %3849 = vmatprep.subr.mxu0 0.0
          %3850 = vmatpush2.msra.mxu0 0.0
          %3851 = vmatprep.subr.mxu0 0.0
          %3852 = vmatpush2.msra.mxu0 0.0
          %3853 = vmatprep.subr.mxu0 0.0
          %3854 = vmatpush2.msra.mxu0 0.0
          %3855 = vmatprep.subr.mxu0 0.0
          %3856 = vmatpush2.msra.mxu0 0.0
          %3857 = vmatprep.subr.mxu0 0.0
          %3858 = vmatpush2.msra.mxu0 0.0
          %3859 = vmatprep.subr.mxu0 0.0
          %3860 = vmatpush2.msra.mxu0 0.0
          %3861 = vmatprep.subr.mxu0 0.0
          %3862 = vmatpush2.msra.mxu0 0.0
          %3863 = vmatprep.subr.mxu0 0.0
          %3864 = vmatpush2.msra.mxu0 0.0
          %3865 = vmatprep.subr.mxu0 0.0
          %3866 = vmatpush2.msra.mxu0 0.0
          %3867 = vmatprep.subr.mxu0 0.0
          %3868 = vmatpush2.msra.mxu0 0.0
          %3869 = vmatprep.subr.mxu0 0.0
          %3870 = vmatpush2.msra.mxu0 0.0
          %3871 = vmatprep.subr.mxu0 0.0
          %3872 = vmatpush2.msra.mxu0 0.0
          %3873 = vmatprep.subr.mxu0 0.0
          %3874 = vmatpush2.msra.mxu0 0.0
          %3875 = vmatprep.mubr.f32.mxu0 0.0
          %3876 = vmatmul.mubr.f32.gmra.mxu0 %v3809
          %v3877 = vpop.f32.mrf.mxu0
          %v3878 = vadd.f32 0.0, %v3877
          %v3879 = vpop.f32.mrf.mxu0
          %3880 = vdwg.mxu0
          %v3881 = vld [vmem:[#allocation5] sm:$0x1]
          %3882 = vmatprep.subr.mxu0 0.0
          %3883 = vmatpush1.msra.mxu0 %v3732
          %3884 = vmatprep.subr.mxu0 0.0
          %3885 = vmatpush1.msra.mxu0 %v3731
          %3886 = vmatprep.subr.mxu0 0.0
          %3887 = vmatpush1.msra.mxu0 %v3730
          %3888 = vmatprep.subr.mxu0 0.0
          %3889 = vmatpush1.msra.mxu0 %v3729
          %3890 = vmatprep.subr.mxu0 0.0
          %3891 = vmatpush1.msra.mxu0 %v3728
          %3892 = vmatprep.subr.mxu0 0.0
          %3893 = vmatpush1.msra.mxu0 %v3727
          %3894 = vmatprep.subr.mxu0 0.0
          %3895 = vmatpush1.msra.mxu0 %v3726
          %3896 = vmatprep.subr.mxu0 0.0
          %3897 = vmatpush1.msra.mxu0 %v3725
          %3898 = vmatprep.subr.mxu0 0.0
          %3899 = vmatpush1.msra.mxu0 %v3724
          %3900 = vmatprep.subr.mxu0 0.0
          %3901 = vmatpush1.msra.mxu0 %v3723
          %3902 = vmatprep.subr.mxu0 0.0
          %3903 = vmatpush1.msra.mxu0 %v3722
          %3904 = vmatprep.subr.mxu0 0.0
          %3905 = vmatpush1.msra.mxu0 %v3721
          %3906 = vmatprep.subr.mxu0 0.0
          %3907 = vmatpush1.msra.mxu0 %v3720
          %3908 = vmatprep.subr.mxu0 0.0
          %3909 = vmatpush1.msra.mxu0 %v3719
          %3910 = vmatprep.subr.mxu0 0.0
          %3911 = vmatpush1.msra.mxu0 %v3718
          %3912 = vmatprep.subr.mxu0 0.0
          %3913 = vmatpush1.msra.mxu0 %v3717
          %3914 = vmatprep.subr.mxu0 0.0
          %3915 = vmatpush2.msra.mxu0 0.0
          %3916 = vmatprep.subr.mxu0 0.0
          %3917 = vmatpush2.msra.mxu0 0.0
          %3918 = vmatprep.subr.mxu0 0.0
          %3919 = vmatpush2.msra.mxu0 0.0
          %3920 = vmatprep.subr.mxu0 0.0
          %3921 = vmatpush2.msra.mxu0 0.0
          %3922 = vmatprep.subr.mxu0 0.0
          %3923 = vmatpush2.msra.mxu0 0.0
          %3924 = vmatprep.subr.mxu0 0.0
          %3925 = vmatpush2.msra.mxu0 0.0
          %3926 = vmatprep.subr.mxu0 0.0
          %3927 = vmatpush2.msra.mxu0 0.0
          %3928 = vmatprep.subr.mxu0 0.0
          %3929 = vmatpush2.msra.mxu0 0.0
          %3930 = vmatprep.subr.mxu0 0.0
          %3931 = vmatpush2.msra.mxu0 0.0
          %3932 = vmatprep.subr.mxu0 0.0
          %3933 = vmatpush2.msra.mxu0 0.0
          %3934 = vmatprep.subr.mxu0 0.0
          %3935 = vmatpush2.msra.mxu0 0.0
          %3936 = vmatprep.subr.mxu0 0.0
          %3937 = vmatpush2.msra.mxu0 0.0
          %3938 = vmatprep.subr.mxu0 0.0
          %3939 = vmatpush2.msra.mxu0 0.0
          %3940 = vmatprep.subr.mxu0 0.0
          %3941 = vmatpush2.msra.mxu0 0.0
          %3942 = vmatprep.subr.mxu0 0.0
          %3943 = vmatpush2.msra.mxu0 0.0
          %3944 = vmatprep.subr.mxu0 0.0
          %3945 = vmatpush2.msra.mxu0 0.0
          %3946 = vmatprep.mubr.f32.mxu0 0.0
          %3947 = vmatmul.mubr.f32.gmra.mxu0 %v3881
          %v3948 = vpop.f32.mrf.mxu0
          %v3949 = vadd.f32 0.0, %v3948
          %v3950 = vpop.f32.mrf.mxu0
          %3951 = vdwg.mxu0
          %v3953 = vsel %vm3807, %v3949, 0
          %3955 = vmatprep.subr.mxu0 0.0
          %3956 = vmatpush1.msra.mxu0 0.0
          %3957 = vmatprep.subr.mxu0 0.0
          %3958 = vmatpush1.msra.mxu0 0.0
          %3959 = vmatprep.subr.mxu0 0.0
          %3960 = vmatpush1.msra.mxu0 0.0
          %3961 = vmatprep.subr.mxu0 0.0
          %3962 = vmatpush1.msra.mxu0 0.0
          %3963 = vmatprep.subr.mxu0 0.0
          %3964 = vmatpush1.msra.mxu0 0.0
          %3965 = vmatprep.subr.mxu0 0.0
          %3966 = vmatpush1.msra.mxu0 0.0
          %3967 = vmatprep.subr.mxu0 0.0
          %3968 = vmatpush1.msra.mxu0 0.0
          %3969 = vmatprep.subr.mxu0 0.0
          %3970 = vmatpush1.msra.mxu0 0.0
          %3971 = vmatprep.subr.mxu0 0.0
          %3972 = vmatpush1.msra.mxu0 0.0
          %3973 = vmatprep.subr.mxu0 0.0
          %3974 = vmatpush1.msra.mxu0 0.0
          %3975 = vmatprep.subr.mxu0 0.0
          %3976 = vmatpush1.msra.mxu0 0.0
          %3977 = vmatprep.subr.mxu0 0.0
          %3978 = vmatpush1.msra.mxu0 0.0
          %3979 = vmatprep.subr.mxu0 0.0
          %3980 = vmatpush1.msra.mxu0 %v3806
          %3981 = vmatprep.subr.mxu0 0.0
          %3982 = vmatpush1.msra.mxu0 %v3805
          %3983 = vmatprep.subr.mxu0 0.0
          %3984 = vmatpush1.msra.mxu0 %v3804
          %3985 = vmatprep.subr.mxu0 0.0
          %3986 = vmatpush1.msra.mxu0 %v3803
          %3987 = vmatprep.subr.mxu0 0.0
          %3988 = vmatpush2.msra.mxu0 0.0
          %3989 = vmatprep.subr.mxu0 0.0
          %3990 = vmatpush2.msra.mxu0 0.0
          %3991 = vmatprep.subr.mxu0 0.0
          %3992 = vmatpush2.msra.mxu0 0.0
          %3993 = vmatprep.subr.mxu0 0.0
          %3994 = vmatpush2.msra.mxu0 0.0
          %3995 = vmatprep.subr.mxu0 0.0
          %3996 = vmatpush2.msra.mxu0 0.0
          %3997 = vmatprep.subr.mxu0 0.0
          %3998 = vmatpush2.msra.mxu0 0.0
          %3999 = vmatprep.subr.mxu0 0.0
          %4000 = vmatpush2.msra.mxu0 0.0
          %4001 = vmatprep.subr.mxu0 0.0
          %4002 = vmatpush2.msra.mxu0 0.0
          %4003 = vmatprep.subr.mxu0 0.0
          %4004 = vmatpush2.msra.mxu0 0.0
          %4005 = vmatprep.subr.mxu0 0.0
          %4006 = vmatpush2.msra.mxu0 0.0
          %4007 = vmatprep.subr.mxu0 0.0
          %4008 = vmatpush2.msra.mxu0 0.0
          %4009 = vmatprep.subr.mxu0 0.0
          %4010 = vmatpush2.msra.mxu0 0.0
          %4011 = vmatprep.subr.mxu0 0.0
          %4012 = vmatpush2.msra.mxu0 0.0
          %4013 = vmatprep.subr.mxu0 0.0
          %4014 = vmatpush2.msra.mxu0 0.0
          %4015 = vmatprep.subr.mxu0 0.0
          %4016 = vmatpush2.msra.mxu0 0.0
          %4017 = vmatprep.subr.mxu0 0.0
          %4018 = vmatpush2.msra.mxu0 0.0
          %4019 = vmatprep.mubr.f32.mxu0 0.0
          %4020 = vmatmul.mubr.f32.gmra.mxu0 %v3953
          %v4021 = vpop.f32.mrf.mxu0
          %v4022 = vadd.f32 0.0, %v4021
          %v4023 = vpop.f32.mrf.mxu0
          %4024 = vdwg.mxu0
          %v4025 = vmul.f32 %v3878, %v3878
          %v4026 = vsub.f32 %v4022, %v4025
          %v4027 = vmax.f32 %v4026, 0.0
          %v4028 = vadd.f32 %v4027, 1e-05
          %v4029 = vrsqrt.pop %v4028
          %v4030 = vld [vmem:[%s7] sm:$0x1]
          %v4031 = vmul.f32 %v4029, %v4030
          %v4032 = vld [vmem:[%s8] sm:$0x1]
          %v4033 = vmul.f32 %v3878, %v4031
          %v4034 = vsub.f32 %v4032, %v4033
          loop: start=0, step=1, limit=2
          $region73: #{tpu_custom_call.1} parent=71 // loop_pre_header
            _
          $region74: #{tpu_custom_call.1} parent=71 // loop_header
            %s4036 = sphi 0, %s4040
            %p4037 = scmp.ge.s32.totalorder %s4036, 2
          $region75: #{tpu_custom_call.1} parent=71 // loop_header_branch
            %4039 = sbr.rel (%p4037) target = $region79
          $region76: #{tpu_custom_call.1} parent=71 // loop_body
            %s4041 = smul.u32 %s4036, 128
            %s4042 = sshra.s32 %s4041, 3
            %s4043 = sand.u32 %s4041, 7
            %s4044 = smul.addr %s4042, 4
            %s4045 = scalar_lea.vmem %s432, %s4044 [#allocation6]
            %v4046 = vld [vmem:[%s4045] sm:$0xf]
            %v4047 = vld [vmem:[%s4045 + $0x4] sm:$0xf]
            %v4048 = vld [vmem:[%s4045 + $0x8] sm:$0xf]
            %v4049 = vld [vmem:[%s4045 + $0xc] sm:$0xf]
            %v4050 = vld [vmem:[%s4045 + $0x10] sm:$0xf]
            %v4051 = vld [vmem:[%s4045 + $0x14] sm:$0xf]
            %v4052 = vld [vmem:[%s4045 + $0x18] sm:$0xf]
            %v4053 = vld [vmem:[%s4045 + $0x1c] sm:$0xf]
            %v4054 = vld [vmem:[%s4045 + $0x20] sm:$0xf]
            %v4055 = vld [vmem:[%s4045 + $0x24] sm:$0xf]
            %v4056 = vld [vmem:[%s4045 + $0x28] sm:$0xf]
            %v4057 = vld [vmem:[%s4045 + $0x2c] sm:$0xf]
            %v4058 = vld [vmem:[%s4045 + $0x30] sm:$0xf]
            %v4059 = vld [vmem:[%s4045 + $0x34] sm:$0xf]
            %v4060 = vld [vmem:[%s4045 + $0x38] sm:$0xf]
            %v4061 = vld [vmem:[%s4045 + $0x3c] sm:$0xf]
            %v4062 = vunpack.c.l.bf16 %v4046
            %v4063 = vunpack.c.l.bf16 %v4047
            %v4064 = vunpack.c.l.bf16 %v4048
            %v4065 = vunpack.c.l.bf16 %v4049
            %v4066 = vunpack.c.l.bf16 %v4050
            %v4067 = vunpack.c.l.bf16 %v4051
            %v4068 = vunpack.c.l.bf16 %v4052
            %v4069 = vunpack.c.l.bf16 %v4053
            %v4070 = vunpack.c.l.bf16 %v4054
            %v4071 = vunpack.c.l.bf16 %v4055
            %v4072 = vunpack.c.l.bf16 %v4056
            %v4073 = vunpack.c.l.bf16 %v4057
            %v4074 = vunpack.c.l.bf16 %v4058
            %v4075 = vunpack.c.l.bf16 %v4059
            %v4076 = vunpack.c.l.bf16 %v4060
            %v4077 = vunpack.c.l.bf16 %v4061
            %v4078 = vlaneseq
            %v4079 = vshrl.u32 %v4078, 7
            %v4080 = vsub.s32 0, %v4079
            %v4081 = vrot.slane %v4031, %v4080
            %v4082 = vmul.f32 %v4062, %v4081
            %v4083 = vmul.f32 %v4063, %v4081
            %v4084 = vmul.f32 %v4064, %v4081
            %v4085 = vmul.f32 %v4065, %v4081
            %v4086 = vmul.f32 %v4066, %v4081
            %v4087 = vmul.f32 %v4067, %v4081
            %v4088 = vmul.f32 %v4068, %v4081
            %v4089 = vmul.f32 %v4069, %v4081
            %v4090 = vmul.f32 %v4070, %v4081
            %v4091 = vmul.f32 %v4071, %v4081
            %v4092 = vmul.f32 %v4072, %v4081
            %v4093 = vmul.f32 %v4073, %v4081
            %v4094 = vmul.f32 %v4074, %v4081
            %v4095 = vmul.f32 %v4075, %v4081
            %v4096 = vmul.f32 %v4076, %v4081
            %v4097 = vmul.f32 %v4077, %v4081
            %v4099 = vlaneseq
            %v4100 = vshrl.u32 %v4099, 7
            %v4101 = vsub.s32 0, %v4100
            %v4102 = vrot.slane %v4034, %v4101
            %v4104 = vadd.f32 %v4082, %v4102
            %v4105 = vadd.f32 %v4083, %v4102
            %v4106 = vadd.f32 %v4084, %v4102
            %v4107 = vadd.f32 %v4085, %v4102
            %v4108 = vadd.f32 %v4086, %v4102
            %v4109 = vadd.f32 %v4087, %v4102
            %v4110 = vadd.f32 %v4088, %v4102
            %v4111 = vadd.f32 %v4089, %v4102
            %v4112 = vadd.f32 %v4090, %v4102
            %v4113 = vadd.f32 %v4091, %v4102
            %v4114 = vadd.f32 %v4092, %v4102
            %v4115 = vadd.f32 %v4093, %v4102
            %v4116 = vadd.f32 %v4094, %v4102
            %v4117 = vadd.f32 %v4095, %v4102
            %v4118 = vadd.f32 %v4096, %v4102
            %v4119 = vadd.f32 %v4097, %v4102
            %v4120 = vpack.c.bf16 %v4105, %v4104
            %v4121 = vpack.c.bf16 %v4107, %v4106
            %v4122 = vpack.c.bf16 %v4109, %v4108
            %v4123 = vpack.c.bf16 %v4111, %v4110
            %v4124 = vpack.c.bf16 %v4113, %v4112
            %v4125 = vpack.c.bf16 %v4115, %v4114
            %v4126 = vpack.c.bf16 %v4117, %v4116
            %v4127 = vpack.c.bf16 %v4119, %v4118
            %v4136 = vunpack.c.l.b16 %v4120
            %v4137 = vunpack.c.h.b16 %v4120
            %v4138 = vunpack.c.l.b16 %v4121
            %v4139 = vunpack.c.h.b16 %v4121
            %v4140 = vunpack.c.l.b16 %v4122
            %v4141 = vunpack.c.h.b16 %v4122
            %v4142 = vunpack.c.l.b16 %v4123
            %v4143 = vunpack.c.h.b16 %v4123
            %v4144 = vunpack.c.l.b16 %v4124
            %v4145 = vunpack.c.h.b16 %v4124
            %v4146 = vunpack.c.l.b16 %v4125
            %v4147 = vunpack.c.h.b16 %v4125
            %v4148 = vunpack.c.l.b16 %v4126
            %v4149 = vunpack.c.h.b16 %v4126
            %v4150 = vunpack.c.l.b16 %v4127
            %v4151 = vunpack.c.h.b16 %v4127
            %v4152 = vpack.c.b16 %v4136, %v4136
            %v4153 = vpack.c.b16 %v4137, %v4137
            %v4154 = vpack.c.b16 %v4138, %v4138
            %v4155 = vpack.c.b16 %v4139, %v4139
            %v4156 = vpack.c.b16 %v4140, %v4140
            %v4157 = vpack.c.b16 %v4141, %v4141
            %v4158 = vpack.c.b16 %v4142, %v4142
            %v4159 = vpack.c.b16 %v4143, %v4143
            %v4160 = vpack.c.b16 %v4144, %v4144
            %v4161 = vpack.c.b16 %v4145, %v4145
            %v4162 = vpack.c.b16 %v4146, %v4146
            %v4163 = vpack.c.b16 %v4147, %v4147
            %v4164 = vpack.c.b16 %v4148, %v4148
            %v4165 = vpack.c.b16 %v4149, %v4149
            %v4166 = vpack.c.b16 %v4150, %v4150
            %v4167 = vpack.c.b16 %v4151, %v4151
            %4184 = vst [vmem:[%s4045] sm:$0xf] %v4152
            %4185 = vst [vmem:[%s4045 + $0x4] sm:$0xf] %v4153
            %4186 = vst [vmem:[%s4045 + $0x8] sm:$0xf] %v4154
            %4187 = vst [vmem:[%s4045 + $0xc] sm:$0xf] %v4155
            %4188 = vst [vmem:[%s4045 + $0x10] sm:$0xf] %v4156
            %4189 = vst [vmem:[%s4045 + $0x14] sm:$0xf] %v4157
            %4190 = vst [vmem:[%s4045 + $0x18] sm:$0xf] %v4158
            %4191 = vst [vmem:[%s4045 + $0x1c] sm:$0xf] %v4159
            %4192 = vst [vmem:[%s4045 + $0x20] sm:$0xf] %v4160
            %4193 = vst [vmem:[%s4045 + $0x24] sm:$0xf] %v4161
            %4194 = vst [vmem:[%s4045 + $0x28] sm:$0xf] %v4162
            %4195 = vst [vmem:[%s4045 + $0x2c] sm:$0xf] %v4163
            %4196 = vst [vmem:[%s4045 + $0x30] sm:$0xf] %v4164
            %4197 = vst [vmem:[%s4045 + $0x34] sm:$0xf] %v4165
            %4198 = vst [vmem:[%s4045 + $0x38] sm:$0xf] %v4166
            %4199 = vst [vmem:[%s4045 + $0x3c] sm:$0xf] %v4167
          $region77: #{tpu_custom_call.1} parent=71 // loop_footer
            %s4040 = sadd.s32 1, %s4036
          $region78: #{tpu_custom_call.1} parent=71 // loop_footer_branch
            %4035 = sbr.rel target = $region74
          $region79: #{tpu_custom_call.1} parent=71 // loop_exit
            _
        $region72: #{tpu_custom_call.1} parent=63 // pred_fallthru
          _
        %s4200 = sand.u32 %s293, 1
        %s4201 = scalar_lea.sflag [#allocation7], %s4200
        %s4202 = sand.u32 %s293, 1
        %s4203 = smul.addr %s4202, 128
        %s4204 = scalar_lea.vmem [#allocation6], %s4203
        // Predicated region
        $region80: #{tpu_custom_call.1} parent=63 // pred_check
          %p4205 = pneg %p303
        $region81: #{tpu_custom_call.1} parent=63 // pred_check_branch
          %4207 = sbr.rel (%p4205) target = $region83
        $region82: #{tpu_custom_call.1} parent=63 // pred_region
          %s4209 = ssub.s32 2048, 2048
          %4210 = vsyncadd %s4201, %s4209
          %s4211 = smul.addr %s29, 32
          %s4212 = smul.addr %s4211, 64
          %s4213 = scalar_lea.hbm %s11, %s4212
          %s4214 = sshll.u32 %s4204, 4
          %s4215 = int_to_ptr.vmem [resolvable:$true] %s4214
          %4220 = dma.vmem_to_hbm [thread:$0]  %s4215, 2048, %s4213, %s4201, 64, 64, 4
        $region83: #{tpu_custom_call.1} parent=63 // pred_fallthru
          _
      $region64: #{tpu_custom_call.1} parent=5 // pred_fallthru
        _
      %p4221 = scmp.le.s32.totalorder 2, %s20
      // Predicated region
      $region84: #{tpu_custom_call.1} parent=5 // pred_check
        %p4222 = pneg %p4221
      $region85: #{tpu_custom_call.1} parent=5 // pred_check_branch
        %4224 = sbr.rel (%p4222) target = $region87
      $region86: #{tpu_custom_call.1} parent=5 // pred_region
        %s4225 = ssub.s32 %s20, 2
        // Predicated region
        $region88: #{tpu_custom_call.1} parent=86 // pred_check
          %p4226 = pneg %p309
        $region89: #{tpu_custom_call.1} parent=86 // pred_check_branch
          %4228 = sbr.rel (%p4226) target = $region91
        $region90: #{tpu_custom_call.1} parent=86 // pred_region
          %s4229 = sand.u32 %s294, 1
          %s4230 = scalar_lea.sflag [#allocation7], %s4229
          %s4231 = sand.u32 %s294, 1
          %s4232 = smul.addr %s4231, 128
          %s4233 = scalar_lea.vmem [#allocation6], %s4232
          %4234 = dma.done %s4230, 2048
        $region91: #{tpu_custom_call.1} parent=86 // pred_fallthru
          _
      $region87: #{tpu_custom_call.1} parent=5 // pred_fallthru
        _
    $region6: #{tpu_custom_call.1} parent=1 // loop_footer
      %s24 = sadd.s32 1, %s20
    $region7: #{tpu_custom_call.1} parent=1 // loop_footer_branch
      %19 = sbr.rel target = $region3
    $region8: #{tpu_custom_call.1} parent=1 // loop_exit
      _
    %4235 = vsyncpa [#allocation7], 1
    %s4236 = scalar_lea.sflag [#allocation7], 1
    %4237 = vsyncpa %s4236, 1

</llo_original>
